<compile_context>
chip_gen: v5e
topology: v5e:2x2
jax: 0.10.0
libtpu: 0.0.40
codegen_flags: <defaults>
</compile_context>

<pallas_src>
import functools

import jax
import jax.numpy as jnp
from jax import lax
from jax.experimental import pallas as pl
from jax.experimental.pallas import tpu as pltpu


def _kmeans_kernel(data_ref, centers_ref, cent_out_ref, assign_out_ref, *,
                   num_iterations):
    x = data_ref[...]                                        # (N, D) f32
    N, D = x.shape
    C = centers_ref.shape[0]

    # Hoisted loop invariants (JAX does not CSE broadcasts/iotas inside loops).
    col = lax.broadcasted_iota(jnp.int32, (N, C), 1)         # cluster index per column
    ones_n1 = jnp.ones((N, 1), jnp.float32)
    ones_1d = jnp.ones((1, D), jnp.float32)

    def body(_, carry):
        cent, _assign = carry                                # cent: (C, D) f32

        # --- squared-distance surrogate on the MXU -------------------------------
        #   xc[n,c]  = x_n . c_c            (N, C)  -- big matmul
        #   cn2[0,c] = ||c_c||^2            (1, C)  -- tiny matmul, row layout
        xc = lax.dot_general(x, cent, (((1,), (1,)), ((), ())),
                             preferred_element_type=jnp.float32)       # (N, C)
        cn2 = lax.dot_general(ones_1d, cent * cent, (((1,), (1,)), ((), ())),
                              preferred_element_type=jnp.float32)      # (1, C)
        d2 = cn2 - 2.0 * xc                                  # same argmin as torch.cdist

        # --- argmin over clusters, first-index tie break (torch.argmin) ----------
        minv = jnp.min(d2, axis=1, keepdims=True)                      # (N, 1)
        assign = jnp.min(jnp.where(d2 <= minv, col, C),
                         axis=1, keepdims=True)                        # (N, 1) i32

        # --- scatter_reduce_(dim=1, reduce='mean', include_self=False) -----------
        onehot = (assign == col).astype(jnp.float32)                   # (N, C)
        sums = lax.dot_general(onehot, x, (((0,), (0,)), ((), ())),
                               preferred_element_type=jnp.float32)     # (C, D)
        counts = lax.dot_general(onehot, ones_n1, (((0,), (0,)), ((), ())),
                                 preferred_element_type=jnp.float32)   # (C, 1)
        new_cent = jnp.where(counts > 0.0,
                             sums / jnp.maximum(counts, 1.0),
                             cent)                           # empty clusters keep old value
        return new_cent, assign

    cent0 = centers_ref[...]
    assign0 = jnp.zeros((N, 1), jnp.int32)                   # covers num_iterations == 0
    cent_fin, assign_fin = lax.fori_loop(0, num_iterations, body,
                                         (cent0, assign0), unroll=True)

    cent_out_ref[...] = cent_fin
    assign_out_ref[...] = assign_fin

    # TODO(synk): torch version breaks early on allclose(centers, old_centers);
    # the converged state is a fixed point, so running all iterations matches.
    # TODO(synk): for large N (N*D*4 beyond a few MiB, esp. v7x 64 MiB VMEM), tile N
    # with a nested pltpu.emit_pipeline and accumulate (C, D) sums / (C, 1) counts in
    # VMEM scratch; pad C/N to MXU-native multiples (128 on v5e, 256 on v6e/v7x) and
    # add an N-tile parallel grid axis so both v7x TensorCores are used when B is small.


def kmeans_pallas(data, centers, num_iterations):
    """Returns (centers, cluster_assignment) matching the torch KMeans.forward."""
    orig_2d = data.ndim == 2
    if orig_2d:
        data = data[None]
        centers = centers[None]
    data = data.astype(jnp.float32)
    centers = centers.astype(jnp.float32)

    B, N, D = data.shape
    C = centers.shape[1]

    kernel = functools.partial(_kmeans_kernel, num_iterations=num_iterations)
    cent_out, assign_out = pl.pallas_call(
        kernel,
        out_shape=(jax.ShapeDtypeStruct((B, C, D), jnp.float32),
                   jax.ShapeDtypeStruct((B, N, 1), jnp.int32)),
        grid_spec=pltpu.PrefetchScalarGridSpec(
            num_scalar_prefetch=0,
            grid=(B,),
            in_specs=[
                pl.BlockSpec((None, N, D), lambda b: (b, 0, 0)),   # data
                pl.BlockSpec((None, C, D), lambda b: (b, 0, 0)),   # centers
            ],
            out_specs=[
                pl.BlockSpec((None, C, D), lambda b: (b, 0, 0)),   # new centers
                pl.BlockSpec((None, N, 1), lambda b: (b, 0, 0)),   # assignment (slim)
            ],
        ),
        compiler_params=pltpu.CompilerParams(dimension_semantics=("parallel",)),
    )(data, centers)

    # torch module returns the assignment repeated across the feature axis; do the
    # cheap repeat in the wrapper (keeps kernel output slim / one-time store).
    assign_rep = jnp.broadcast_to(assign_out, (B, N, D)).astype(jnp.int32)

    if orig_2d:
        return cent_out[0], assign_rep[0]
    return cent_out, assign_rep


def kmeans_ref(data, centers, num_iterations):
    """Pure-JAX reference mirroring the torch module (explicit distances)."""
    B, N, D = data.shape
    C = centers.shape[1]
    assign = jnp.zeros((B, N), jnp.int32)
    for _ in range(num_iterations):
        d2 = jnp.sum((data[:, :, None, :] - centers[:, None, :, :]) ** 2, axis=-1)
        assign = jnp.argmin(d2, axis=-1).astype(jnp.int32)
        onehot = jax.nn.one_hot(assign, C, dtype=jnp.float32)           # (B, N, C)
        counts = jnp.sum(onehot, axis=1)                                # (B, C)
        sums = jnp.einsum('bnc,bnd->bcd', onehot, data)                 # (B, C, D)
        centers = jnp.where((counts > 0)[..., None],
                            sums / jnp.maximum(counts, 1.0)[..., None],
                            centers)
    assign_rep = jnp.broadcast_to(assign[..., None], (B, N, D)).astype(jnp.int32)
    return centers, assign_rep


if __name__ == "__main__":
    B, N, D, C = 2, 64, 8, 8           # batch, points, features(dim), num_clusters
    num_iterations = 10

    key = jax.random.PRNGKey(0)
    kd, _ = jax.random.split(key)
    data = jax.random.normal(kd, (B, N, D), jnp.float32)
    centers0 = data[:, :C, :]          # deterministic init: first C points per batch

    cent, assign = kmeans_pallas(data, centers0, num_iterations)
    cent = jax.block_until_ready(cent)
    assign = jax.block_until_ready(assign)

    cent_ref, assign_ref = kmeans_ref(data, centers0, num_iterations)
    assert cent.shape == (B, C, D) and assign.shape == (B, N, D)
    assert jnp.allclose(cent, cent_ref, atol=1e-5, rtol=1e-5)
    assert jnp.array_equal(assign, assign_ref)

    print("KERNEL_OK")
</pallas_src>

<mosaic_0001>
module attributes {stable_mosaic.version = 11 : i64} {
  func.func @_kmeans_kernel(%arg0: i32, %arg1: memref<1x64x8xf32, #tpu.memory_space<vmem>>, %arg2: memref<1x8x8xf32, #tpu.memory_space<vmem>>, %arg3: memref<1x8x8xf32, #tpu.memory_space<vmem>>, %arg4: memref<1x64x1xi32, #tpu.memory_space<vmem>>) attributes {dimension_semantics = [#tpu.dimension_semantics<parallel>], iteration_bounds = array<i64: 2>, scalar_prefetch = 0 : i64, scratch_operands = 0 : i64, tpu.core_type = #tpu.core_type<tc>, window_params = [{transform_indices = @transform_0, window_bounds = array<i64: 1, 64, 8>}, {transform_indices = @transform_1, window_bounds = array<i64: 1, 8, 8>}, {transform_indices = @transform_2, window_bounds = array<i64: 1, 8, 8>}, {transform_indices = @transform_3, window_bounds = array<i64: 1, 64, 1>}]} {
    %c0 = arith.constant 0 : index
    %c0_0 = arith.constant 0 : index
    %c0_1 = arith.constant 0 : index
    %0 = vector.load %arg1[%c0, %c0_0, %c0_1] : memref<1x64x8xf32, #tpu.memory_space<vmem>>, vector<1x64x8xf32>
    %1 = vector.shape_cast %0 : vector<1x64x8xf32> to vector<64x8xf32>
    %2 = tpu.iota {dimensions = array<i32: 1>} : vector<64x8xi32>
    %cst = arith.constant 1.000000e+00 : f32
    %3 = vector.broadcast %cst : f32 to vector<64x1xf32>
    %cst_2 = arith.constant 1.000000e+00 : f32
    %4 = vector.broadcast %cst_2 : f32 to vector<1x8xf32>
    %c0_3 = arith.constant 0 : index
    %c0_4 = arith.constant 0 : index
    %c0_5 = arith.constant 0 : index
    %5 = vector.load %arg2[%c0_3, %c0_4, %c0_5] : memref<1x8x8xf32, #tpu.memory_space<vmem>>, vector<1x8x8xf32>
    %6 = vector.shape_cast %5 : vector<1x8x8xf32> to vector<8x8xf32>
    %c0_i32 = arith.constant 0 : i32
    %7 = vector.broadcast %c0_i32 : i32 to vector<64x1xi32>
    %c0_i32_6 = arith.constant 0 : i32
    %cst_7 = arith.constant dense<0.000000e+00> : vector<64x8xf32>
    %8 = tpu.matmul %1, %6, %cst_7 {dimension_numbers = #tpu.dot_dimension_numbers<[1], [1], [0], [0], [0, 0, 1, 0], [], []>} : vector<64x8xf32>, vector<8x8xf32>, vector<64x8xf32> -> vector<64x8xf32>
    %9 = arith.mulf %6, %6 : vector<8x8xf32>
    %cst_8 = arith.constant dense<0.000000e+00> : vector<1x8xf32>
    %10 = tpu.matmul %4, %9, %cst_8 {dimension_numbers = #tpu.dot_dimension_numbers<[1], [1], [0], [0], [0, 0, 1, 0], [], []>} : vector<1x8xf32>, vector<8x8xf32>, vector<1x8xf32> -> vector<1x8xf32>
    %cst_9 = arith.constant 2.000000e+00 : f32
    %11 = vector.broadcast %cst_9 : f32 to vector<64x8xf32>
    %12 = arith.mulf %11, %8 : vector<64x8xf32>
    %13 = vector.broadcast %10 : vector<1x8xf32> to vector<64x8xf32>
    %14 = arith.subf %13, %12 : vector<64x8xf32>
    %cst_10 = arith.constant dense<0x7F800000> : vector<64xf32>
    %15 = vector.multi_reduction <minimumf>, %14, %cst_10 [1] : vector<64x8xf32> to vector<64xf32>
    %16 = vector.shape_cast %15 : vector<64xf32> to vector<64x1xf32>
    %17 = vector.broadcast %16 : vector<64x1xf32> to vector<64x8xf32>
    %18 = arith.cmpf ole, %14, %17 : vector<64x8xf32>
    %c8_i32 = arith.constant 8 : i32
    %19 = vector.broadcast %c8_i32 : i32 to vector<64x8xi32>
    %20 = arith.select %18, %2, %19 : vector<64x8xi1>, vector<64x8xi32>
    %cst_11 = arith.constant dense<2147483647> : vector<64xi32>
    %21 = vector.multi_reduction <minsi>, %20, %cst_11 [1] : vector<64x8xi32> to vector<64xi32>
    %22 = vector.shape_cast %21 : vector<64xi32> to vector<64x1xi32>
    %23 = vector.broadcast %22 : vector<64x1xi32> to vector<64x8xi32>
    %24 = arith.cmpi eq, %23, %2 : vector<64x8xi32>
    %25 = arith.extui %24 : vector<64x8xi1> to vector<64x8xi32>
    %26 = arith.sitofp %25 : vector<64x8xi32> to vector<64x8xf32>
    %cst_12 = arith.constant dense<0.000000e+00> : vector<8x8xf32>
    %27 = tpu.matmul %26, %1, %cst_12 {dimension_numbers = #tpu.dot_dimension_numbers<[0], [0], [1], [1], [0, 1, 1, 1], [], []>} : vector<64x8xf32>, vector<64x8xf32>, vector<8x8xf32> -> vector<8x8xf32>
    %cst_13 = arith.constant dense<0.000000e+00> : vector<8x1xf32>
    %28 = tpu.matmul %26, %3, %cst_13 {dimension_numbers = #tpu.dot_dimension_numbers<[0], [0], [1], [1], [0, 1, 1, 1], [], []>} : vector<64x8xf32>, vector<64x1xf32>, vector<8x1xf32> -> vector<8x1xf32>
    %cst_14 = arith.constant 0.000000e+00 : f32
    %29 = vector.broadcast %cst_14 : f32 to vector<8x1xf32>
    %30 = arith.cmpf ogt, %28, %29 : vector<8x1xf32>
    %cst_15 = arith.constant 1.000000e+00 : f32
    %31 = vector.broadcast %cst_15 : f32 to vector<8x1xf32>
    %32 = arith.maximumf %28, %31 : vector<8x1xf32>
    %33 = vector.broadcast %32 : vector<8x1xf32> to vector<8x8xf32>
    %34 = arith.divf %27, %33 : vector<8x8xf32>
    %35 = vector.shape_cast %30 : vector<8x1xi1> to vector<8x1xi1>
    %36 = vector.broadcast %35 : vector<8x1xi1> to vector<8x8xi1>
    %37 = arith.select %36, %34, %6 : vector<8x8xi1>, vector<8x8xf32>
    %c1_i32 = arith.constant 1 : i32
    %cst_16 = arith.constant dense<0.000000e+00> : vector<64x8xf32>
    %38 = tpu.matmul %1, %37, %cst_16 {dimension_numbers = #tpu.dot_dimension_numbers<[1], [1], [0], [0], [0, 0, 1, 0], [], []>} : vector<64x8xf32>, vector<8x8xf32>, vector<64x8xf32> -> vector<64x8xf32>
    %39 = arith.mulf %37, %37 : vector<8x8xf32>
    %cst_17 = arith.constant dense<0.000000e+00> : vector<1x8xf32>
    %40 = tpu.matmul %4, %39, %cst_17 {dimension_numbers = #tpu.dot_dimension_numbers<[1], [1], [0], [0], [0, 0, 1, 0], [], []>} : vector<1x8xf32>, vector<8x8xf32>, vector<1x8xf32> -> vector<1x8xf32>
    %cst_18 = arith.constant 2.000000e+00 : f32
    %41 = vector.broadcast %cst_18 : f32 to vector<64x8xf32>
    %42 = arith.mulf %41, %38 : vector<64x8xf32>
    %43 = vector.broadcast %40 : vector<1x8xf32> to vector<64x8xf32>
    %44 = arith.subf %43, %42 : vector<64x8xf32>
    %cst_19 = arith.constant dense<0x7F800000> : vector<64xf32>
    %45 = vector.multi_reduction <minimumf>, %44, %cst_19 [1] : vector<64x8xf32> to vector<64xf32>
    %46 = vector.shape_cast %45 : vector<64xf32> to vector<64x1xf32>
    %47 = vector.broadcast %46 : vector<64x1xf32> to vector<64x8xf32>
    %48 = arith.cmpf ole, %44, %47 : vector<64x8xf32>
    %c8_i32_20 = arith.constant 8 : i32
    %49 = vector.broadcast %c8_i32_20 : i32 to vector<64x8xi32>
    %50 = arith.select %48, %2, %49 : vector<64x8xi1>, vector<64x8xi32>
    %cst_21 = arith.constant dense<2147483647> : vector<64xi32>
    %51 = vector.multi_reduction <minsi>, %50, %cst_21 [1] : vector<64x8xi32> to vector<64xi32>
    %52 = vector.shape_cast %51 : vector<64xi32> to vector<64x1xi32>
    %53 = vector.broadcast %52 : vector<64x1xi32> to vector<64x8xi32>
    %54 = arith.cmpi eq, %53, %2 : vector<64x8xi32>
    %55 = arith.extui %54 : vector<64x8xi1> to vector<64x8xi32>
    %56 = arith.sitofp %55 : vector<64x8xi32> to vector<64x8xf32>
    %cst_22 = arith.constant dense<0.000000e+00> : vector<8x8xf32>
    %57 = tpu.matmul %56, %1, %cst_22 {dimension_numbers = #tpu.dot_dimension_numbers<[0], [0], [1], [1], [0, 1, 1, 1], [], []>} : vector<64x8xf32>, vector<64x8xf32>, vector<8x8xf32> -> vector<8x8xf32>
    %cst_23 = arith.constant dense<0.000000e+00> : vector<8x1xf32>
    %58 = tpu.matmul %56, %3, %cst_23 {dimension_numbers = #tpu.dot_dimension_numbers<[0], [0], [1], [1], [0, 1, 1, 1], [], []>} : vector<64x8xf32>, vector<64x1xf32>, vector<8x1xf32> -> vector<8x1xf32>
    %cst_24 = arith.constant 0.000000e+00 : f32
    %59 = vector.broadcast %cst_24 : f32 to vector<8x1xf32>
    %60 = arith.cmpf ogt, %58, %59 : vector<8x1xf32>
    %cst_25 = arith.constant 1.000000e+00 : f32
    %61 = vector.broadcast %cst_25 : f32 to vector<8x1xf32>
    %62 = arith.maximumf %58, %61 : vector<8x1xf32>
    %63 = vector.broadcast %62 : vector<8x1xf32> to vector<8x8xf32>
    %64 = arith.divf %57, %63 : vector<8x8xf32>
    %65 = vector.shape_cast %60 : vector<8x1xi1> to vector<8x1xi1>
    %66 = vector.broadcast %65 : vector<8x1xi1> to vector<8x8xi1>
    %67 = arith.select %66, %64, %37 : vector<8x8xi1>, vector<8x8xf32>
    %c2_i32 = arith.constant 2 : i32
    %cst_26 = arith.constant dense<0.000000e+00> : vector<64x8xf32>
    %68 = tpu.matmul %1, %67, %cst_26 {dimension_numbers = #tpu.dot_dimension_numbers<[1], [1], [0], [0], [0, 0, 1, 0], [], []>} : vector<64x8xf32>, vector<8x8xf32>, vector<64x8xf32> -> vector<64x8xf32>
    %69 = arith.mulf %67, %67 : vector<8x8xf32>
    %cst_27 = arith.constant dense<0.000000e+00> : vector<1x8xf32>
    %70 = tpu.matmul %4, %69, %cst_27 {dimension_numbers = #tpu.dot_dimension_numbers<[1], [1], [0], [0], [0, 0, 1, 0], [], []>} : vector<1x8xf32>, vector<8x8xf32>, vector<1x8xf32> -> vector<1x8xf32>
    %cst_28 = arith.constant 2.000000e+00 : f32
    %71 = vector.broadcast %cst_28 : f32 to vector<64x8xf32>
    %72 = arith.mulf %71, %68 : vector<64x8xf32>
    %73 = vector.broadcast %70 : vector<1x8xf32> to vector<64x8xf32>
    %74 = arith.subf %73, %72 : vector<64x8xf32>
    %cst_29 = arith.constant dense<0x7F800000> : vector<64xf32>
    %75 = vector.multi_reduction <minimumf>, %74, %cst_29 [1] : vector<64x8xf32> to vector<64xf32>
    %76 = vector.shape_cast %75 : vector<64xf32> to vector<64x1xf32>
    %77 = vector.broadcast %76 : vector<64x1xf32> to vector<64x8xf32>
    %78 = arith.cmpf ole, %74, %77 : vector<64x8xf32>
    %c8_i32_30 = arith.constant 8 : i32
    %79 = vector.broadcast %c8_i32_30 : i32 to vector<64x8xi32>
    %80 = arith.select %78, %2, %79 : vector<64x8xi1>, vector<64x8xi32>
    %cst_31 = arith.constant dense<2147483647> : vector<64xi32>
    %81 = vector.multi_reduction <minsi>, %80, %cst_31 [1] : vector<64x8xi32> to vector<64xi32>
    %82 = vector.shape_cast %81 : vector<64xi32> to vector<64x1xi32>
    %83 = vector.broadcast %82 : vector<64x1xi32> to vector<64x8xi32>
    %84 = arith.cmpi eq, %83, %2 : vector<64x8xi32>
    %85 = arith.extui %84 : vector<64x8xi1> to vector<64x8xi32>
    %86 = arith.sitofp %85 : vector<64x8xi32> to vector<64x8xf32>
    %cst_32 = arith.constant dense<0.000000e+00> : vector<8x8xf32>
    %87 = tpu.matmul %86, %1, %cst_32 {dimension_numbers = #tpu.dot_dimension_numbers<[0], [0], [1], [1], [0, 1, 1, 1], [], []>} : vector<64x8xf32>, vector<64x8xf32>, vector<8x8xf32> -> vector<8x8xf32>
    %cst_33 = arith.constant dense<0.000000e+00> : vector<8x1xf32>
    %88 = tpu.matmul %86, %3, %cst_33 {dimension_numbers = #tpu.dot_dimension_numbers<[0], [0], [1], [1], [0, 1, 1, 1], [], []>} : vector<64x8xf32>, vector<64x1xf32>, vector<8x1xf32> -> vector<8x1xf32>
    %cst_34 = arith.constant 0.000000e+00 : f32
    %89 = vector.broadcast %cst_34 : f32 to vector<8x1xf32>
    %90 = arith.cmpf ogt, %88, %89 : vector<8x1xf32>
    %cst_35 = arith.constant 1.000000e+00 : f32
    %91 = vector.broadcast %cst_35 : f32 to vector<8x1xf32>
    %92 = arith.maximumf %88, %91 : vector<8x1xf32>
    %93 = vector.broadcast %92 : vector<8x1xf32> to vector<8x8xf32>
    %94 = arith.divf %87, %93 : vector<8x8xf32>
    %95 = vector.shape_cast %90 : vector<8x1xi1> to vector<8x1xi1>
    %96 = vector.broadcast %95 : vector<8x1xi1> to vector<8x8xi1>
    %97 = arith.select %96, %94, %67 : vector<8x8xi1>, vector<8x8xf32>
    %c3_i32 = arith.constant 3 : i32
    %cst_36 = arith.constant dense<0.000000e+00> : vector<64x8xf32>
    %98 = tpu.matmul %1, %97, %cst_36 {dimension_numbers = #tpu.dot_dimension_numbers<[1], [1], [0], [0], [0, 0, 1, 0], [], []>} : vector<64x8xf32>, vector<8x8xf32>, vector<64x8xf32> -> vector<64x8xf32>
    %99 = arith.mulf %97, %97 : vector<8x8xf32>
    %cst_37 = arith.constant dense<0.000000e+00> : vector<1x8xf32>
    %100 = tpu.matmul %4, %99, %cst_37 {dimension_numbers = #tpu.dot_dimension_numbers<[1], [1], [0], [0], [0, 0, 1, 0], [], []>} : vector<1x8xf32>, vector<8x8xf32>, vector<1x8xf32> -> vector<1x8xf32>
    %cst_38 = arith.constant 2.000000e+00 : f32
    %101 = vector.broadcast %cst_38 : f32 to vector<64x8xf32>
    %102 = arith.mulf %101, %98 : vector<64x8xf32>
    %103 = vector.broadcast %100 : vector<1x8xf32> to vector<64x8xf32>
    %104 = arith.subf %103, %102 : vector<64x8xf32>
    %cst_39 = arith.constant dense<0x7F800000> : vector<64xf32>
    %105 = vector.multi_reduction <minimumf>, %104, %cst_39 [1] : vector<64x8xf32> to vector<64xf32>
    %106 = vector.shape_cast %105 : vector<64xf32> to vector<64x1xf32>
    %107 = vector.broadcast %106 : vector<64x1xf32> to vector<64x8xf32>
    %108 = arith.cmpf ole, %104, %107 : vector<64x8xf32>
    %c8_i32_40 = arith.constant 8 : i32
    %109 = vector.broadcast %c8_i32_40 : i32 to vector<64x8xi32>
    %110 = arith.select %108, %2, %109 : vector<64x8xi1>, vector<64x8xi32>
    %cst_41 = arith.constant dense<2147483647> : vector<64xi32>
    %111 = vector.multi_reduction <minsi>, %110, %cst_41 [1] : vector<64x8xi32> to vector<64xi32>
    %112 = vector.shape_cast %111 : vector<64xi32> to vector<64x1xi32>
    %113 = vector.broadcast %112 : vector<64x1xi32> to vector<64x8xi32>
    %114 = arith.cmpi eq, %113, %2 : vector<64x8xi32>
    %115 = arith.extui %114 : vector<64x8xi1> to vector<64x8xi32>
    %116 = arith.sitofp %115 : vector<64x8xi32> to vector<64x8xf32>
    %cst_42 = arith.constant dense<0.000000e+00> : vector<8x8xf32>
    %117 = tpu.matmul %116, %1, %cst_42 {dimension_numbers = #tpu.dot_dimension_numbers<[0], [0], [1], [1], [0, 1, 1, 1], [], []>} : vector<64x8xf32>, vector<64x8xf32>, vector<8x8xf32> -> vector<8x8xf32>
    %cst_43 = arith.constant dense<0.000000e+00> : vector<8x1xf32>
    %118 = tpu.matmul %116, %3, %cst_43 {dimension_numbers = #tpu.dot_dimension_numbers<[0], [0], [1], [1], [0, 1, 1, 1], [], []>} : vector<64x8xf32>, vector<64x1xf32>, vector<8x1xf32> -> vector<8x1xf32>
    %cst_44 = arith.constant 0.000000e+00 : f32
    %119 = vector.broadcast %cst_44 : f32 to vector<8x1xf32>
    %120 = arith.cmpf ogt, %118, %119 : vector<8x1xf32>
    %cst_45 = arith.constant 1.000000e+00 : f32
    %121 = vector.broadcast %cst_45 : f32 to vector<8x1xf32>
    %122 = arith.maximumf %118, %121 : vector<8x1xf32>
    %123 = vector.broadcast %122 : vector<8x1xf32> to vector<8x8xf32>
    %124 = arith.divf %117, %123 : vector<8x8xf32>
    %125 = vector.shape_cast %120 : vector<8x1xi1> to vector<8x1xi1>
    %126 = vector.broadcast %125 : vector<8x1xi1> to vector<8x8xi1>
    %127 = arith.select %126, %124, %97 : vector<8x8xi1>, vector<8x8xf32>
    %c4_i32 = arith.constant 4 : i32
    %cst_46 = arith.constant dense<0.000000e+00> : vector<64x8xf32>
    %128 = tpu.matmul %1, %127, %cst_46 {dimension_numbers = #tpu.dot_dimension_numbers<[1], [1], [0], [0], [0, 0, 1, 0], [], []>} : vector<64x8xf32>, vector<8x8xf32>, vector<64x8xf32> -> vector<64x8xf32>
    %129 = arith.mulf %127, %127 : vector<8x8xf32>
    %cst_47 = arith.constant dense<0.000000e+00> : vector<1x8xf32>
    %130 = tpu.matmul %4, %129, %cst_47 {dimension_numbers = #tpu.dot_dimension_numbers<[1], [1], [0], [0], [0, 0, 1, 0], [], []>} : vector<1x8xf32>, vector<8x8xf32>, vector<1x8xf32> -> vector<1x8xf32>
    %cst_48 = arith.constant 2.000000e+00 : f32
    %131 = vector.broadcast %cst_48 : f32 to vector<64x8xf32>
    %132 = arith.mulf %131, %128 : vector<64x8xf32>
    %133 = vector.broadcast %130 : vector<1x8xf32> to vector<64x8xf32>
    %134 = arith.subf %133, %132 : vector<64x8xf32>
    %cst_49 = arith.constant dense<0x7F800000> : vector<64xf32>
    %135 = vector.multi_reduction <minimumf>, %134, %cst_49 [1] : vector<64x8xf32> to vector<64xf32>
    %136 = vector.shape_cast %135 : vector<64xf32> to vector<64x1xf32>
    %137 = vector.broadcast %136 : vector<64x1xf32> to vector<64x8xf32>
    %138 = arith.cmpf ole, %134, %137 : vector<64x8xf32>
    %c8_i32_50 = arith.constant 8 : i32
    %139 = vector.broadcast %c8_i32_50 : i32 to vector<64x8xi32>
    %140 = arith.select %138, %2, %139 : vector<64x8xi1>, vector<64x8xi32>
    %cst_51 = arith.constant dense<2147483647> : vector<64xi32>
    %141 = vector.multi_reduction <minsi>, %140, %cst_51 [1] : vector<64x8xi32> to vector<64xi32>
    %142 = vector.shape_cast %141 : vector<64xi32> to vector<64x1xi32>
    %143 = vector.broadcast %142 : vector<64x1xi32> to vector<64x8xi32>
    %144 = arith.cmpi eq, %143, %2 : vector<64x8xi32>
    %145 = arith.extui %144 : vector<64x8xi1> to vector<64x8xi32>
    %146 = arith.sitofp %145 : vector<64x8xi32> to vector<64x8xf32>
    %cst_52 = arith.constant dense<0.000000e+00> : vector<8x8xf32>
    %147 = tpu.matmul %146, %1, %cst_52 {dimension_numbers = #tpu.dot_dimension_numbers<[0], [0], [1], [1], [0, 1, 1, 1], [], []>} : vector<64x8xf32>, vector<64x8xf32>, vector<8x8xf32> -> vector<8x8xf32>
    %cst_53 = arith.constant dense<0.000000e+00> : vector<8x1xf32>
    %148 = tpu.matmul %146, %3, %cst_53 {dimension_numbers = #tpu.dot_dimension_numbers<[0], [0], [1], [1], [0, 1, 1, 1], [], []>} : vector<64x8xf32>, vector<64x1xf32>, vector<8x1xf32> -> vector<8x1xf32>
    %cst_54 = arith.constant 0.000000e+00 : f32
    %149 = vector.broadcast %cst_54 : f32 to vector<8x1xf32>
    %150 = arith.cmpf ogt, %148, %149 : vector<8x1xf32>
    %cst_55 = arith.constant 1.000000e+00 : f32
    %151 = vector.broadcast %cst_55 : f32 to vector<8x1xf32>
    %152 = arith.maximumf %148, %151 : vector<8x1xf32>
    %153 = vector.broadcast %152 : vector<8x1xf32> to vector<8x8xf32>
    %154 = arith.divf %147, %153 : vector<8x8xf32>
    %155 = vector.shape_cast %150 : vector<8x1xi1> to vector<8x1xi1>
    %156 = vector.broadcast %155 : vector<8x1xi1> to vector<8x8xi1>
    %157 = arith.select %156, %154, %127 : vector<8x8xi1>, vector<8x8xf32>
    %c5_i32 = arith.constant 5 : i32
    %cst_56 = arith.constant dense<0.000000e+00> : vector<64x8xf32>
    %158 = tpu.matmul %1, %157, %cst_56 {dimension_numbers = #tpu.dot_dimension_numbers<[1], [1], [0], [0], [0, 0, 1, 0], [], []>} : vector<64x8xf32>, vector<8x8xf32>, vector<64x8xf32> -> vector<64x8xf32>
    %159 = arith.mulf %157, %157 : vector<8x8xf32>
    %cst_57 = arith.constant dense<0.000000e+00> : vector<1x8xf32>
    %160 = tpu.matmul %4, %159, %cst_57 {dimension_numbers = #tpu.dot_dimension_numbers<[1], [1], [0], [0], [0, 0, 1, 0], [], []>} : vector<1x8xf32>, vector<8x8xf32>, vector<1x8xf32> -> vector<1x8xf32>
    %cst_58 = arith.constant 2.000000e+00 : f32
    %161 = vector.broadcast %cst_58 : f32 to vector<64x8xf32>
    %162 = arith.mulf %161, %158 : vector<64x8xf32>
    %163 = vector.broadcast %160 : vector<1x8xf32> to vector<64x8xf32>
    %164 = arith.subf %163, %162 : vector<64x8xf32>
    %cst_59 = arith.constant dense<0x7F800000> : vector<64xf32>
    %165 = vector.multi_reduction <minimumf>, %164, %cst_59 [1] : vector<64x8xf32> to vector<64xf32>
    %166 = vector.shape_cast %165 : vector<64xf32> to vector<64x1xf32>
    %167 = vector.broadcast %166 : vector<64x1xf32> to vector<64x8xf32>
    %168 = arith.cmpf ole, %164, %167 : vector<64x8xf32>
    %c8_i32_60 = arith.constant 8 : i32
    %169 = vector.broadcast %c8_i32_60 : i32 to vector<64x8xi32>
    %170 = arith.select %168, %2, %169 : vector<64x8xi1>, vector<64x8xi32>
    %cst_61 = arith.constant dense<2147483647> : vector<64xi32>
    %171 = vector.multi_reduction <minsi>, %170, %cst_61 [1] : vector<64x8xi32> to vector<64xi32>
    %172 = vector.shape_cast %171 : vector<64xi32> to vector<64x1xi32>
    %173 = vector.broadcast %172 : vector<64x1xi32> to vector<64x8xi32>
    %174 = arith.cmpi eq, %173, %2 : vector<64x8xi32>
    %175 = arith.extui %174 : vector<64x8xi1> to vector<64x8xi32>
    %176 = arith.sitofp %175 : vector<64x8xi32> to vector<64x8xf32>
    %cst_62 = arith.constant dense<0.000000e+00> : vector<8x8xf32>
    %177 = tpu.matmul %176, %1, %cst_62 {dimension_numbers = #tpu.dot_dimension_numbers<[0], [0], [1], [1], [0, 1, 1, 1], [], []>} : vector<64x8xf32>, vector<64x8xf32>, vector<8x8xf32> -> vector<8x8xf32>
    %cst_63 = arith.constant dense<0.000000e+00> : vector<8x1xf32>
    %178 = tpu.matmul %176, %3, %cst_63 {dimension_numbers = #tpu.dot_dimension_numbers<[0], [0], [1], [1], [0, 1, 1, 1], [], []>} : vector<64x8xf32>, vector<64x1xf32>, vector<8x1xf32> -> vector<8x1xf32>
    %cst_64 = arith.constant 0.000000e+00 : f32
    %179 = vector.broadcast %cst_64 : f32 to vector<8x1xf32>
    %180 = arith.cmpf ogt, %178, %179 : vector<8x1xf32>
    %cst_65 = arith.constant 1.000000e+00 : f32
    %181 = vector.broadcast %cst_65 : f32 to vector<8x1xf32>
    %182 = arith.maximumf %178, %181 : vector<8x1xf32>
    %183 = vector.broadcast %182 : vector<8x1xf32> to vector<8x8xf32>
    %184 = arith.divf %177, %183 : vector<8x8xf32>
    %185 = vector.shape_cast %180 : vector<8x1xi1> to vector<8x1xi1>
    %186 = vector.broadcast %185 : vector<8x1xi1> to vector<8x8xi1>
    %187 = arith.select %186, %184, %157 : vector<8x8xi1>, vector<8x8xf32>
    %c6_i32 = arith.constant 6 : i32
    %cst_66 = arith.constant dense<0.000000e+00> : vector<64x8xf32>
    %188 = tpu.matmul %1, %187, %cst_66 {dimension_numbers = #tpu.dot_dimension_numbers<[1], [1], [0], [0], [0, 0, 1, 0], [], []>} : vector<64x8xf32>, vector<8x8xf32>, vector<64x8xf32> -> vector<64x8xf32>
    %189 = arith.mulf %187, %187 : vector<8x8xf32>
    %cst_67 = arith.constant dense<0.000000e+00> : vector<1x8xf32>
    %190 = tpu.matmul %4, %189, %cst_67 {dimension_numbers = #tpu.dot_dimension_numbers<[1], [1], [0], [0], [0, 0, 1, 0], [], []>} : vector<1x8xf32>, vector<8x8xf32>, vector<1x8xf32> -> vector<1x8xf32>
    %cst_68 = arith.constant 2.000000e+00 : f32
    %191 = vector.broadcast %cst_68 : f32 to vector<64x8xf32>
    %192 = arith.mulf %191, %188 : vector<64x8xf32>
    %193 = vector.broadcast %190 : vector<1x8xf32> to vector<64x8xf32>
    %194 = arith.subf %193, %192 : vector<64x8xf32>
    %cst_69 = arith.constant dense<0x7F800000> : vector<64xf32>
    %195 = vector.multi_reduction <minimumf>, %194, %cst_69 [1] : vector<64x8xf32> to vector<64xf32>
    %196 = vector.shape_cast %195 : vector<64xf32> to vector<64x1xf32>
    %197 = vector.broadcast %196 : vector<64x1xf32> to vector<64x8xf32>
    %198 = arith.cmpf ole, %194, %197 : vector<64x8xf32>
    %c8_i32_70 = arith.constant 8 : i32
    %199 = vector.broadcast %c8_i32_70 : i32 to vector<64x8xi32>
    %200 = arith.select %198, %2, %199 : vector<64x8xi1>, vector<64x8xi32>
    %cst_71 = arith.constant dense<2147483647> : vector<64xi32>
    %201 = vector.multi_reduction <minsi>, %200, %cst_71 [1] : vector<64x8xi32> to vector<64xi32>
    %202 = vector.shape_cast %201 : vector<64xi32> to vector<64x1xi32>
    %203 = vector.broadcast %202 : vector<64x1xi32> to vector<64x8xi32>
    %204 = arith.cmpi eq, %203, %2 : vector<64x8xi32>
    %205 = arith.extui %204 : vector<64x8xi1> to vector<64x8xi32>
    %206 = arith.sitofp %205 : vector<64x8xi32> to vector<64x8xf32>
    %cst_72 = arith.constant dense<0.000000e+00> : vector<8x8xf32>
    %207 = tpu.matmul %206, %1, %cst_72 {dimension_numbers = #tpu.dot_dimension_numbers<[0], [0], [1], [1], [0, 1, 1, 1], [], []>} : vector<64x8xf32>, vector<64x8xf32>, vector<8x8xf32> -> vector<8x8xf32>
    %cst_73 = arith.constant dense<0.000000e+00> : vector<8x1xf32>
    %208 = tpu.matmul %206, %3, %cst_73 {dimension_numbers = #tpu.dot_dimension_numbers<[0], [0], [1], [1], [0, 1, 1, 1], [], []>} : vector<64x8xf32>, vector<64x1xf32>, vector<8x1xf32> -> vector<8x1xf32>
    %cst_74 = arith.constant 0.000000e+00 : f32
    %209 = vector.broadcast %cst_74 : f32 to vector<8x1xf32>
    %210 = arith.cmpf ogt, %208, %209 : vector<8x1xf32>
    %cst_75 = arith.constant 1.000000e+00 : f32
    %211 = vector.broadcast %cst_75 : f32 to vector<8x1xf32>
    %212 = arith.maximumf %208, %211 : vector<8x1xf32>
    %213 = vector.broadcast %212 : vector<8x1xf32> to vector<8x8xf32>
    %214 = arith.divf %207, %213 : vector<8x8xf32>
    %215 = vector.shape_cast %210 : vector<8x1xi1> to vector<8x1xi1>
    %216 = vector.broadcast %215 : vector<8x1xi1> to vector<8x8xi1>
    %217 = arith.select %216, %214, %187 : vector<8x8xi1>, vector<8x8xf32>
    %c7_i32 = arith.constant 7 : i32
    %cst_76 = arith.constant dense<0.000000e+00> : vector<64x8xf32>
    %218 = tpu.matmul %1, %217, %cst_76 {dimension_numbers = #tpu.dot_dimension_numbers<[1], [1], [0], [0], [0, 0, 1, 0], [], []>} : vector<64x8xf32>, vector<8x8xf32>, vector<64x8xf32> -> vector<64x8xf32>
    %219 = arith.mulf %217, %217 : vector<8x8xf32>
    %cst_77 = arith.constant dense<0.000000e+00> : vector<1x8xf32>
    %220 = tpu.matmul %4, %219, %cst_77 {dimension_numbers = #tpu.dot_dimension_numbers<[1], [1], [0], [0], [0, 0, 1, 0], [], []>} : vector<1x8xf32>, vector<8x8xf32>, vector<1x8xf32> -> vector<1x8xf32>
    %cst_78 = arith.constant 2.000000e+00 : f32
    %221 = vector.broadcast %cst_78 : f32 to vector<64x8xf32>
    %222 = arith.mulf %221, %218 : vector<64x8xf32>
    %223 = vector.broadcast %220 : vector<1x8xf32> to vector<64x8xf32>
    %224 = arith.subf %223, %222 : vector<64x8xf32>
    %cst_79 = arith.constant dense<0x7F800000> : vector<64xf32>
    %225 = vector.multi_reduction <minimumf>, %224, %cst_79 [1] : vector<64x8xf32> to vector<64xf32>
    %226 = vector.shape_cast %225 : vector<64xf32> to vector<64x1xf32>
    %227 = vector.broadcast %226 : vector<64x1xf32> to vector<64x8xf32>
    %228 = arith.cmpf ole, %224, %227 : vector<64x8xf32>
    %c8_i32_80 = arith.constant 8 : i32
    %229 = vector.broadcast %c8_i32_80 : i32 to vector<64x8xi32>
    %230 = arith.select %228, %2, %229 : vector<64x8xi1>, vector<64x8xi32>
    %cst_81 = arith.constant dense<2147483647> : vector<64xi32>
    %231 = vector.multi_reduction <minsi>, %230, %cst_81 [1] : vector<64x8xi32> to vector<64xi32>
    %232 = vector.shape_cast %231 : vector<64xi32> to vector<64x1xi32>
    %233 = vector.broadcast %232 : vector<64x1xi32> to vector<64x8xi32>
    %234 = arith.cmpi eq, %233, %2 : vector<64x8xi32>
    %235 = arith.extui %234 : vector<64x8xi1> to vector<64x8xi32>
    %236 = arith.sitofp %235 : vector<64x8xi32> to vector<64x8xf32>
    %cst_82 = arith.constant dense<0.000000e+00> : vector<8x8xf32>
    %237 = tpu.matmul %236, %1, %cst_82 {dimension_numbers = #tpu.dot_dimension_numbers<[0], [0], [1], [1], [0, 1, 1, 1], [], []>} : vector<64x8xf32>, vector<64x8xf32>, vector<8x8xf32> -> vector<8x8xf32>
    %cst_83 = arith.constant dense<0.000000e+00> : vector<8x1xf32>
    %238 = tpu.matmul %236, %3, %cst_83 {dimension_numbers = #tpu.dot_dimension_numbers<[0], [0], [1], [1], [0, 1, 1, 1], [], []>} : vector<64x8xf32>, vector<64x1xf32>, vector<8x1xf32> -> vector<8x1xf32>
    %cst_84 = arith.constant 0.000000e+00 : f32
    %239 = vector.broadcast %cst_84 : f32 to vector<8x1xf32>
    %240 = arith.cmpf ogt, %238, %239 : vector<8x1xf32>
    %cst_85 = arith.constant 1.000000e+00 : f32
    %241 = vector.broadcast %cst_85 : f32 to vector<8x1xf32>
    %242 = arith.maximumf %238, %241 : vector<8x1xf32>
    %243 = vector.broadcast %242 : vector<8x1xf32> to vector<8x8xf32>
    %244 = arith.divf %237, %243 : vector<8x8xf32>
    %245 = vector.shape_cast %240 : vector<8x1xi1> to vector<8x1xi1>
    %246 = vector.broadcast %245 : vector<8x1xi1> to vector<8x8xi1>
    %247 = arith.select %246, %244, %217 : vector<8x8xi1>, vector<8x8xf32>
    %c8_i32_86 = arith.constant 8 : i32
    %cst_87 = arith.constant dense<0.000000e+00> : vector<64x8xf32>
    %248 = tpu.matmul %1, %247, %cst_87 {dimension_numbers = #tpu.dot_dimension_numbers<[1], [1], [0], [0], [0, 0, 1, 0], [], []>} : vector<64x8xf32>, vector<8x8xf32>, vector<64x8xf32> -> vector<64x8xf32>
    %249 = arith.mulf %247, %247 : vector<8x8xf32>
    %cst_88 = arith.constant dense<0.000000e+00> : vector<1x8xf32>
    %250 = tpu.matmul %4, %249, %cst_88 {dimension_numbers = #tpu.dot_dimension_numbers<[1], [1], [0], [0], [0, 0, 1, 0], [], []>} : vector<1x8xf32>, vector<8x8xf32>, vector<1x8xf32> -> vector<1x8xf32>
    %cst_89 = arith.constant 2.000000e+00 : f32
    %251 = vector.broadcast %cst_89 : f32 to vector<64x8xf32>
    %252 = arith.mulf %251, %248 : vector<64x8xf32>
    %253 = vector.broadcast %250 : vector<1x8xf32> to vector<64x8xf32>
    %254 = arith.subf %253, %252 : vector<64x8xf32>
    %cst_90 = arith.constant dense<0x7F800000> : vector<64xf32>
    %255 = vector.multi_reduction <minimumf>, %254, %cst_90 [1] : vector<64x8xf32> to vector<64xf32>
    %256 = vector.shape_cast %255 : vector<64xf32> to vector<64x1xf32>
    %257 = vector.broadcast %256 : vector<64x1xf32> to vector<64x8xf32>
    %258 = arith.cmpf ole, %254, %257 : vector<64x8xf32>
    %c8_i32_91 = arith.constant 8 : i32
    %259 = vector.broadcast %c8_i32_91 : i32 to vector<64x8xi32>
    %260 = arith.select %258, %2, %259 : vector<64x8xi1>, vector<64x8xi32>
    %cst_92 = arith.constant dense<2147483647> : vector<64xi32>
    %261 = vector.multi_reduction <minsi>, %260, %cst_92 [1] : vector<64x8xi32> to vector<64xi32>
    %262 = vector.shape_cast %261 : vector<64xi32> to vector<64x1xi32>
    %263 = vector.broadcast %262 : vector<64x1xi32> to vector<64x8xi32>
    %264 = arith.cmpi eq, %263, %2 : vector<64x8xi32>
    %265 = arith.extui %264 : vector<64x8xi1> to vector<64x8xi32>
    %266 = arith.sitofp %265 : vector<64x8xi32> to vector<64x8xf32>
    %cst_93 = arith.constant dense<0.000000e+00> : vector<8x8xf32>
    %267 = tpu.matmul %266, %1, %cst_93 {dimension_numbers = #tpu.dot_dimension_numbers<[0], [0], [1], [1], [0, 1, 1, 1], [], []>} : vector<64x8xf32>, vector<64x8xf32>, vector<8x8xf32> -> vector<8x8xf32>
    %cst_94 = arith.constant dense<0.000000e+00> : vector<8x1xf32>
    %268 = tpu.matmul %266, %3, %cst_94 {dimension_numbers = #tpu.dot_dimension_numbers<[0], [0], [1], [1], [0, 1, 1, 1], [], []>} : vector<64x8xf32>, vector<64x1xf32>, vector<8x1xf32> -> vector<8x1xf32>
    %cst_95 = arith.constant 0.000000e+00 : f32
    %269 = vector.broadcast %cst_95 : f32 to vector<8x1xf32>
    %270 = arith.cmpf ogt, %268, %269 : vector<8x1xf32>
    %cst_96 = arith.constant 1.000000e+00 : f32
    %271 = vector.broadcast %cst_96 : f32 to vector<8x1xf32>
    %272 = arith.maximumf %268, %271 : vector<8x1xf32>
    %273 = vector.broadcast %272 : vector<8x1xf32> to vector<8x8xf32>
    %274 = arith.divf %267, %273 : vector<8x8xf32>
    %275 = vector.shape_cast %270 : vector<8x1xi1> to vector<8x1xi1>
    %276 = vector.broadcast %275 : vector<8x1xi1> to vector<8x8xi1>
    %277 = arith.select %276, %274, %247 : vector<8x8xi1>, vector<8x8xf32>
    %c9_i32 = arith.constant 9 : i32
    %cst_97 = arith.constant dense<0.000000e+00> : vector<64x8xf32>
    %278 = tpu.matmul %1, %277, %cst_97 {dimension_numbers = #tpu.dot_dimension_numbers<[1], [1], [0], [0], [0, 0, 1, 0], [], []>} : vector<64x8xf32>, vector<8x8xf32>, vector<64x8xf32> -> vector<64x8xf32>
    %279 = arith.mulf %277, %277 : vector<8x8xf32>
    %cst_98 = arith.constant dense<0.000000e+00> : vector<1x8xf32>
    %280 = tpu.matmul %4, %279, %cst_98 {dimension_numbers = #tpu.dot_dimension_numbers<[1], [1], [0], [0], [0, 0, 1, 0], [], []>} : vector<1x8xf32>, vector<8x8xf32>, vector<1x8xf32> -> vector<1x8xf32>
    %cst_99 = arith.constant 2.000000e+00 : f32
    %281 = vector.broadcast %cst_99 : f32 to vector<64x8xf32>
    %282 = arith.mulf %281, %278 : vector<64x8xf32>
    %283 = vector.broadcast %280 : vector<1x8xf32> to vector<64x8xf32>
    %284 = arith.subf %283, %282 : vector<64x8xf32>
    %cst_100 = arith.constant dense<0x7F800000> : vector<64xf32>
    %285 = vector.multi_reduction <minimumf>, %284, %cst_100 [1] : vector<64x8xf32> to vector<64xf32>
    %286 = vector.shape_cast %285 : vector<64xf32> to vector<64x1xf32>
    %287 = vector.broadcast %286 : vector<64x1xf32> to vector<64x8xf32>
    %288 = arith.cmpf ole, %284, %287 : vector<64x8xf32>
    %c8_i32_101 = arith.constant 8 : i32
    %289 = vector.broadcast %c8_i32_101 : i32 to vector<64x8xi32>
    %290 = arith.select %288, %2, %289 : vector<64x8xi1>, vector<64x8xi32>
    %cst_102 = arith.constant dense<2147483647> : vector<64xi32>
    %291 = vector.multi_reduction <minsi>, %290, %cst_102 [1] : vector<64x8xi32> to vector<64xi32>
    %292 = vector.shape_cast %291 : vector<64xi32> to vector<64x1xi32>
    %293 = vector.broadcast %292 : vector<64x1xi32> to vector<64x8xi32>
    %294 = arith.cmpi eq, %293, %2 : vector<64x8xi32>
    %295 = arith.extui %294 : vector<64x8xi1> to vector<64x8xi32>
    %296 = arith.sitofp %295 : vector<64x8xi32> to vector<64x8xf32>
    %cst_103 = arith.constant dense<0.000000e+00> : vector<8x8xf32>
    %297 = tpu.matmul %296, %1, %cst_103 {dimension_numbers = #tpu.dot_dimension_numbers<[0], [0], [1], [1], [0, 1, 1, 1], [], []>} : vector<64x8xf32>, vector<64x8xf32>, vector<8x8xf32> -> vector<8x8xf32>
    %cst_104 = arith.constant dense<0.000000e+00> : vector<8x1xf32>
    %298 = tpu.matmul %296, %3, %cst_104 {dimension_numbers = #tpu.dot_dimension_numbers<[0], [0], [1], [1], [0, 1, 1, 1], [], []>} : vector<64x8xf32>, vector<64x1xf32>, vector<8x1xf32> -> vector<8x1xf32>
    %cst_105 = arith.constant 0.000000e+00 : f32
    %299 = vector.broadcast %cst_105 : f32 to vector<8x1xf32>
    %300 = arith.cmpf ogt, %298, %299 : vector<8x1xf32>
    %cst_106 = arith.constant 1.000000e+00 : f32
    %301 = vector.broadcast %cst_106 : f32 to vector<8x1xf32>
    %302 = arith.maximumf %298, %301 : vector<8x1xf32>
    %303 = vector.broadcast %302 : vector<8x1xf32> to vector<8x8xf32>
    %304 = arith.divf %297, %303 : vector<8x8xf32>
    %305 = vector.shape_cast %300 : vector<8x1xi1> to vector<8x1xi1>
    %306 = vector.broadcast %305 : vector<8x1xi1> to vector<8x8xi1>
    %307 = arith.select %306, %304, %277 : vector<8x8xi1>, vector<8x8xf32>
    %c0_107 = arith.constant 0 : index
    %c0_108 = arith.constant 0 : index
    %c0_109 = arith.constant 0 : index
    %308 = vector.load %arg3[%c0_107, %c0_108, %c0_109] : memref<1x8x8xf32, #tpu.memory_space<vmem>>, vector<1x8x8xf32>
    %309 = vector.shape_cast %308 : vector<1x8x8xf32> to vector<8x8xf32>
    %310 = vector.shape_cast %307 : vector<8x8xf32> to vector<1x8x8xf32>
    tpu.vector_store %arg3[%c0_107, %c0_108, %c0_109], %310 {strides = array<i32>} : memref<1x8x8xf32, #tpu.memory_space<vmem>>, vector<1x8x8xf32>,
    %c0_110 = arith.constant 0 : index
    %c0_111 = arith.constant 0 : index
    %c0_112 = arith.constant 0 : index
    %311 = vector.load %arg4[%c0_110, %c0_111, %c0_112] : memref<1x64x1xi32, #tpu.memory_space<vmem>>, vector<1x64x1xi32>
    %312 = vector.shape_cast %311 : vector<1x64x1xi32> to vector<64x1xi32>
    %313 = vector.shape_cast %292 : vector<64x1xi32> to vector<1x64x1xi32>
    tpu.vector_store %arg4[%c0_110, %c0_111, %c0_112], %313 {strides = array<i32>} : memref<1x64x1xi32, #tpu.memory_space<vmem>>, vector<1x64x1xi32>,
    return
  }
  func.func @transform_0(%arg0: i32) -> (i32, i32, i32) {
    %c0_i32 = arith.constant 0 : i32
    %c0_i32_0 = arith.constant 0 : i32
    %c0_i32_1 = arith.constant 0 : i32
    return %arg0, %c0_i32, %c0_i32_0 : i32, i32, i32
  }
  func.func @transform_1(%arg0: i32) -> (i32, i32, i32) {
    %c0_i32 = arith.constant 0 : i32
    %c0_i32_0 = arith.constant 0 : i32
    %c0_i32_1 = arith.constant 0 : i32
    return %arg0, %c0_i32, %c0_i32_0 : i32, i32, i32
  }
  func.func @transform_2(%arg0: i32) -> (i32, i32, i32) {
    %c0_i32 = arith.constant 0 : i32
    %c0_i32_0 = arith.constant 0 : i32
    %c0_i32_1 = arith.constant 0 : i32
    return %arg0, %c0_i32, %c0_i32_0 : i32, i32, i32
  }
  func.func @transform_3(%arg0: i32) -> (i32, i32, i32) {
    %c0_i32 = arith.constant 0 : i32
    %c0_i32_0 = arith.constant 0 : i32
    %c0_i32_1 = arith.constant 0 : i32
    return %arg0, %c0_i32, %c0_i32_0 : i32, i32, i32
  }
}

</mosaic_0001>

<llo_original>
// kernel: tpu_custom_call.1
$region0: #{tpu_custom_call.1}
  #allocation0 [shape = 'u32[]', space=smem, size = 0x4, offset = 0x4, fixed_abs, tag = 'smem constant byte address 0x4 - core index']
  #allocation1 [shape = 'u32[72,128]{1,0:T(1,128)}', space=vmem, size = 0x9000, scoped, tag = 'internal scratch']
  %s0 = inlined_call_operand.vmem [shape: f32[2,64,8], index: 0, kind: input, shape index: {}]
  %s1 = inlined_call_operand.vmem [shape: f32[2,8,8], index: 1, kind: input, shape index: {}]
  %s2 = inlined_call_operand.hbm [shape: f32[2,8,8], index: 2, kind: output, shape index: {0}]
  %s3 = inlined_call_operand.vmem [shape: s32[2,64,1], index: 3, kind: output, shape index: {1}]
  %4 = xla_tuple %s2, %s3
  %s5 = sld [smem:[#allocation0]]
  $region49: #{tpu_custom_call.1} parent=0
    _
  %s7 = ssub.s32 1, %s5
  %s8 = scalar_select 0, %s7, %s5
  $region1: #{tpu_custom_call.1} parent=0
    #allocation2 [shape = 'u8[8192]{0}', space=vmem, size = 0x2000, scoped, tag = 'output window, operand 0']
    #allocation3 [shape = 's32[2]{0}', space=sflag, size = 0x8, scoped, tag = 'scoped memory for tpu_custom_call.1']
    %9 = vsyncpa [#allocation3], 0
    %s10 = scalar_lea.sflag [#allocation3], 1
    %11 = vsyncpa %s10, 0
    loop: start=0, step=1, limit=4
    $region2: #{tpu_custom_call.1} parent=1 // loop_pre_header
      _
    $region3: #{tpu_custom_call.1} parent=1 // loop_header
      %s13 = sphi 0, %s17
      %p14 = scmp.ge.s32.totalorder %s13, 4
      %s23 = sphi 0, %s25
      %s26 = sphi 0, %s23
      %s27 = sphi 0, %s26
      %s43 = sphi 0, %s27
      %s49 = sphi 0, %s51
      %s52 = sphi 0, %s49
      %s53 = sphi 0, %s52
      %s69 = sphi 0, %s53
      %s75 = sphi 0, %s77
      %s78 = sphi 0, %s75
      %s79 = sphi 0, %s78
      %s95 = sphi 0, %s79
      %s101 = sphi 0, %s103
      %s104 = sphi 0, %s101
      %s105 = sphi 0, %s104
      %s121 = sphi 0, %s105
    $region4: #{tpu_custom_call.1} parent=1 // loop_header_branch
      %16 = sbr.rel (%p14) target = $region8
    $region5: #{tpu_custom_call.1} parent=1 // loop_body
      %s18 = ssub.s32 %s13, 1
      %s19 = ssub.s32 %s13, 2
      %s20 = sadd.s32 %s13, 1
      %s21 = ssub.s32 %s13, %s20
      %p22 = scmp.eq.s32.totalorder %s21, 0
      %s24 = sadd.s32 %s23, 1
      %s25 = scalar_select %p22, %s23, %s24
      %p28 = pneg %p22
      %p29 = scmp.eq.s32.totalorder %s13, 1
      %p30 = por %p28, %p29
      %p31 = scmp.ne.s32.totalorder %s23, %s26
      %p32 = scmp.eq.s32.totalorder %s13, 0
      %p33 = por %p31, %p32
      %p34 = scmp.ne.s32.totalorder %s23, %s26
      %p35 = scmp.eq.s32.totalorder %s18, 1
      %p36 = por %p34, %p35
      %p37 = scmp.ne.s32.totalorder %s26, %s27
      %p38 = scmp.eq.s32.totalorder %s18, 0
      %p39 = por %p37, %p38
      %p40 = scmp.ne.s32.totalorder %s26, %s27
      %p41 = scmp.eq.s32.totalorder %s19, 1
      %p42 = por %p40, %p41
      %p44 = scmp.ne.s32.totalorder %s27, %s43
      %p45 = scmp.eq.s32.totalorder %s19, 0
      %p46 = por %p44, %p45
      %s47 = ssub.s32 %s13, %s20
      %p48 = scmp.eq.s32.totalorder %s47, 0
      %s50 = sadd.s32 %s49, 1
      %s51 = scalar_select %p48, %s49, %s50
      %p54 = pneg %p48
      %p55 = scmp.eq.s32.totalorder %s13, 1
      %p56 = por %p54, %p55
      %p57 = scmp.ne.s32.totalorder %s49, %s52
      %p58 = scmp.eq.s32.totalorder %s13, 0
      %p59 = por %p57, %p58
      %p60 = scmp.ne.s32.totalorder %s49, %s52
      %p61 = scmp.eq.s32.totalorder %s18, 1
      %p62 = por %p60, %p61
      %p63 = scmp.ne.s32.totalorder %s52, %s53
      %p64 = scmp.eq.s32.totalorder %s18, 0
      %p65 = por %p63, %p64
      %p66 = scmp.ne.s32.totalorder %s52, %s53
      %p67 = scmp.eq.s32.totalorder %s19, 1
      %p68 = por %p66, %p67
      %p70 = scmp.ne.s32.totalorder %s53, %s69
      %p71 = scmp.eq.s32.totalorder %s19, 0
      %p72 = por %p70, %p71
      %s73 = ssub.s32 %s13, %s20
      %p74 = scmp.eq.s32.totalorder %s73, 0
      %s76 = sadd.s32 %s75, 1
      %s77 = scalar_select %p74, %s75, %s76
      %p80 = pneg %p74
      %p81 = scmp.eq.s32.totalorder %s13, 1
      %p82 = por %p80, %p81
      %p83 = scmp.ne.s32.totalorder %s75, %s78
      %p84 = scmp.eq.s32.totalorder %s13, 0
      %p85 = por %p83, %p84
      %p86 = scmp.ne.s32.totalorder %s75, %s78
      %p87 = scmp.eq.s32.totalorder %s18, 1
      %p88 = por %p86, %p87
      %p89 = scmp.ne.s32.totalorder %s78, %s79
      %p90 = scmp.eq.s32.totalorder %s18, 0
      %p91 = por %p89, %p90
      %p92 = scmp.ne.s32.totalorder %s78, %s79
      %p93 = scmp.eq.s32.totalorder %s19, 1
      %p94 = por %p92, %p93
      %p96 = scmp.ne.s32.totalorder %s79, %s95
      %p97 = scmp.eq.s32.totalorder %s19, 0
      %p98 = por %p96, %p97
      %s99 = ssub.s32 %s13, %s20
      %p100 = scmp.eq.s32.totalorder %s99, 0
      %s102 = sadd.s32 %s101, 1
      %s103 = scalar_select %p100, %s101, %s102
      %p106 = pneg %p100
      %p107 = scmp.eq.s32.totalorder %s13, 1
      %p108 = por %p106, %p107
      %p109 = scmp.ne.s32.totalorder %s101, %s104
      %p110 = scmp.eq.s32.totalorder %s13, 0
      %p111 = por %p109, %p110
      %p112 = scmp.ne.s32.totalorder %s101, %s104
      %p113 = scmp.eq.s32.totalorder %s18, 1
      %p114 = por %p112, %p113
      %p115 = scmp.ne.s32.totalorder %s104, %s105
      %p116 = scmp.eq.s32.totalorder %s18, 0
      %p117 = por %p115, %p116
      %p118 = scmp.ne.s32.totalorder %s104, %s105
      %p119 = scmp.eq.s32.totalorder %s19, 1
      %p120 = por %p118, %p119
      %p122 = scmp.ne.s32.totalorder %s105, %s121
      %p123 = scmp.eq.s32.totalorder %s19, 0
      %p124 = por %p122, %p123
      %p125 = scmp.le.s32.totalorder 1, %s13
      %p126 = scmp.lt.s32.totalorder %s13, 3
      %p127 = pnand %p125, %p126
      %p128 = pneg %p127
      // Predicated region
      $region9: #{tpu_custom_call.1} parent=5 // pred_check
        _
      $region10: #{tpu_custom_call.1} parent=5 // pred_check_branch
        %130 = sbr.rel (%p127) target = $region12
      $region11: #{tpu_custom_call.1} parent=5 // pred_region
        %s131 = ssub.s32 %s13, 1
      $region12: #{tpu_custom_call.1} parent=5 // pred_fallthru
        _
      %p132 = scmp.lt.s32.totalorder %s13, 2
      // Predicated region
      $region13: #{tpu_custom_call.1} parent=5 // pred_check
        %p133 = pneg %p132
      $region14: #{tpu_custom_call.1} parent=5 // pred_check_branch
        %135 = sbr.rel (%p133) target = $region16
      $region15: #{tpu_custom_call.1} parent=5 // pred_region
        // Predicated region
        $region17: #{tpu_custom_call.1} parent=15 // pred_check
          %p136 = pneg %p33
        $region18: #{tpu_custom_call.1} parent=15 // pred_check_branch
          %138 = sbr.rel (%p136) target = $region20
        $region19: #{tpu_custom_call.1} parent=15 // pred_region
          %p139 = scmp.lt.s32.totalorder %s13, 1
          %s140 = scalar_select %p139, %s13, 1
          %s141 = smul.addr %s140, 8
          %s142 = smul.addr %s141, 8
          %s143 = scalar_lea.vmem %s0, %s142
        $region20: #{tpu_custom_call.1} parent=15 // pred_fallthru
          _
        // Predicated region
        $region21: #{tpu_custom_call.1} parent=15 // pred_check
          %p144 = pneg %p59
        $region22: #{tpu_custom_call.1} parent=15 // pred_check_branch
          %146 = sbr.rel (%p144) target = $region24
        $region23: #{tpu_custom_call.1} parent=15 // pred_region
          %p147 = scmp.lt.s32.totalorder %s13, 1
          %s148 = scalar_select %p147, %s13, 1
          %s149 = smul.addr %s148, 8
          %s150 = scalar_lea.vmem %s1, %s149
        $region24: #{tpu_custom_call.1} parent=15 // pred_fallthru
          _
      $region16: #{tpu_custom_call.1} parent=5 // pred_fallthru
        _
      %p151 = scmp.le.s32.totalorder 1, %s13
      %p152 = scmp.lt.s32.totalorder %s13, 3
      %p153 = pnand %p151, %p152
      %p154 = pneg %p153
      // Predicated region
      $region25: #{tpu_custom_call.1} parent=5 // pred_check
        _
      $region26: #{tpu_custom_call.1} parent=5 // pred_check_branch
        %156 = sbr.rel (%p153) target = $region28
      $region27: #{tpu_custom_call.1} parent=5 // pred_region
        %s157 = ssub.s32 %s13, 1
        %p158 = scmp.lt.s32.totalorder %s18, 1
        %s159 = scalar_select %p158, %s18, 1
        %s160 = smul.addr %s159, 8
        %s161 = smul.addr %s160, 8
        %s162 = scalar_lea.vmem %s0, %s161
        %p163 = pneg %p39
        %p164 = pneg %p36
        %p165 = scmp.lt.s32.totalorder %s18, 1
        %s166 = scalar_select %p165, %s18, 1
        %s167 = smul.addr %s166, 8
        %s168 = scalar_lea.vmem %s1, %s167
        %p169 = pneg %p65
        %p170 = pneg %p62
        %p171 = pneg %p91
        %p172 = pneg %p88
        %s173 = sand.u32 %s78, 1
        %s174 = scalar_lea.sflag [#allocation3], %s173
        %s175 = sand.u32 %s78, 1
        %s176 = smul.addr %s175, 8
        %s177 = scalar_lea.vmem [#allocation2], %s176
        %p178 = pneg %p117
        %p179 = pneg %p114
        %p180 = scmp.lt.s32.totalorder %s18, 1
        %s181 = scalar_select %p180, %s18, 1
        %s182 = smul.addr %s181, 8
        %s183 = smul.addr %s182, 8
        %s184 = scalar_lea.vmem %s3, %s183
        %p185 = scmp.lt.s32.totalorder %s18, 1
        %s186 = scalar_select %p185, %s18, 1
        %s187 = smul.addr %s186, 8
        %s188 = smul.addr %s187, 8
        %s189 = scalar_lea.vmem %s0, %s188
        %p190 = scmp.lt.s32.totalorder %s18, 1
        %s191 = scalar_select %p190, %s18, 1
        %s192 = smul.addr %s191, 8
        %s193 = scalar_lea.vmem %s1, %s192
        %p194 = scmp.lt.s32.totalorder %s18, 1
        %s195 = scalar_select %p194, %s18, 1
        %s196 = smul.addr %s195, 8
        %s197 = smul.addr %s196, 8
        %s198 = scalar_lea.vmem %s3, %s197
        %v199 = vld [vmem:[%s189] sm:$0xff]
        %v200 = vld [vmem:[%s189 + $0x8] sm:$0xff]
        %v201 = vld [vmem:[%s189 + $0x10] sm:$0xff]
        %v202 = vld [vmem:[%s189 + $0x18] sm:$0xff]
        %v203 = vld [vmem:[%s189 + $0x20] sm:$0xff]
        %v204 = vld [vmem:[%s189 + $0x28] sm:$0xff]
        %v205 = vld [vmem:[%s189 + $0x30] sm:$0xff]
        %v206 = vld [vmem:[%s189 + $0x38] sm:$0xff]
        %v207 = vlaneseq
        %v208 = vand.u32 %v207, 127
        %v209 = vld [vmem:[%s193] sm:$0xff]
        %vm210 = vcmask 64512
        %v212 = vsel %vm210, %v199, 0
        %v215 = vsel %vm210, %v200, 0
        %v218 = vsel %vm210, %v201, 0
        %v221 = vsel %vm210, %v202, 0
        %v224 = vsel %vm210, %v203, 0
        %v227 = vsel %vm210, %v204, 0
        %v230 = vsel %vm210, %v205, 0
        %v233 = vsel %vm210, %v206, 0
        %v236 = vsel %vm210, %v209, 0
        %238 = vmatpush.xpose.msra.mxu0 0.0
        %239 = vmatpush.xpose.msra.mxu0 0.0
        %240 = vmatpush.xpose.msra.mxu0 0.0
        %241 = vmatpush.xpose.msra.mxu0 0.0
        %242 = vmatpush.xpose.msra.mxu0 0.0
        %243 = vmatpush.xpose.msra.mxu0 0.0
        %244 = vmatpush.xpose.msra.mxu0 0.0
        %245 = vmatpush.xpose.msra.mxu0 0.0
        %246 = vmatpush.xpose.msra.mxu0 0.0
        %247 = vmatpush.xpose.msra.mxu0 0.0
        %248 = vmatpush.xpose.msra.mxu0 0.0
        %249 = vmatpush.xpose.msra.mxu0 0.0
        %250 = vmatpush.xpose.msra.mxu0 0.0
        %251 = vmatpush.xpose.msra.mxu0 0.0
        %252 = vmatpush.xpose.msra.mxu0 0.0
        %253 = vmatpush.xpose.msra.mxu0 %v236
        %254 = vmatmul.f32.gmra.mxu0 %v212
        %v255 = vpop.f32.mrf.mxu0
        %v256 = vadd.f32 0.0, %v255
        %257 = vmatmul.f32.gmra.mxu0 %v215
        %v258 = vpop.f32.mrf.mxu0
        %v259 = vadd.f32 0.0, %v258
        %260 = vmatmul.f32.gmra.mxu0 %v218
        %v261 = vpop.f32.mrf.mxu0
        %v262 = vadd.f32 0.0, %v261
        %263 = vmatmul.f32.gmra.mxu0 %v221
        %v264 = vpop.f32.mrf.mxu0
        %v265 = vadd.f32 0.0, %v264
        %266 = vmatmul.f32.gmra.mxu0 %v224
        %v267 = vpop.f32.mrf.mxu0
        %v268 = vadd.f32 0.0, %v267
        %269 = vmatmul.f32.gmra.mxu0 %v227
        %v270 = vpop.f32.mrf.mxu0
        %v271 = vadd.f32 0.0, %v270
        %272 = vmatmul.f32.gmra.mxu0 %v230
        %v273 = vpop.f32.mrf.mxu0
        %v274 = vadd.f32 0.0, %v273
        %275 = vmatmul.f32.gmra.mxu0 %v233
        %v276 = vpop.f32.mrf.mxu0
        %v277 = vadd.f32 0.0, %v276
        %278 = vdwg.mxu0
        %v279 = vmul.f32 %v209, %v209
        %v281 = vsel %vm210, 1.0, 0
        %v284 = vsel %vm210, %v279, 0
        %286 = vmatpush.xpose.msra.mxu0 0.0
        %287 = vmatpush.xpose.msra.mxu0 0.0
        %288 = vmatpush.xpose.msra.mxu0 0.0
        %289 = vmatpush.xpose.msra.mxu0 0.0
        %290 = vmatpush.xpose.msra.mxu0 0.0
        %291 = vmatpush.xpose.msra.mxu0 0.0
        %292 = vmatpush.xpose.msra.mxu0 0.0
        %293 = vmatpush.xpose.msra.mxu0 0.0
        %294 = vmatpush.xpose.msra.mxu0 0.0
        %295 = vmatpush.xpose.msra.mxu0 0.0
        %296 = vmatpush.xpose.msra.mxu0 0.0
        %297 = vmatpush.xpose.msra.mxu0 0.0
        %298 = vmatpush.xpose.msra.mxu0 0.0
        %299 = vmatpush.xpose.msra.mxu0 0.0
        %300 = vmatpush.xpose.msra.mxu0 0.0
        %301 = vmatpush.xpose.msra.mxu0 %v284
        %302 = vmatmul.f32.gmra.mxu0 %v281
        %v303 = vpop.f32.mrf.mxu0
        %v304 = vadd.f32 0.0, %v303
        %305 = vdwg.mxu0
        %v306 = vmul.f32 %v256, 2.0
        %v307 = vmul.f32 %v259, 2.0
        %v308 = vmul.f32 %v262, 2.0
        %v309 = vmul.f32 %v265, 2.0
        %v310 = vmul.f32 %v268, 2.0
        %v311 = vmul.f32 %v271, 2.0
        %v312 = vmul.f32 %v274, 2.0
        %v313 = vmul.f32 %v277, 2.0
        %v314 = vperm.slane %v304, 0
        %v315 = vsub.f32 %v314, %v306
        %v316 = vsub.f32 %v314, %v307
        %v317 = vsub.f32 %v314, %v308
        %v318 = vsub.f32 %v314, %v309
        %v319 = vsub.f32 %v314, %v310
        %v320 = vsub.f32 %v314, %v311
        %v321 = vsub.f32 %v314, %v312
        %v322 = vsub.f32 %v314, %v313
        %v323 = vsel %vm210, %v315, inf
        %324 = vmin.xlane.f32.xlu0 %v323
        %v325 = vpop.xlane.xlu0 %324
        %v326 = vsel %vm210, %v316, inf
        %327 = vmin.xlane.f32.xlu0 %v326
        %v328 = vpop.xlane.xlu0 %327
        %v329 = vsel %vm210, %v317, inf
        %330 = vmin.xlane.f32.xlu0 %v329
        %v331 = vpop.xlane.xlu0 %330
        %v332 = vsel %vm210, %v318, inf
        %333 = vmin.xlane.f32.xlu0 %v332
        %v334 = vpop.xlane.xlu0 %333
        %v335 = vsel %vm210, %v319, inf
        %336 = vmin.xlane.f32.xlu0 %v335
        %v337 = vpop.xlane.xlu0 %336
        %v338 = vsel %vm210, %v320, inf
        %339 = vmin.xlane.f32.xlu0 %v338
        %v340 = vpop.xlane.xlu0 %339
        %v341 = vsel %vm210, %v321, inf
        %342 = vmin.xlane.f32.xlu0 %v341
        %v343 = vpop.xlane.xlu0 %342
        %v344 = vsel %vm210, %v322, inf
        %345 = vmin.xlane.f32.xlu0 %v344
        %v346 = vpop.xlane.xlu0 %345
        %vm347 = vcmp.le.f32.partialorder %v315, %v325
        %vm348 = vcmp.le.f32.partialorder %v316, %v328
        %vm349 = vcmp.le.f32.partialorder %v317, %v331
        %vm350 = vcmp.le.f32.partialorder %v318, %v334
        %vm351 = vcmp.le.f32.partialorder %v319, %v337
        %vm352 = vcmp.le.f32.partialorder %v320, %v340
        %vm353 = vcmp.le.f32.partialorder %v321, %v343
        %vm354 = vcmp.le.f32.partialorder %v322, %v346
        %v355 = vsel %vm347, %v208, 8
        %v356 = vsel %vm348, %v208, 8
        %v357 = vsel %vm349, %v208, 8
        %v358 = vsel %vm350, %v208, 8
        %v359 = vsel %vm351, %v208, 8
        %v360 = vsel %vm352, %v208, 8
        %v361 = vsel %vm353, %v208, 8
        %v362 = vsel %vm354, %v208, 8
        %v363 = vsel %vm210, %v355, 2147483647
        %v364 = vand.u32 %v363, 65535
        %v365 = vshra.s32 %v363, 16
        %v366 = vcvt.s32.f32 %v364
        %v367 = vcvt.s32.f32 %v365
        %368 = vmin.xlane.f32.xlu0 %v367
        %v369 = vpop.xlane.xlu0 %368
        %vm370 = vcmp.eq.f32.partialorder %v367, %v369
        %v371 = vsel %vm370, %v366, inf
        %372 = vmin.xlane.f32.xlu0 %v371
        %v373 = vpop.xlane.xlu0 %372
        %v374 = vcvt.f32.s32 %v373
        %v375 = vcvt.f32.s32 %v369
        %v376 = vshll.u32 %v375, 16
        %v377 = vadd.s32 %v376, %v374
        %v378 = vsel %vm210, %v356, 2147483647
        %v379 = vand.u32 %v378, 65535
        %v380 = vshra.s32 %v378, 16
        %v381 = vcvt.s32.f32 %v379
        %v382 = vcvt.s32.f32 %v380
        %383 = vmin.xlane.f32.xlu0 %v382
        %v384 = vpop.xlane.xlu0 %383
        %vm385 = vcmp.eq.f32.partialorder %v382, %v384
        %v386 = vsel %vm385, %v381, inf
        %387 = vmin.xlane.f32.xlu0 %v386
        %v388 = vpop.xlane.xlu0 %387
        %v389 = vcvt.f32.s32 %v388
        %v390 = vcvt.f32.s32 %v384
        %v391 = vshll.u32 %v390, 16
        %v392 = vadd.s32 %v391, %v389
        %v393 = vsel %vm210, %v357, 2147483647
        %v394 = vand.u32 %v393, 65535
        %v395 = vshra.s32 %v393, 16
        %v396 = vcvt.s32.f32 %v394
        %v397 = vcvt.s32.f32 %v395
        %398 = vmin.xlane.f32.xlu0 %v397
        %v399 = vpop.xlane.xlu0 %398
        %vm400 = vcmp.eq.f32.partialorder %v397, %v399
        %v401 = vsel %vm400, %v396, inf
        %402 = vmin.xlane.f32.xlu0 %v401
        %v403 = vpop.xlane.xlu0 %402
        %v404 = vcvt.f32.s32 %v403
        %v405 = vcvt.f32.s32 %v399
        %v406 = vshll.u32 %v405, 16
        %v407 = vadd.s32 %v406, %v404
        %v408 = vsel %vm210, %v358, 2147483647
        %v409 = vand.u32 %v408, 65535
        %v410 = vshra.s32 %v408, 16
        %v411 = vcvt.s32.f32 %v409
        %v412 = vcvt.s32.f32 %v410
        %413 = vmin.xlane.f32.xlu0 %v412
        %v414 = vpop.xlane.xlu0 %413
        %vm415 = vcmp.eq.f32.partialorder %v412, %v414
        %v416 = vsel %vm415, %v411, inf
        %417 = vmin.xlane.f32.xlu0 %v416
        %v418 = vpop.xlane.xlu0 %417
        %v419 = vcvt.f32.s32 %v418
        %v420 = vcvt.f32.s32 %v414
        %v421 = vshll.u32 %v420, 16
        %v422 = vadd.s32 %v421, %v419
        %v423 = vsel %vm210, %v359, 2147483647
        %v424 = vand.u32 %v423, 65535
        %v425 = vshra.s32 %v423, 16
        %v426 = vcvt.s32.f32 %v424
        %v427 = vcvt.s32.f32 %v425
        %428 = vmin.xlane.f32.xlu0 %v427
        %v429 = vpop.xlane.xlu0 %428
        %vm430 = vcmp.eq.f32.partialorder %v427, %v429
        %v431 = vsel %vm430, %v426, inf
        %432 = vmin.xlane.f32.xlu0 %v431
        %v433 = vpop.xlane.xlu0 %432
        %v434 = vcvt.f32.s32 %v433
        %v435 = vcvt.f32.s32 %v429
        %v436 = vshll.u32 %v435, 16
        %v437 = vadd.s32 %v436, %v434
        %v438 = vsel %vm210, %v360, 2147483647
        %v439 = vand.u32 %v438, 65535
        %v440 = vshra.s32 %v438, 16
        %v441 = vcvt.s32.f32 %v439
        %v442 = vcvt.s32.f32 %v440
        %443 = vmin.xlane.f32.xlu0 %v442
        %v444 = vpop.xlane.xlu0 %443
        %vm445 = vcmp.eq.f32.partialorder %v442, %v444
        %v446 = vsel %vm445, %v441, inf
        %447 = vmin.xlane.f32.xlu0 %v446
        %v448 = vpop.xlane.xlu0 %447
        %v449 = vcvt.f32.s32 %v448
        %v450 = vcvt.f32.s32 %v444
        %v451 = vshll.u32 %v450, 16
        %v452 = vadd.s32 %v451, %v449
        %v453 = vsel %vm210, %v361, 2147483647
        %v454 = vand.u32 %v453, 65535
        %v455 = vshra.s32 %v453, 16
        %v456 = vcvt.s32.f32 %v454
        %v457 = vcvt.s32.f32 %v455
        %458 = vmin.xlane.f32.xlu0 %v457
        %v459 = vpop.xlane.xlu0 %458
        %vm460 = vcmp.eq.f32.partialorder %v457, %v459
        %v461 = vsel %vm460, %v456, inf
        %462 = vmin.xlane.f32.xlu0 %v461
        %v463 = vpop.xlane.xlu0 %462
        %v464 = vcvt.f32.s32 %v463
        %v465 = vcvt.f32.s32 %v459
        %v466 = vshll.u32 %v465, 16
        %v467 = vadd.s32 %v466, %v464
        %v468 = vsel %vm210, %v362, 2147483647
        %v469 = vand.u32 %v468, 65535
        %v470 = vshra.s32 %v468, 16
        %v471 = vcvt.s32.f32 %v469
        %v472 = vcvt.s32.f32 %v470
        %473 = vmin.xlane.f32.xlu0 %v472
        %v474 = vpop.xlane.xlu0 %473
        %vm475 = vcmp.eq.f32.partialorder %v472, %v474
        %v476 = vsel %vm475, %v471, inf
        %477 = vmin.xlane.f32.xlu0 %v476
        %v478 = vpop.xlane.xlu0 %477
        %v479 = vcvt.f32.s32 %v478
        %v480 = vcvt.f32.s32 %v474
        %v481 = vshll.u32 %v480, 16
        %v482 = vadd.s32 %v481, %v479
        %vm483 = vcmp.eq.s32.totalorder %v377, %v208
        %vm484 = vcmp.eq.s32.totalorder %v392, %v208
        %vm485 = vcmp.eq.s32.totalorder %v407, %v208
        %vm486 = vcmp.eq.s32.totalorder %v422, %v208
        %vm487 = vcmp.eq.s32.totalorder %v437, %v208
        %vm488 = vcmp.eq.s32.totalorder %v452, %v208
        %vm489 = vcmp.eq.s32.totalorder %v467, %v208
        %vm490 = vcmp.eq.s32.totalorder %v482, %v208
        %v491 = vsel %vm483, 1, 0
        %v492 = vsel %vm484, 1, 0
        %v493 = vsel %vm485, 1, 0
        %v494 = vsel %vm486, 1, 0
        %v495 = vsel %vm487, 1, 0
        %v496 = vsel %vm488, 1, 0
        %v497 = vsel %vm489, 1, 0
        %v498 = vsel %vm490, 1, 0
        %v499 = vcvt.s32.f32 %v491
        %v500 = vcvt.s32.f32 %v492
        %v501 = vcvt.s32.f32 %v493
        %v502 = vcvt.s32.f32 %v494
        %v503 = vcvt.s32.f32 %v495
        %v504 = vcvt.s32.f32 %v496
        %v505 = vcvt.s32.f32 %v497
        %v506 = vcvt.s32.f32 %v498
        %507 = vxpose.xlu0.b32.start [1/16] %v499, 128
        %508 = vxpose.xlu0.b32.cont [2/16] %v500, 128
        %509 = vxpose.xlu0.b32.cont [3/16] %v501, 128
        %510 = vxpose.xlu0.b32.cont [4/16] %v502, 128
        %511 = vxpose.xlu0.b32.cont [5/16] %v503, 128
        %512 = vxpose.xlu0.b32.cont [6/16] %v504, 128
        %513 = vxpose.xlu0.b32.cont [7/16] %v505, 128
        %514 = vxpose.xlu0.b32.cont [8/16] %v506, 128
        %515 = vxpose.xlu0.b32.cont [9/16] 0.0, 128
        %516 = vxpose.xlu0.b32.cont [10/16] 0.0, 128
        %517 = vxpose.xlu0.b32.cont [11/16] 0.0, 128
        %518 = vxpose.xlu0.b32.cont [12/16] 0.0, 128
        %519 = vxpose.xlu0.b32.cont [13/16] 0.0, 128
        %520 = vxpose.xlu0.b32.cont [14/16] 0.0, 128
        %521 = vxpose.xlu0.b32.cont [15/16] 0.0, 128
        %522 = vxpose.xlu0.b32.end [16/16] 0.0, 128
        %v523 = vpop.trf.xlu0
        %v524 = vpop.trf.xlu0
        %v525 = vpop.trf.xlu0
        %v526 = vpop.trf.xlu0
        %v527 = vpop.trf.xlu0
        %v528 = vpop.trf.xlu0
        %v529 = vpop.trf.xlu0
        %v530 = vpop.trf.xlu0
        %v531 = vpop.trf.xlu0
        %v532 = vpop.trf.xlu0
        %v533 = vpop.trf.xlu0
        %v534 = vpop.trf.xlu0
        %v535 = vpop.trf.xlu0
        %v536 = vpop.trf.xlu0
        %v537 = vpop.trf.xlu0
        %v538 = vpop.trf.xlu0
        %vm539 = vcmask 523264
        %v541 = vsel %vm539, %v523, 0
        %543 = vmatpush.msra.mxu0 0.0
        %544 = vmatpush.msra.mxu0 0.0
        %545 = vmatpush.msra.mxu0 0.0
        %546 = vmatpush.msra.mxu0 0.0
        %547 = vmatpush.msra.mxu0 0.0
        %548 = vmatpush.msra.mxu0 0.0
        %549 = vmatpush.msra.mxu0 0.0
        %550 = vmatpush.msra.mxu0 0.0
        %551 = vmatpush.msra.mxu0 %v206
        %552 = vmatpush.msra.mxu0 %v205
        %553 = vmatpush.msra.mxu0 %v204
        %554 = vmatpush.msra.mxu0 %v203
        %555 = vmatpush.msra.mxu0 %v202
        %556 = vmatpush.msra.mxu0 %v201
        %557 = vmatpush.msra.mxu0 %v200
        %558 = vmatpush.msra.mxu0 %v199
        %559 = vmatmul.f32.gmra.mxu0 %v541
        %v560 = vpop.f32.mrf.mxu0
        %v561 = vadd.f32 0.0, %v560
        %562 = vdwg.mxu0
        %563 = vmatpush.msra.mxu0 0.0
        %564 = vmatpush.msra.mxu0 0.0
        %565 = vmatpush.msra.mxu0 0.0
        %566 = vmatpush.msra.mxu0 0.0
        %567 = vmatpush.msra.mxu0 0.0
        %568 = vmatpush.msra.mxu0 0.0
        %569 = vmatpush.msra.mxu0 0.0
        %570 = vmatpush.msra.mxu0 0.0
        %571 = vmatpush.msra.mxu0 1.0
        %572 = vmatpush.msra.mxu0 1.0
        %573 = vmatpush.msra.mxu0 1.0
        %574 = vmatpush.msra.mxu0 1.0
        %575 = vmatpush.msra.mxu0 1.0
        %576 = vmatpush.msra.mxu0 1.0
        %577 = vmatpush.msra.mxu0 1.0
        %578 = vmatpush.msra.mxu0 1.0
        %579 = vmatmul.f32.gmra.mxu0 %v541
        %v580 = vpop.f32.mrf.mxu0
        %v581 = vadd.f32 0.0, %v580
        %582 = vdwg.mxu0
        %vm583 = vcmp.gt.f32.partialorder %v581, 0.0
        %v584 = vmax.f32 %v581, 1.0
        %586 = vset.pattern.permute.xlu0 0
        %587 = vperm.xlu0 %586, %v584
        %v588 = vpop.permute.xlu0 %587
        %v590 = vrcp.pop %v588
        %v591 = vmul.f32 %v588, %v590
        %v592 = vsub.f32 1.0, %v591
        %v593 = vmul.f32 %v590, %v592
        %v594 = vadd.f32 %v590, %v593
        %vm595 = vweird.f32 %v588
        %vm596 = vweird.f32 %v590
        %vm597 = vmor %vm595, %vm596
        %v598 = vsel %vm597, %v590, %v594
        %v599 = vand.u32 2147483647, %v588
        %vm600 = vcmp.eq.f32.partialorder %v599, 8.507059e+37
        %v601 = vand.u32 %v588, 2147483648
        %v602 = vor.u32 1.1754944e-38, %v601
        %v603 = vsel %vm600, %v602, %v598
        %v604 = vmul.f32 %v561, %v603
        %v605 = vsel %vm583, 1, 0
        %606 = vset.pattern.permute.xlu0 0
        %607 = vperm.xlu0 %606, %v605
        %v608 = vpop.permute.xlu0 %607
        %vm609 = vcmp.eq.s32.totalorder %v608, 1
        %v610 = vsel %vm609, %v604, %v209
        %v612 = vsel %vm210, %v610, 0
        %614 = vmatpush.xpose.msra.mxu0 0.0
        %615 = vmatpush.xpose.msra.mxu0 0.0
        %616 = vmatpush.xpose.msra.mxu0 0.0
        %617 = vmatpush.xpose.msra.mxu0 0.0
        %618 = vmatpush.xpose.msra.mxu0 0.0
        %619 = vmatpush.xpose.msra.mxu0 0.0
        %620 = vmatpush.xpose.msra.mxu0 0.0
        %621 = vmatpush.xpose.msra.mxu0 0.0
        %622 = vmatpush.xpose.msra.mxu0 0.0
        %623 = vmatpush.xpose.msra.mxu0 0.0
        %624 = vmatpush.xpose.msra.mxu0 0.0
        %625 = vmatpush.xpose.msra.mxu0 0.0
        %626 = vmatpush.xpose.msra.mxu0 0.0
        %627 = vmatpush.xpose.msra.mxu0 0.0
        %628 = vmatpush.xpose.msra.mxu0 0.0
        %629 = vmatpush.xpose.msra.mxu0 %v612
        %630 = vmatmul.f32.gmra.mxu0 %v212
        %v631 = vpop.f32.mrf.mxu0
        %v632 = vadd.f32 0.0, %v631
        %633 = vmatmul.f32.gmra.mxu0 %v215
        %v634 = vpop.f32.mrf.mxu0
        %v635 = vadd.f32 0.0, %v634
        %636 = vmatmul.f32.gmra.mxu0 %v218
        %v637 = vpop.f32.mrf.mxu0
        %v638 = vadd.f32 0.0, %v637
        %639 = vmatmul.f32.gmra.mxu0 %v221
        %v640 = vpop.f32.mrf.mxu0
        %v641 = vadd.f32 0.0, %v640
        %642 = vmatmul.f32.gmra.mxu0 %v224
        %v643 = vpop.f32.mrf.mxu0
        %v644 = vadd.f32 0.0, %v643
        %645 = vmatmul.f32.gmra.mxu0 %v227
        %v646 = vpop.f32.mrf.mxu0
        %v647 = vadd.f32 0.0, %v646
        %648 = vmatmul.f32.gmra.mxu0 %v230
        %v649 = vpop.f32.mrf.mxu0
        %v650 = vadd.f32 0.0, %v649
        %651 = vmatmul.f32.gmra.mxu0 %v233
        %v652 = vpop.f32.mrf.mxu0
        %v653 = vadd.f32 0.0, %v652
        %654 = vdwg.mxu0
        %v655 = vmul.f32 %v610, %v610
        %v657 = vsel %vm210, %v655, 0
        %659 = vmatpush.xpose.msra.mxu0 0.0
        %660 = vmatpush.xpose.msra.mxu0 0.0
        %661 = vmatpush.xpose.msra.mxu0 0.0
        %662 = vmatpush.xpose.msra.mxu0 0.0
        %663 = vmatpush.xpose.msra.mxu0 0.0
        %664 = vmatpush.xpose.msra.mxu0 0.0
        %665 = vmatpush.xpose.msra.mxu0 0.0
        %666 = vmatpush.xpose.msra.mxu0 0.0
        %667 = vmatpush.xpose.msra.mxu0 0.0
        %668 = vmatpush.xpose.msra.mxu0 0.0
        %669 = vmatpush.xpose.msra.mxu0 0.0
        %670 = vmatpush.xpose.msra.mxu0 0.0
        %671 = vmatpush.xpose.msra.mxu0 0.0
        %672 = vmatpush.xpose.msra.mxu0 0.0
        %673 = vmatpush.xpose.msra.mxu0 0.0
        %674 = vmatpush.xpose.msra.mxu0 %v657
        %675 = vmatmul.f32.gmra.mxu0 %v281
        %v676 = vpop.f32.mrf.mxu0
        %v677 = vadd.f32 0.0, %v676
        %678 = vdwg.mxu0
        %v679 = vmul.f32 %v632, 2.0
        %v680 = vmul.f32 %v635, 2.0
        %v681 = vmul.f32 %v638, 2.0
        %v682 = vmul.f32 %v641, 2.0
        %v683 = vmul.f32 %v644, 2.0
        %v684 = vmul.f32 %v647, 2.0
        %v685 = vmul.f32 %v650, 2.0
        %v686 = vmul.f32 %v653, 2.0
        %v687 = vperm.slane %v677, 0
        %v688 = vsub.f32 %v687, %v679
        %v689 = vsub.f32 %v687, %v680
        %v690 = vsub.f32 %v687, %v681
        %v691 = vsub.f32 %v687, %v682
        %v692 = vsub.f32 %v687, %v683
        %v693 = vsub.f32 %v687, %v684
        %v694 = vsub.f32 %v687, %v685
        %v695 = vsub.f32 %v687, %v686
        %v696 = vsel %vm210, %v688, inf
        %697 = vmin.xlane.f32.xlu0 %v696
        %v698 = vpop.xlane.xlu0 %697
        %v699 = vsel %vm210, %v689, inf
        %700 = vmin.xlane.f32.xlu0 %v699
        %v701 = vpop.xlane.xlu0 %700
        %v702 = vsel %vm210, %v690, inf
        %703 = vmin.xlane.f32.xlu0 %v702
        %v704 = vpop.xlane.xlu0 %703
        %v705 = vsel %vm210, %v691, inf
        %706 = vmin.xlane.f32.xlu0 %v705
        %v707 = vpop.xlane.xlu0 %706
        %v708 = vsel %vm210, %v692, inf
        %709 = vmin.xlane.f32.xlu0 %v708
        %v710 = vpop.xlane.xlu0 %709
        %v711 = vsel %vm210, %v693, inf
        %712 = vmin.xlane.f32.xlu0 %v711
        %v713 = vpop.xlane.xlu0 %712
        %v714 = vsel %vm210, %v694, inf
        %715 = vmin.xlane.f32.xlu0 %v714
        %v716 = vpop.xlane.xlu0 %715
        %v717 = vsel %vm210, %v695, inf
        %718 = vmin.xlane.f32.xlu0 %v717
        %v719 = vpop.xlane.xlu0 %718
        %vm720 = vcmp.le.f32.partialorder %v688, %v698
        %vm721 = vcmp.le.f32.partialorder %v689, %v701
        %vm722 = vcmp.le.f32.partialorder %v690, %v704
        %vm723 = vcmp.le.f32.partialorder %v691, %v707
        %vm724 = vcmp.le.f32.partialorder %v692, %v710
        %vm725 = vcmp.le.f32.partialorder %v693, %v713
        %vm726 = vcmp.le.f32.partialorder %v694, %v716
        %vm727 = vcmp.le.f32.partialorder %v695, %v719
        %v728 = vsel %vm720, %v208, 8
        %v729 = vsel %vm721, %v208, 8
        %v730 = vsel %vm722, %v208, 8
        %v731 = vsel %vm723, %v208, 8
        %v732 = vsel %vm724, %v208, 8
        %v733 = vsel %vm725, %v208, 8
        %v734 = vsel %vm726, %v208, 8
        %v735 = vsel %vm727, %v208, 8
        %v736 = vsel %vm210, %v728, 2147483647
        %v737 = vand.u32 %v736, 65535
        %v738 = vshra.s32 %v736, 16
        %v739 = vcvt.s32.f32 %v737
        %v740 = vcvt.s32.f32 %v738
        %741 = vmin.xlane.f32.xlu0 %v740
        %v742 = vpop.xlane.xlu0 %741
        %vm743 = vcmp.eq.f32.partialorder %v740, %v742
        %v744 = vsel %vm743, %v739, inf
        %745 = vmin.xlane.f32.xlu0 %v744
        %v746 = vpop.xlane.xlu0 %745
        %v747 = vcvt.f32.s32 %v746
        %v748 = vcvt.f32.s32 %v742
        %v749 = vshll.u32 %v748, 16
        %v750 = vadd.s32 %v749, %v747
        %v751 = vsel %vm210, %v729, 2147483647
        %v752 = vand.u32 %v751, 65535
        %v753 = vshra.s32 %v751, 16
        %v754 = vcvt.s32.f32 %v752
        %v755 = vcvt.s32.f32 %v753
        %756 = vmin.xlane.f32.xlu0 %v755
        %v757 = vpop.xlane.xlu0 %756
        %vm758 = vcmp.eq.f32.partialorder %v755, %v757
        %v759 = vsel %vm758, %v754, inf
        %760 = vmin.xlane.f32.xlu0 %v759
        %v761 = vpop.xlane.xlu0 %760
        %v762 = vcvt.f32.s32 %v761
        %v763 = vcvt.f32.s32 %v757
        %v764 = vshll.u32 %v763, 16
        %v765 = vadd.s32 %v764, %v762
        %v766 = vsel %vm210, %v730, 2147483647
        %v767 = vand.u32 %v766, 65535
        %v768 = vshra.s32 %v766, 16
        %v769 = vcvt.s32.f32 %v767
        %v770 = vcvt.s32.f32 %v768
        %771 = vmin.xlane.f32.xlu0 %v770
        %v772 = vpop.xlane.xlu0 %771
        %vm773 = vcmp.eq.f32.partialorder %v770, %v772
        %v774 = vsel %vm773, %v769, inf
        %775 = vmin.xlane.f32.xlu0 %v774
        %v776 = vpop.xlane.xlu0 %775
        %v777 = vcvt.f32.s32 %v776
        %v778 = vcvt.f32.s32 %v772
        %v779 = vshll.u32 %v778, 16
        %v780 = vadd.s32 %v779, %v777
        %v781 = vsel %vm210, %v731, 2147483647
        %v782 = vand.u32 %v781, 65535
        %v783 = vshra.s32 %v781, 16
        %v784 = vcvt.s32.f32 %v782
        %v785 = vcvt.s32.f32 %v783
        %786 = vmin.xlane.f32.xlu0 %v785
        %v787 = vpop.xlane.xlu0 %786
        %vm788 = vcmp.eq.f32.partialorder %v785, %v787
        %v789 = vsel %vm788, %v784, inf
        %790 = vmin.xlane.f32.xlu0 %v789
        %v791 = vpop.xlane.xlu0 %790
        %v792 = vcvt.f32.s32 %v791
        %v793 = vcvt.f32.s32 %v787
        %v794 = vshll.u32 %v793, 16
        %v795 = vadd.s32 %v794, %v792
        %v796 = vsel %vm210, %v732, 2147483647
        %v797 = vand.u32 %v796, 65535
        %v798 = vshra.s32 %v796, 16
        %v799 = vcvt.s32.f32 %v797
        %v800 = vcvt.s32.f32 %v798
        %801 = vmin.xlane.f32.xlu0 %v800
        %v802 = vpop.xlane.xlu0 %801
        %vm803 = vcmp.eq.f32.partialorder %v800, %v802
        %v804 = vsel %vm803, %v799, inf
        %805 = vmin.xlane.f32.xlu0 %v804
        %v806 = vpop.xlane.xlu0 %805
        %v807 = vcvt.f32.s32 %v806
        %v808 = vcvt.f32.s32 %v802
        %v809 = vshll.u32 %v808, 16
        %v810 = vadd.s32 %v809, %v807
        %v811 = vsel %vm210, %v733, 2147483647
        %v812 = vand.u32 %v811, 65535
        %v813 = vshra.s32 %v811, 16
        %v814 = vcvt.s32.f32 %v812
        %v815 = vcvt.s32.f32 %v813
        %816 = vmin.xlane.f32.xlu0 %v815
        %v817 = vpop.xlane.xlu0 %816
        %vm818 = vcmp.eq.f32.partialorder %v815, %v817
        %v819 = vsel %vm818, %v814, inf
        %820 = vmin.xlane.f32.xlu0 %v819
        %v821 = vpop.xlane.xlu0 %820
        %v822 = vcvt.f32.s32 %v821
        %v823 = vcvt.f32.s32 %v817
        %v824 = vshll.u32 %v823, 16
        %v825 = vadd.s32 %v824, %v822
        %v826 = vsel %vm210, %v734, 2147483647
        %v827 = vand.u32 %v826, 65535
        %v828 = vshra.s32 %v826, 16
        %v829 = vcvt.s32.f32 %v827
        %v830 = vcvt.s32.f32 %v828
        %831 = vmin.xlane.f32.xlu0 %v830
        %v832 = vpop.xlane.xlu0 %831
        %vm833 = vcmp.eq.f32.partialorder %v830, %v832
        %v834 = vsel %vm833, %v829, inf
        %835 = vmin.xlane.f32.xlu0 %v834
        %v836 = vpop.xlane.xlu0 %835
        %v837 = vcvt.f32.s32 %v836
        %v838 = vcvt.f32.s32 %v832
        %v839 = vshll.u32 %v838, 16
        %v840 = vadd.s32 %v839, %v837
        %v841 = vsel %vm210, %v735, 2147483647
        %v842 = vand.u32 %v841, 65535
        %v843 = vshra.s32 %v841, 16
        %v844 = vcvt.s32.f32 %v842
        %v845 = vcvt.s32.f32 %v843
        %846 = vmin.xlane.f32.xlu0 %v845
        %v847 = vpop.xlane.xlu0 %846
        %vm848 = vcmp.eq.f32.partialorder %v845, %v847
        %v849 = vsel %vm848, %v844, inf
        %850 = vmin.xlane.f32.xlu0 %v849
        %v851 = vpop.xlane.xlu0 %850
        %v852 = vcvt.f32.s32 %v851
        %v853 = vcvt.f32.s32 %v847
        %v854 = vshll.u32 %v853, 16
        %v855 = vadd.s32 %v854, %v852
        %vm856 = vcmp.eq.s32.totalorder %v750, %v208
        %vm857 = vcmp.eq.s32.totalorder %v765, %v208
        %vm858 = vcmp.eq.s32.totalorder %v780, %v208
        %vm859 = vcmp.eq.s32.totalorder %v795, %v208
        %vm860 = vcmp.eq.s32.totalorder %v810, %v208
        %vm861 = vcmp.eq.s32.totalorder %v825, %v208
        %vm862 = vcmp.eq.s32.totalorder %v840, %v208
        %vm863 = vcmp.eq.s32.totalorder %v855, %v208
        %v864 = vsel %vm856, 1, 0
        %v865 = vsel %vm857, 1, 0
        %v866 = vsel %vm858, 1, 0
        %v867 = vsel %vm859, 1, 0
        %v868 = vsel %vm860, 1, 0
        %v869 = vsel %vm861, 1, 0
        %v870 = vsel %vm862, 1, 0
        %v871 = vsel %vm863, 1, 0
        %v872 = vcvt.s32.f32 %v864
        %v873 = vcvt.s32.f32 %v865
        %v874 = vcvt.s32.f32 %v866
        %v875 = vcvt.s32.f32 %v867
        %v876 = vcvt.s32.f32 %v868
        %v877 = vcvt.s32.f32 %v869
        %v878 = vcvt.s32.f32 %v870
        %v879 = vcvt.s32.f32 %v871
        %880 = vxpose.xlu0.b32.start [1/16] %v872, 128
        %881 = vxpose.xlu0.b32.cont [2/16] %v873, 128
        %882 = vxpose.xlu0.b32.cont [3/16] %v874, 128
        %883 = vxpose.xlu0.b32.cont [4/16] %v875, 128
        %884 = vxpose.xlu0.b32.cont [5/16] %v876, 128
        %885 = vxpose.xlu0.b32.cont [6/16] %v877, 128
        %886 = vxpose.xlu0.b32.cont [7/16] %v878, 128
        %887 = vxpose.xlu0.b32.cont [8/16] %v879, 128
        %888 = vxpose.xlu0.b32.cont [9/16] 0.0, 128
        %889 = vxpose.xlu0.b32.cont [10/16] 0.0, 128
        %890 = vxpose.xlu0.b32.cont [11/16] 0.0, 128
        %891 = vxpose.xlu0.b32.cont [12/16] 0.0, 128
        %892 = vxpose.xlu0.b32.cont [13/16] 0.0, 128
        %893 = vxpose.xlu0.b32.cont [14/16] 0.0, 128
        %894 = vxpose.xlu0.b32.cont [15/16] 0.0, 128
        %895 = vxpose.xlu0.b32.end [16/16] 0.0, 128
        %v896 = vpop.trf.xlu0
        %v897 = vpop.trf.xlu0
        %v898 = vpop.trf.xlu0
        %v899 = vpop.trf.xlu0
        %v900 = vpop.trf.xlu0
        %v901 = vpop.trf.xlu0
        %v902 = vpop.trf.xlu0
        %v903 = vpop.trf.xlu0
        %v904 = vpop.trf.xlu0
        %v905 = vpop.trf.xlu0
        %v906 = vpop.trf.xlu0
        %v907 = vpop.trf.xlu0
        %v908 = vpop.trf.xlu0
        %v909 = vpop.trf.xlu0
        %v910 = vpop.trf.xlu0
        %v911 = vpop.trf.xlu0
        %v913 = vsel %vm539, %v896, 0
        %915 = vmatpush.msra.mxu0 0.0
        %916 = vmatpush.msra.mxu0 0.0
        %917 = vmatpush.msra.mxu0 0.0
        %918 = vmatpush.msra.mxu0 0.0
        %919 = vmatpush.msra.mxu0 0.0
        %920 = vmatpush.msra.mxu0 0.0
        %921 = vmatpush.msra.mxu0 0.0
        %922 = vmatpush.msra.mxu0 0.0
        %923 = vmatpush.msra.mxu0 %v206
        %924 = vmatpush.msra.mxu0 %v205
        %925 = vmatpush.msra.mxu0 %v204
        %926 = vmatpush.msra.mxu0 %v203
        %927 = vmatpush.msra.mxu0 %v202
        %928 = vmatpush.msra.mxu0 %v201
        %929 = vmatpush.msra.mxu0 %v200
        %930 = vmatpush.msra.mxu0 %v199
        %931 = vmatmul.f32.gmra.mxu0 %v913
        %v932 = vpop.f32.mrf.mxu0
        %v933 = vadd.f32 0.0, %v932
        %934 = vdwg.mxu0
        %935 = vmatpush.msra.mxu0 0.0
        %936 = vmatpush.msra.mxu0 0.0
        %937 = vmatpush.msra.mxu0 0.0
        %938 = vmatpush.msra.mxu0 0.0
        %939 = vmatpush.msra.mxu0 0.0
        %940 = vmatpush.msra.mxu0 0.0
        %941 = vmatpush.msra.mxu0 0.0
        %942 = vmatpush.msra.mxu0 0.0
        %943 = vmatpush.msra.mxu0 1.0
        %944 = vmatpush.msra.mxu0 1.0
        %945 = vmatpush.msra.mxu0 1.0
        %946 = vmatpush.msra.mxu0 1.0
        %947 = vmatpush.msra.mxu0 1.0
        %948 = vmatpush.msra.mxu0 1.0
        %949 = vmatpush.msra.mxu0 1.0
        %950 = vmatpush.msra.mxu0 1.0
        %951 = vmatmul.f32.gmra.mxu0 %v913
        %v952 = vpop.f32.mrf.mxu0
        %v953 = vadd.f32 0.0, %v952
        %954 = vdwg.mxu0
        %vm955 = vcmp.gt.f32.partialorder %v953, 0.0
        %v956 = vmax.f32 %v953, 1.0
        %958 = vset.pattern.permute.xlu0 0
        %959 = vperm.xlu0 %958, %v956
        %v960 = vpop.permute.xlu0 %959
        %v962 = vrcp.pop %v960
        %v963 = vmul.f32 %v960, %v962
        %v964 = vsub.f32 1.0, %v963
        %v965 = vmul.f32 %v962, %v964
        %v966 = vadd.f32 %v962, %v965
        %vm967 = vweird.f32 %v960
        %vm968 = vweird.f32 %v962
        %vm969 = vmor %vm967, %vm968
        %v970 = vsel %vm969, %v962, %v966
        %v971 = vand.u32 2147483647, %v960
        %vm972 = vcmp.eq.f32.partialorder %v971, 8.507059e+37
        %v973 = vand.u32 %v960, 2147483648
        %v974 = vor.u32 1.1754944e-38, %v973
        %v975 = vsel %vm972, %v974, %v970
        %v976 = vmul.f32 %v933, %v975
        %v977 = vsel %vm955, 1, 0
        %978 = vset.pattern.permute.xlu0 0
        %979 = vperm.xlu0 %978, %v977
        %v980 = vpop.permute.xlu0 %979
        %vm981 = vcmp.eq.s32.totalorder %v980, 1
        %v982 = vsel %vm981, %v976, %v610
        %v984 = vsel %vm210, %v982, 0
        %986 = vmatpush.xpose.msra.mxu0 0.0
        %987 = vmatpush.xpose.msra.mxu0 0.0
        %988 = vmatpush.xpose.msra.mxu0 0.0
        %989 = vmatpush.xpose.msra.mxu0 0.0
        %990 = vmatpush.xpose.msra.mxu0 0.0
        %991 = vmatpush.xpose.msra.mxu0 0.0
        %992 = vmatpush.xpose.msra.mxu0 0.0
        %993 = vmatpush.xpose.msra.mxu0 0.0
        %994 = vmatpush.xpose.msra.mxu0 0.0
        %995 = vmatpush.xpose.msra.mxu0 0.0
        %996 = vmatpush.xpose.msra.mxu0 0.0
        %997 = vmatpush.xpose.msra.mxu0 0.0
        %998 = vmatpush.xpose.msra.mxu0 0.0
        %999 = vmatpush.xpose.msra.mxu0 0.0
        %1000 = vmatpush.xpose.msra.mxu0 0.0
        %1001 = vmatpush.xpose.msra.mxu0 %v984
        %1002 = vmatmul.f32.gmra.mxu0 %v212
        %v1003 = vpop.f32.mrf.mxu0
        %v1004 = vadd.f32 0.0, %v1003
        %1005 = vmatmul.f32.gmra.mxu0 %v215
        %v1006 = vpop.f32.mrf.mxu0
        %v1007 = vadd.f32 0.0, %v1006
        %1008 = vmatmul.f32.gmra.mxu0 %v218
        %v1009 = vpop.f32.mrf.mxu0
        %v1010 = vadd.f32 0.0, %v1009
        %1011 = vmatmul.f32.gmra.mxu0 %v221
        %v1012 = vpop.f32.mrf.mxu0
        %v1013 = vadd.f32 0.0, %v1012
        %1014 = vmatmul.f32.gmra.mxu0 %v224
        %v1015 = vpop.f32.mrf.mxu0
        %v1016 = vadd.f32 0.0, %v1015
        %1017 = vmatmul.f32.gmra.mxu0 %v227
        %v1018 = vpop.f32.mrf.mxu0
        %v1019 = vadd.f32 0.0, %v1018
        %1020 = vmatmul.f32.gmra.mxu0 %v230
        %v1021 = vpop.f32.mrf.mxu0
        %v1022 = vadd.f32 0.0, %v1021
        %1023 = vmatmul.f32.gmra.mxu0 %v233
        %v1024 = vpop.f32.mrf.mxu0
        %v1025 = vadd.f32 0.0, %v1024
        %1026 = vdwg.mxu0
        %v1027 = vmul.f32 %v982, %v982
        %v1029 = vsel %vm210, %v1027, 0
        %1031 = vmatpush.xpose.msra.mxu0 0.0
        %1032 = vmatpush.xpose.msra.mxu0 0.0
        %1033 = vmatpush.xpose.msra.mxu0 0.0
        %1034 = vmatpush.xpose.msra.mxu0 0.0
        %1035 = vmatpush.xpose.msra.mxu0 0.0
        %1036 = vmatpush.xpose.msra.mxu0 0.0
        %1037 = vmatpush.xpose.msra.mxu0 0.0
        %1038 = vmatpush.xpose.msra.mxu0 0.0
        %1039 = vmatpush.xpose.msra.mxu0 0.0
        %1040 = vmatpush.xpose.msra.mxu0 0.0
        %1041 = vmatpush.xpose.msra.mxu0 0.0
        %1042 = vmatpush.xpose.msra.mxu0 0.0
        %1043 = vmatpush.xpose.msra.mxu0 0.0
        %1044 = vmatpush.xpose.msra.mxu0 0.0
        %1045 = vmatpush.xpose.msra.mxu0 0.0
        %1046 = vmatpush.xpose.msra.mxu0 %v1029
        %1047 = vmatmul.f32.gmra.mxu0 %v281
        %v1048 = vpop.f32.mrf.mxu0
        %v1049 = vadd.f32 0.0, %v1048
        %1050 = vdwg.mxu0
        %v1051 = vmul.f32 %v1004, 2.0
        %v1052 = vmul.f32 %v1007, 2.0
        %v1053 = vmul.f32 %v1010, 2.0
        %v1054 = vmul.f32 %v1013, 2.0
        %v1055 = vmul.f32 %v1016, 2.0
        %v1056 = vmul.f32 %v1019, 2.0
        %v1057 = vmul.f32 %v1022, 2.0
        %v1058 = vmul.f32 %v1025, 2.0
        %v1059 = vperm.slane %v1049, 0
        %v1060 = vsub.f32 %v1059, %v1051
        %v1061 = vsub.f32 %v1059, %v1052
        %v1062 = vsub.f32 %v1059, %v1053
        %v1063 = vsub.f32 %v1059, %v1054
        %v1064 = vsub.f32 %v1059, %v1055
        %v1065 = vsub.f32 %v1059, %v1056
        %v1066 = vsub.f32 %v1059, %v1057
        %v1067 = vsub.f32 %v1059, %v1058
        %v1068 = vsel %vm210, %v1060, inf
        %1069 = vmin.xlane.f32.xlu0 %v1068
        %v1070 = vpop.xlane.xlu0 %1069
        %v1071 = vsel %vm210, %v1061, inf
        %1072 = vmin.xlane.f32.xlu0 %v1071
        %v1073 = vpop.xlane.xlu0 %1072
        %v1074 = vsel %vm210, %v1062, inf
        %1075 = vmin.xlane.f32.xlu0 %v1074
        %v1076 = vpop.xlane.xlu0 %1075
        %v1077 = vsel %vm210, %v1063, inf
        %1078 = vmin.xlane.f32.xlu0 %v1077
        %v1079 = vpop.xlane.xlu0 %1078
        %v1080 = vsel %vm210, %v1064, inf
        %1081 = vmin.xlane.f32.xlu0 %v1080
        %v1082 = vpop.xlane.xlu0 %1081
        %v1083 = vsel %vm210, %v1065, inf
        %1084 = vmin.xlane.f32.xlu0 %v1083
        %v1085 = vpop.xlane.xlu0 %1084
        %v1086 = vsel %vm210, %v1066, inf
        %1087 = vmin.xlane.f32.xlu0 %v1086
        %v1088 = vpop.xlane.xlu0 %1087
        %v1089 = vsel %vm210, %v1067, inf
        %1090 = vmin.xlane.f32.xlu0 %v1089
        %v1091 = vpop.xlane.xlu0 %1090
        %vm1092 = vcmp.le.f32.partialorder %v1060, %v1070
        %vm1093 = vcmp.le.f32.partialorder %v1061, %v1073
        %vm1094 = vcmp.le.f32.partialorder %v1062, %v1076
        %vm1095 = vcmp.le.f32.partialorder %v1063, %v1079
        %vm1096 = vcmp.le.f32.partialorder %v1064, %v1082
        %vm1097 = vcmp.le.f32.partialorder %v1065, %v1085
        %vm1098 = vcmp.le.f32.partialorder %v1066, %v1088
        %vm1099 = vcmp.le.f32.partialorder %v1067, %v1091
        %v1100 = vsel %vm1092, %v208, 8
        %v1101 = vsel %vm1093, %v208, 8
        %v1102 = vsel %vm1094, %v208, 8
        %v1103 = vsel %vm1095, %v208, 8
        %v1104 = vsel %vm1096, %v208, 8
        %v1105 = vsel %vm1097, %v208, 8
        %v1106 = vsel %vm1098, %v208, 8
        %v1107 = vsel %vm1099, %v208, 8
        %v1108 = vsel %vm210, %v1100, 2147483647
        %v1109 = vand.u32 %v1108, 65535
        %v1110 = vshra.s32 %v1108, 16
        %v1111 = vcvt.s32.f32 %v1109
        %v1112 = vcvt.s32.f32 %v1110
        %1113 = vmin.xlane.f32.xlu0 %v1112
        %v1114 = vpop.xlane.xlu0 %1113
        %vm1115 = vcmp.eq.f32.partialorder %v1112, %v1114
        %v1116 = vsel %vm1115, %v1111, inf
        %1117 = vmin.xlane.f32.xlu0 %v1116
        %v1118 = vpop.xlane.xlu0 %1117
        %v1119 = vcvt.f32.s32 %v1118
        %v1120 = vcvt.f32.s32 %v1114
        %v1121 = vshll.u32 %v1120, 16
        %v1122 = vadd.s32 %v1121, %v1119
        %v1123 = vsel %vm210, %v1101, 2147483647
        %v1124 = vand.u32 %v1123, 65535
        %v1125 = vshra.s32 %v1123, 16
        %v1126 = vcvt.s32.f32 %v1124
        %v1127 = vcvt.s32.f32 %v1125
        %1128 = vmin.xlane.f32.xlu0 %v1127
        %v1129 = vpop.xlane.xlu0 %1128
        %vm1130 = vcmp.eq.f32.partialorder %v1127, %v1129
        %v1131 = vsel %vm1130, %v1126, inf
        %1132 = vmin.xlane.f32.xlu0 %v1131
        %v1133 = vpop.xlane.xlu0 %1132
        %v1134 = vcvt.f32.s32 %v1133
        %v1135 = vcvt.f32.s32 %v1129
        %v1136 = vshll.u32 %v1135, 16
        %v1137 = vadd.s32 %v1136, %v1134
        %v1138 = vsel %vm210, %v1102, 2147483647
        %v1139 = vand.u32 %v1138, 65535
        %v1140 = vshra.s32 %v1138, 16
        %v1141 = vcvt.s32.f32 %v1139
        %v1142 = vcvt.s32.f32 %v1140
        %1143 = vmin.xlane.f32.xlu0 %v1142
        %v1144 = vpop.xlane.xlu0 %1143
        %vm1145 = vcmp.eq.f32.partialorder %v1142, %v1144
        %v1146 = vsel %vm1145, %v1141, inf
        %1147 = vmin.xlane.f32.xlu0 %v1146
        %v1148 = vpop.xlane.xlu0 %1147
        %v1149 = vcvt.f32.s32 %v1148
        %v1150 = vcvt.f32.s32 %v1144
        %v1151 = vshll.u32 %v1150, 16
        %v1152 = vadd.s32 %v1151, %v1149
        %v1153 = vsel %vm210, %v1103, 2147483647
        %v1154 = vand.u32 %v1153, 65535
        %v1155 = vshra.s32 %v1153, 16
        %v1156 = vcvt.s32.f32 %v1154
        %v1157 = vcvt.s32.f32 %v1155
        %1158 = vmin.xlane.f32.xlu0 %v1157
        %v1159 = vpop.xlane.xlu0 %1158
        %vm1160 = vcmp.eq.f32.partialorder %v1157, %v1159
        %v1161 = vsel %vm1160, %v1156, inf
        %1162 = vmin.xlane.f32.xlu0 %v1161
        %v1163 = vpop.xlane.xlu0 %1162
        %v1164 = vcvt.f32.s32 %v1163
        %v1165 = vcvt.f32.s32 %v1159
        %v1166 = vshll.u32 %v1165, 16
        %v1167 = vadd.s32 %v1166, %v1164
        %v1168 = vsel %vm210, %v1104, 2147483647
        %v1169 = vand.u32 %v1168, 65535
        %v1170 = vshra.s32 %v1168, 16
        %v1171 = vcvt.s32.f32 %v1169
        %v1172 = vcvt.s32.f32 %v1170
        %1173 = vmin.xlane.f32.xlu0 %v1172
        %v1174 = vpop.xlane.xlu0 %1173
        %vm1175 = vcmp.eq.f32.partialorder %v1172, %v1174
        %v1176 = vsel %vm1175, %v1171, inf
        %1177 = vmin.xlane.f32.xlu0 %v1176
        %v1178 = vpop.xlane.xlu0 %1177
        %v1179 = vcvt.f32.s32 %v1178
        %v1180 = vcvt.f32.s32 %v1174
        %v1181 = vshll.u32 %v1180, 16
        %v1182 = vadd.s32 %v1181, %v1179
        %v1183 = vsel %vm210, %v1105, 2147483647
        %v1184 = vand.u32 %v1183, 65535
        %v1185 = vshra.s32 %v1183, 16
        %v1186 = vcvt.s32.f32 %v1184
        %v1187 = vcvt.s32.f32 %v1185
        %1188 = vmin.xlane.f32.xlu0 %v1187
        %v1189 = vpop.xlane.xlu0 %1188
        %vm1190 = vcmp.eq.f32.partialorder %v1187, %v1189
        %v1191 = vsel %vm1190, %v1186, inf
        %1192 = vmin.xlane.f32.xlu0 %v1191
        %v1193 = vpop.xlane.xlu0 %1192
        %v1194 = vcvt.f32.s32 %v1193
        %v1195 = vcvt.f32.s32 %v1189
        %v1196 = vshll.u32 %v1195, 16
        %v1197 = vadd.s32 %v1196, %v1194
        %v1198 = vsel %vm210, %v1106, 2147483647
        %v1199 = vand.u32 %v1198, 65535
        %v1200 = vshra.s32 %v1198, 16
        %v1201 = vcvt.s32.f32 %v1199
        %v1202 = vcvt.s32.f32 %v1200
        %1203 = vmin.xlane.f32.xlu0 %v1202
        %v1204 = vpop.xlane.xlu0 %1203
        %vm1205 = vcmp.eq.f32.partialorder %v1202, %v1204
        %v1206 = vsel %vm1205, %v1201, inf
        %1207 = vmin.xlane.f32.xlu0 %v1206
        %v1208 = vpop.xlane.xlu0 %1207
        %v1209 = vcvt.f32.s32 %v1208
        %v1210 = vcvt.f32.s32 %v1204
        %v1211 = vshll.u32 %v1210, 16
        %v1212 = vadd.s32 %v1211, %v1209
        %v1213 = vsel %vm210, %v1107, 2147483647
        %v1214 = vand.u32 %v1213, 65535
        %v1215 = vshra.s32 %v1213, 16
        %v1216 = vcvt.s32.f32 %v1214
        %v1217 = vcvt.s32.f32 %v1215
        %1218 = vmin.xlane.f32.xlu0 %v1217
        %v1219 = vpop.xlane.xlu0 %1218
        %vm1220 = vcmp.eq.f32.partialorder %v1217, %v1219
        %v1221 = vsel %vm1220, %v1216, inf
        %1222 = vmin.xlane.f32.xlu0 %v1221
        %v1223 = vpop.xlane.xlu0 %1222
        %v1224 = vcvt.f32.s32 %v1223
        %v1225 = vcvt.f32.s32 %v1219
        %v1226 = vshll.u32 %v1225, 16
        %v1227 = vadd.s32 %v1226, %v1224
        %vm1228 = vcmp.eq.s32.totalorder %v1122, %v208
        %vm1229 = vcmp.eq.s32.totalorder %v1137, %v208
        %vm1230 = vcmp.eq.s32.totalorder %v1152, %v208
        %vm1231 = vcmp.eq.s32.totalorder %v1167, %v208
        %vm1232 = vcmp.eq.s32.totalorder %v1182, %v208
        %vm1233 = vcmp.eq.s32.totalorder %v1197, %v208
        %vm1234 = vcmp.eq.s32.totalorder %v1212, %v208
        %vm1235 = vcmp.eq.s32.totalorder %v1227, %v208
        %v1236 = vsel %vm1228, 1, 0
        %v1237 = vsel %vm1229, 1, 0
        %v1238 = vsel %vm1230, 1, 0
        %v1239 = vsel %vm1231, 1, 0
        %v1240 = vsel %vm1232, 1, 0
        %v1241 = vsel %vm1233, 1, 0
        %v1242 = vsel %vm1234, 1, 0
        %v1243 = vsel %vm1235, 1, 0
        %v1244 = vcvt.s32.f32 %v1236
        %v1245 = vcvt.s32.f32 %v1237
        %v1246 = vcvt.s32.f32 %v1238
        %v1247 = vcvt.s32.f32 %v1239
        %v1248 = vcvt.s32.f32 %v1240
        %v1249 = vcvt.s32.f32 %v1241
        %v1250 = vcvt.s32.f32 %v1242
        %v1251 = vcvt.s32.f32 %v1243
        %1252 = vxpose.xlu0.b32.start [1/16] %v1244, 128
        %1253 = vxpose.xlu0.b32.cont [2/16] %v1245, 128
        %1254 = vxpose.xlu0.b32.cont [3/16] %v1246, 128
        %1255 = vxpose.xlu0.b32.cont [4/16] %v1247, 128
        %1256 = vxpose.xlu0.b32.cont [5/16] %v1248, 128
        %1257 = vxpose.xlu0.b32.cont [6/16] %v1249, 128
        %1258 = vxpose.xlu0.b32.cont [7/16] %v1250, 128
        %1259 = vxpose.xlu0.b32.cont [8/16] %v1251, 128
        %1260 = vxpose.xlu0.b32.cont [9/16] 0.0, 128
        %1261 = vxpose.xlu0.b32.cont [10/16] 0.0, 128
        %1262 = vxpose.xlu0.b32.cont [11/16] 0.0, 128
        %1263 = vxpose.xlu0.b32.cont [12/16] 0.0, 128
        %1264 = vxpose.xlu0.b32.cont [13/16] 0.0, 128
        %1265 = vxpose.xlu0.b32.cont [14/16] 0.0, 128
        %1266 = vxpose.xlu0.b32.cont [15/16] 0.0, 128
        %1267 = vxpose.xlu0.b32.end [16/16] 0.0, 128
        %v1268 = vpop.trf.xlu0
        %v1269 = vpop.trf.xlu0
        %v1270 = vpop.trf.xlu0
        %v1271 = vpop.trf.xlu0
        %v1272 = vpop.trf.xlu0
        %v1273 = vpop.trf.xlu0
        %v1274 = vpop.trf.xlu0
        %v1275 = vpop.trf.xlu0
        %v1276 = vpop.trf.xlu0
        %v1277 = vpop.trf.xlu0
        %v1278 = vpop.trf.xlu0
        %v1279 = vpop.trf.xlu0
        %v1280 = vpop.trf.xlu0
        %v1281 = vpop.trf.xlu0
        %v1282 = vpop.trf.xlu0
        %v1283 = vpop.trf.xlu0
        %v1285 = vsel %vm539, %v1268, 0
        %1287 = vmatpush.msra.mxu0 0.0
        %1288 = vmatpush.msra.mxu0 0.0
        %1289 = vmatpush.msra.mxu0 0.0
        %1290 = vmatpush.msra.mxu0 0.0
        %1291 = vmatpush.msra.mxu0 0.0
        %1292 = vmatpush.msra.mxu0 0.0
        %1293 = vmatpush.msra.mxu0 0.0
        %1294 = vmatpush.msra.mxu0 0.0
        %1295 = vmatpush.msra.mxu0 %v206
        %1296 = vmatpush.msra.mxu0 %v205
        %1297 = vmatpush.msra.mxu0 %v204
        %1298 = vmatpush.msra.mxu0 %v203
        %1299 = vmatpush.msra.mxu0 %v202
        %1300 = vmatpush.msra.mxu0 %v201
        %1301 = vmatpush.msra.mxu0 %v200
        %1302 = vmatpush.msra.mxu0 %v199
        %1303 = vmatmul.f32.gmra.mxu0 %v1285
        %v1304 = vpop.f32.mrf.mxu0
        %v1305 = vadd.f32 0.0, %v1304
        %1306 = vdwg.mxu0
        %1307 = vmatpush.msra.mxu0 0.0
        %1308 = vmatpush.msra.mxu0 0.0
        %1309 = vmatpush.msra.mxu0 0.0
        %1310 = vmatpush.msra.mxu0 0.0
        %1311 = vmatpush.msra.mxu0 0.0
        %1312 = vmatpush.msra.mxu0 0.0
        %1313 = vmatpush.msra.mxu0 0.0
        %1314 = vmatpush.msra.mxu0 0.0
        %1315 = vmatpush.msra.mxu0 1.0
        %1316 = vmatpush.msra.mxu0 1.0
        %1317 = vmatpush.msra.mxu0 1.0
        %1318 = vmatpush.msra.mxu0 1.0
        %1319 = vmatpush.msra.mxu0 1.0
        %1320 = vmatpush.msra.mxu0 1.0
        %1321 = vmatpush.msra.mxu0 1.0
        %1322 = vmatpush.msra.mxu0 1.0
        %1323 = vmatmul.f32.gmra.mxu0 %v1285
        %v1324 = vpop.f32.mrf.mxu0
        %v1325 = vadd.f32 0.0, %v1324
        %1326 = vdwg.mxu0
        %vm1327 = vcmp.gt.f32.partialorder %v1325, 0.0
        %v1328 = vmax.f32 %v1325, 1.0
        %1330 = vset.pattern.permute.xlu0 0
        %1331 = vperm.xlu0 %1330, %v1328
        %v1332 = vpop.permute.xlu0 %1331
        %v1334 = vrcp.pop %v1332
        %v1335 = vmul.f32 %v1332, %v1334
        %v1336 = vsub.f32 1.0, %v1335
        %v1337 = vmul.f32 %v1334, %v1336
        %v1338 = vadd.f32 %v1334, %v1337
        %vm1339 = vweird.f32 %v1332
        %vm1340 = vweird.f32 %v1334
        %vm1341 = vmor %vm1339, %vm1340
        %v1342 = vsel %vm1341, %v1334, %v1338
        %v1343 = vand.u32 2147483647, %v1332
        %vm1344 = vcmp.eq.f32.partialorder %v1343, 8.507059e+37
        %v1345 = vand.u32 %v1332, 2147483648
        %v1346 = vor.u32 1.1754944e-38, %v1345
        %v1347 = vsel %vm1344, %v1346, %v1342
        %v1348 = vmul.f32 %v1305, %v1347
        %v1349 = vsel %vm1327, 1, 0
        %1350 = vset.pattern.permute.xlu0 0
        %1351 = vperm.xlu0 %1350, %v1349
        %v1352 = vpop.permute.xlu0 %1351
        %vm1353 = vcmp.eq.s32.totalorder %v1352, 1
        %v1354 = vsel %vm1353, %v1348, %v982
        %v1356 = vsel %vm210, %v1354, 0
        %1358 = vmatpush.xpose.msra.mxu0 0.0
        %1359 = vmatpush.xpose.msra.mxu0 0.0
        %1360 = vmatpush.xpose.msra.mxu0 0.0
        %1361 = vmatpush.xpose.msra.mxu0 0.0
        %1362 = vmatpush.xpose.msra.mxu0 0.0
        %1363 = vmatpush.xpose.msra.mxu0 0.0
        %1364 = vmatpush.xpose.msra.mxu0 0.0
        %1365 = vmatpush.xpose.msra.mxu0 0.0
        %1366 = vmatpush.xpose.msra.mxu0 0.0
        %1367 = vmatpush.xpose.msra.mxu0 0.0
        %1368 = vmatpush.xpose.msra.mxu0 0.0
        %1369 = vmatpush.xpose.msra.mxu0 0.0
        %1370 = vmatpush.xpose.msra.mxu0 0.0
        %1371 = vmatpush.xpose.msra.mxu0 0.0
        %1372 = vmatpush.xpose.msra.mxu0 0.0
        %1373 = vmatpush.xpose.msra.mxu0 %v1356
        %1374 = vmatmul.f32.gmra.mxu0 %v212
        %v1375 = vpop.f32.mrf.mxu0
        %v1376 = vadd.f32 0.0, %v1375
        %1377 = vmatmul.f32.gmra.mxu0 %v215
        %v1378 = vpop.f32.mrf.mxu0
        %v1379 = vadd.f32 0.0, %v1378
        %1380 = vmatmul.f32.gmra.mxu0 %v218
        %v1381 = vpop.f32.mrf.mxu0
        %v1382 = vadd.f32 0.0, %v1381
        %1383 = vmatmul.f32.gmra.mxu0 %v221
        %v1384 = vpop.f32.mrf.mxu0
        %v1385 = vadd.f32 0.0, %v1384
        %1386 = vmatmul.f32.gmra.mxu0 %v224
        %v1387 = vpop.f32.mrf.mxu0
        %v1388 = vadd.f32 0.0, %v1387
        %1389 = vmatmul.f32.gmra.mxu0 %v227
        %v1390 = vpop.f32.mrf.mxu0
        %v1391 = vadd.f32 0.0, %v1390
        %1392 = vmatmul.f32.gmra.mxu0 %v230
        %v1393 = vpop.f32.mrf.mxu0
        %v1394 = vadd.f32 0.0, %v1393
        %1395 = vmatmul.f32.gmra.mxu0 %v233
        %v1396 = vpop.f32.mrf.mxu0
        %v1397 = vadd.f32 0.0, %v1396
        %1398 = vdwg.mxu0
        %v1399 = vmul.f32 %v1354, %v1354
        %v1401 = vsel %vm210, %v1399, 0
        %1403 = vmatpush.xpose.msra.mxu0 0.0
        %1404 = vmatpush.xpose.msra.mxu0 0.0
        %1405 = vmatpush.xpose.msra.mxu0 0.0
        %1406 = vmatpush.xpose.msra.mxu0 0.0
        %1407 = vmatpush.xpose.msra.mxu0 0.0
        %1408 = vmatpush.xpose.msra.mxu0 0.0
        %1409 = vmatpush.xpose.msra.mxu0 0.0
        %1410 = vmatpush.xpose.msra.mxu0 0.0
        %1411 = vmatpush.xpose.msra.mxu0 0.0
        %1412 = vmatpush.xpose.msra.mxu0 0.0
        %1413 = vmatpush.xpose.msra.mxu0 0.0
        %1414 = vmatpush.xpose.msra.mxu0 0.0
        %1415 = vmatpush.xpose.msra.mxu0 0.0
        %1416 = vmatpush.xpose.msra.mxu0 0.0
        %1417 = vmatpush.xpose.msra.mxu0 0.0
        %1418 = vmatpush.xpose.msra.mxu0 %v1401
        %1419 = vmatmul.f32.gmra.mxu0 %v281
        %v1420 = vpop.f32.mrf.mxu0
        %v1421 = vadd.f32 0.0, %v1420
        %1422 = vdwg.mxu0
        %v1423 = vmul.f32 %v1376, 2.0
        %v1424 = vmul.f32 %v1379, 2.0
        %v1425 = vmul.f32 %v1382, 2.0
        %v1426 = vmul.f32 %v1385, 2.0
        %v1427 = vmul.f32 %v1388, 2.0
        %v1428 = vmul.f32 %v1391, 2.0
        %v1429 = vmul.f32 %v1394, 2.0
        %v1430 = vmul.f32 %v1397, 2.0
        %v1431 = vperm.slane %v1421, 0
        %v1432 = vsub.f32 %v1431, %v1423
        %v1433 = vsub.f32 %v1431, %v1424
        %v1434 = vsub.f32 %v1431, %v1425
        %v1435 = vsub.f32 %v1431, %v1426
        %v1436 = vsub.f32 %v1431, %v1427
        %v1437 = vsub.f32 %v1431, %v1428
        %v1438 = vsub.f32 %v1431, %v1429
        %v1439 = vsub.f32 %v1431, %v1430
        %v1440 = vsel %vm210, %v1432, inf
        %1441 = vmin.xlane.f32.xlu0 %v1440
        %v1442 = vpop.xlane.xlu0 %1441
        %v1443 = vsel %vm210, %v1433, inf
        %1444 = vmin.xlane.f32.xlu0 %v1443
        %v1445 = vpop.xlane.xlu0 %1444
        %v1446 = vsel %vm210, %v1434, inf
        %1447 = vmin.xlane.f32.xlu0 %v1446
        %v1448 = vpop.xlane.xlu0 %1447
        %v1449 = vsel %vm210, %v1435, inf
        %1450 = vmin.xlane.f32.xlu0 %v1449
        %v1451 = vpop.xlane.xlu0 %1450
        %v1452 = vsel %vm210, %v1436, inf
        %1453 = vmin.xlane.f32.xlu0 %v1452
        %v1454 = vpop.xlane.xlu0 %1453
        %v1455 = vsel %vm210, %v1437, inf
        %1456 = vmin.xlane.f32.xlu0 %v1455
        %v1457 = vpop.xlane.xlu0 %1456
        %v1458 = vsel %vm210, %v1438, inf
        %1459 = vmin.xlane.f32.xlu0 %v1458
        %v1460 = vpop.xlane.xlu0 %1459
        %v1461 = vsel %vm210, %v1439, inf
        %1462 = vmin.xlane.f32.xlu0 %v1461
        %v1463 = vpop.xlane.xlu0 %1462
        %vm1464 = vcmp.le.f32.partialorder %v1432, %v1442
        %vm1465 = vcmp.le.f32.partialorder %v1433, %v1445
        %vm1466 = vcmp.le.f32.partialorder %v1434, %v1448
        %vm1467 = vcmp.le.f32.partialorder %v1435, %v1451
        %vm1468 = vcmp.le.f32.partialorder %v1436, %v1454
        %vm1469 = vcmp.le.f32.partialorder %v1437, %v1457
        %vm1470 = vcmp.le.f32.partialorder %v1438, %v1460
        %vm1471 = vcmp.le.f32.partialorder %v1439, %v1463
        %v1472 = vsel %vm1464, %v208, 8
        %v1473 = vsel %vm1465, %v208, 8
        %v1474 = vsel %vm1466, %v208, 8
        %v1475 = vsel %vm1467, %v208, 8
        %v1476 = vsel %vm1468, %v208, 8
        %v1477 = vsel %vm1469, %v208, 8
        %v1478 = vsel %vm1470, %v208, 8
        %v1479 = vsel %vm1471, %v208, 8
        %v1480 = vsel %vm210, %v1472, 2147483647
        %v1481 = vand.u32 %v1480, 65535
        %v1482 = vshra.s32 %v1480, 16
        %v1483 = vcvt.s32.f32 %v1481
        %v1484 = vcvt.s32.f32 %v1482
        %1485 = vmin.xlane.f32.xlu0 %v1484
        %v1486 = vpop.xlane.xlu0 %1485
        %vm1487 = vcmp.eq.f32.partialorder %v1484, %v1486
        %v1488 = vsel %vm1487, %v1483, inf
        %1489 = vmin.xlane.f32.xlu0 %v1488
        %v1490 = vpop.xlane.xlu0 %1489
        %v1491 = vcvt.f32.s32 %v1490
        %v1492 = vcvt.f32.s32 %v1486
        %v1493 = vshll.u32 %v1492, 16
        %v1494 = vadd.s32 %v1493, %v1491
        %v1495 = vsel %vm210, %v1473, 2147483647
        %v1496 = vand.u32 %v1495, 65535
        %v1497 = vshra.s32 %v1495, 16
        %v1498 = vcvt.s32.f32 %v1496
        %v1499 = vcvt.s32.f32 %v1497
        %1500 = vmin.xlane.f32.xlu0 %v1499
        %v1501 = vpop.xlane.xlu0 %1500
        %vm1502 = vcmp.eq.f32.partialorder %v1499, %v1501
        %v1503 = vsel %vm1502, %v1498, inf
        %1504 = vmin.xlane.f32.xlu0 %v1503
        %v1505 = vpop.xlane.xlu0 %1504
        %v1506 = vcvt.f32.s32 %v1505
        %v1507 = vcvt.f32.s32 %v1501
        %v1508 = vshll.u32 %v1507, 16
        %v1509 = vadd.s32 %v1508, %v1506
        %v1510 = vsel %vm210, %v1474, 2147483647
        %v1511 = vand.u32 %v1510, 65535
        %v1512 = vshra.s32 %v1510, 16
        %v1513 = vcvt.s32.f32 %v1511
        %v1514 = vcvt.s32.f32 %v1512
        %1515 = vmin.xlane.f32.xlu0 %v1514
        %v1516 = vpop.xlane.xlu0 %1515
        %vm1517 = vcmp.eq.f32.partialorder %v1514, %v1516
        %v1518 = vsel %vm1517, %v1513, inf
        %1519 = vmin.xlane.f32.xlu0 %v1518
        %v1520 = vpop.xlane.xlu0 %1519
        %v1521 = vcvt.f32.s32 %v1520
        %v1522 = vcvt.f32.s32 %v1516
        %v1523 = vshll.u32 %v1522, 16
        %v1524 = vadd.s32 %v1523, %v1521
        %v1525 = vsel %vm210, %v1475, 2147483647
        %v1526 = vand.u32 %v1525, 65535
        %v1527 = vshra.s32 %v1525, 16
        %v1528 = vcvt.s32.f32 %v1526
        %v1529 = vcvt.s32.f32 %v1527
        %1530 = vmin.xlane.f32.xlu0 %v1529
        %v1531 = vpop.xlane.xlu0 %1530
        %vm1532 = vcmp.eq.f32.partialorder %v1529, %v1531
        %v1533 = vsel %vm1532, %v1528, inf
        %1534 = vmin.xlane.f32.xlu0 %v1533
        %v1535 = vpop.xlane.xlu0 %1534
        %v1536 = vcvt.f32.s32 %v1535
        %v1537 = vcvt.f32.s32 %v1531
        %v1538 = vshll.u32 %v1537, 16
        %v1539 = vadd.s32 %v1538, %v1536
        %v1540 = vsel %vm210, %v1476, 2147483647
        %v1541 = vand.u32 %v1540, 65535
        %v1542 = vshra.s32 %v1540, 16
        %v1543 = vcvt.s32.f32 %v1541
        %v1544 = vcvt.s32.f32 %v1542
        %1545 = vmin.xlane.f32.xlu0 %v1544
        %v1546 = vpop.xlane.xlu0 %1545
        %vm1547 = vcmp.eq.f32.partialorder %v1544, %v1546
        %v1548 = vsel %vm1547, %v1543, inf
        %1549 = vmin.xlane.f32.xlu0 %v1548
        %v1550 = vpop.xlane.xlu0 %1549
        %v1551 = vcvt.f32.s32 %v1550
        %v1552 = vcvt.f32.s32 %v1546
        %v1553 = vshll.u32 %v1552, 16
        %v1554 = vadd.s32 %v1553, %v1551
        %v1555 = vsel %vm210, %v1477, 2147483647
        %v1556 = vand.u32 %v1555, 65535
        %v1557 = vshra.s32 %v1555, 16
        %v1558 = vcvt.s32.f32 %v1556
        %v1559 = vcvt.s32.f32 %v1557
        %1560 = vmin.xlane.f32.xlu0 %v1559
        %v1561 = vpop.xlane.xlu0 %1560
        %vm1562 = vcmp.eq.f32.partialorder %v1559, %v1561
        %v1563 = vsel %vm1562, %v1558, inf
        %1564 = vmin.xlane.f32.xlu0 %v1563
        %v1565 = vpop.xlane.xlu0 %1564
        %v1566 = vcvt.f32.s32 %v1565
        %v1567 = vcvt.f32.s32 %v1561
        %v1568 = vshll.u32 %v1567, 16
        %v1569 = vadd.s32 %v1568, %v1566
        %v1570 = vsel %vm210, %v1478, 2147483647
        %v1571 = vand.u32 %v1570, 65535
        %v1572 = vshra.s32 %v1570, 16
        %v1573 = vcvt.s32.f32 %v1571
        %v1574 = vcvt.s32.f32 %v1572
        %1575 = vmin.xlane.f32.xlu0 %v1574
        %v1576 = vpop.xlane.xlu0 %1575
        %vm1577 = vcmp.eq.f32.partialorder %v1574, %v1576
        %v1578 = vsel %vm1577, %v1573, inf
        %1579 = vmin.xlane.f32.xlu0 %v1578
        %v1580 = vpop.xlane.xlu0 %1579
        %v1581 = vcvt.f32.s32 %v1580
        %v1582 = vcvt.f32.s32 %v1576
        %v1583 = vshll.u32 %v1582, 16
        %v1584 = vadd.s32 %v1583, %v1581
        %v1585 = vsel %vm210, %v1479, 2147483647
        %v1586 = vand.u32 %v1585, 65535
        %v1587 = vshra.s32 %v1585, 16
        %v1588 = vcvt.s32.f32 %v1586
        %v1589 = vcvt.s32.f32 %v1587
        %1590 = vmin.xlane.f32.xlu0 %v1589
        %v1591 = vpop.xlane.xlu0 %1590
        %vm1592 = vcmp.eq.f32.partialorder %v1589, %v1591
        %v1593 = vsel %vm1592, %v1588, inf
        %1594 = vmin.xlane.f32.xlu0 %v1593
        %v1595 = vpop.xlane.xlu0 %1594
        %v1596 = vcvt.f32.s32 %v1595
        %v1597 = vcvt.f32.s32 %v1591
        %v1598 = vshll.u32 %v1597, 16
        %v1599 = vadd.s32 %v1598, %v1596
        %vm1600 = vcmp.eq.s32.totalorder %v1494, %v208
        %vm1601 = vcmp.eq.s32.totalorder %v1509, %v208
        %vm1602 = vcmp.eq.s32.totalorder %v1524, %v208
        %vm1603 = vcmp.eq.s32.totalorder %v1539, %v208
        %vm1604 = vcmp.eq.s32.totalorder %v1554, %v208
        %vm1605 = vcmp.eq.s32.totalorder %v1569, %v208
        %vm1606 = vcmp.eq.s32.totalorder %v1584, %v208
        %vm1607 = vcmp.eq.s32.totalorder %v1599, %v208
        %v1608 = vsel %vm1600, 1, 0
        %v1609 = vsel %vm1601, 1, 0
        %v1610 = vsel %vm1602, 1, 0
        %v1611 = vsel %vm1603, 1, 0
        %v1612 = vsel %vm1604, 1, 0
        %v1613 = vsel %vm1605, 1, 0
        %v1614 = vsel %vm1606, 1, 0
        %v1615 = vsel %vm1607, 1, 0
        %v1616 = vcvt.s32.f32 %v1608
        %v1617 = vcvt.s32.f32 %v1609
        %v1618 = vcvt.s32.f32 %v1610
        %v1619 = vcvt.s32.f32 %v1611
        %v1620 = vcvt.s32.f32 %v1612
        %v1621 = vcvt.s32.f32 %v1613
        %v1622 = vcvt.s32.f32 %v1614
        %v1623 = vcvt.s32.f32 %v1615
        %1624 = vxpose.xlu0.b32.start [1/16] %v1616, 128
        %1625 = vxpose.xlu0.b32.cont [2/16] %v1617, 128
        %1626 = vxpose.xlu0.b32.cont [3/16] %v1618, 128
        %1627 = vxpose.xlu0.b32.cont [4/16] %v1619, 128
        %1628 = vxpose.xlu0.b32.cont [5/16] %v1620, 128
        %1629 = vxpose.xlu0.b32.cont [6/16] %v1621, 128
        %1630 = vxpose.xlu0.b32.cont [7/16] %v1622, 128
        %1631 = vxpose.xlu0.b32.cont [8/16] %v1623, 128
        %1632 = vxpose.xlu0.b32.cont [9/16] 0.0, 128
        %1633 = vxpose.xlu0.b32.cont [10/16] 0.0, 128
        %1634 = vxpose.xlu0.b32.cont [11/16] 0.0, 128
        %1635 = vxpose.xlu0.b32.cont [12/16] 0.0, 128
        %1636 = vxpose.xlu0.b32.cont [13/16] 0.0, 128
        %1637 = vxpose.xlu0.b32.cont [14/16] 0.0, 128
        %1638 = vxpose.xlu0.b32.cont [15/16] 0.0, 128
        %1639 = vxpose.xlu0.b32.end [16/16] 0.0, 128
        %v1640 = vpop.trf.xlu0
        %v1641 = vpop.trf.xlu0
        %v1642 = vpop.trf.xlu0
        %v1643 = vpop.trf.xlu0
        %v1644 = vpop.trf.xlu0
        %v1645 = vpop.trf.xlu0
        %v1646 = vpop.trf.xlu0
        %v1647 = vpop.trf.xlu0
        %v1648 = vpop.trf.xlu0
        %v1649 = vpop.trf.xlu0
        %v1650 = vpop.trf.xlu0
        %v1651 = vpop.trf.xlu0
        %v1652 = vpop.trf.xlu0
        %v1653 = vpop.trf.xlu0
        %v1654 = vpop.trf.xlu0
        %v1655 = vpop.trf.xlu0
        %v1657 = vsel %vm539, %v1640, 0
        %1659 = vmatpush.msra.mxu0 0.0
        %1660 = vmatpush.msra.mxu0 0.0
        %1661 = vmatpush.msra.mxu0 0.0
        %1662 = vmatpush.msra.mxu0 0.0
        %1663 = vmatpush.msra.mxu0 0.0
        %1664 = vmatpush.msra.mxu0 0.0
        %1665 = vmatpush.msra.mxu0 0.0
        %1666 = vmatpush.msra.mxu0 0.0
        %1667 = vmatpush.msra.mxu0 %v206
        %1668 = vmatpush.msra.mxu0 %v205
        %1669 = vmatpush.msra.mxu0 %v204
        %1670 = vmatpush.msra.mxu0 %v203
        %1671 = vmatpush.msra.mxu0 %v202
        %1672 = vmatpush.msra.mxu0 %v201
        %1673 = vmatpush.msra.mxu0 %v200
        %1674 = vmatpush.msra.mxu0 %v199
        %1675 = vmatmul.f32.gmra.mxu0 %v1657
        %v1676 = vpop.f32.mrf.mxu0
        %v1677 = vadd.f32 0.0, %v1676
        %1678 = vdwg.mxu0
        %1679 = vmatpush.msra.mxu0 0.0
        %1680 = vmatpush.msra.mxu0 0.0
        %1681 = vmatpush.msra.mxu0 0.0
        %1682 = vmatpush.msra.mxu0 0.0
        %1683 = vmatpush.msra.mxu0 0.0
        %1684 = vmatpush.msra.mxu0 0.0
        %1685 = vmatpush.msra.mxu0 0.0
        %1686 = vmatpush.msra.mxu0 0.0
        %1687 = vmatpush.msra.mxu0 1.0
        %1688 = vmatpush.msra.mxu0 1.0
        %1689 = vmatpush.msra.mxu0 1.0
        %1690 = vmatpush.msra.mxu0 1.0
        %1691 = vmatpush.msra.mxu0 1.0
        %1692 = vmatpush.msra.mxu0 1.0
        %1693 = vmatpush.msra.mxu0 1.0
        %1694 = vmatpush.msra.mxu0 1.0
        %1695 = vmatmul.f32.gmra.mxu0 %v1657
        %v1696 = vpop.f32.mrf.mxu0
        %v1697 = vadd.f32 0.0, %v1696
        %1698 = vdwg.mxu0
        %vm1699 = vcmp.gt.f32.partialorder %v1697, 0.0
        %v1700 = vmax.f32 %v1697, 1.0
        %1702 = vset.pattern.permute.xlu0 0
        %1703 = vperm.xlu0 %1702, %v1700
        %v1704 = vpop.permute.xlu0 %1703
        %v1706 = vrcp.pop %v1704
        %v1707 = vmul.f32 %v1704, %v1706
        %v1708 = vsub.f32 1.0, %v1707
        %v1709 = vmul.f32 %v1706, %v1708
        %v1710 = vadd.f32 %v1706, %v1709
        %vm1711 = vweird.f32 %v1704
        %vm1712 = vweird.f32 %v1706
        %vm1713 = vmor %vm1711, %vm1712
        %v1714 = vsel %vm1713, %v1706, %v1710
        %v1715 = vand.u32 2147483647, %v1704
        %vm1716 = vcmp.eq.f32.partialorder %v1715, 8.507059e+37
        %v1717 = vand.u32 %v1704, 2147483648
        %v1718 = vor.u32 1.1754944e-38, %v1717
        %v1719 = vsel %vm1716, %v1718, %v1714
        %v1720 = vmul.f32 %v1677, %v1719
        %v1721 = vsel %vm1699, 1, 0
        %1722 = vset.pattern.permute.xlu0 0
        %1723 = vperm.xlu0 %1722, %v1721
        %v1724 = vpop.permute.xlu0 %1723
        %vm1725 = vcmp.eq.s32.totalorder %v1724, 1
        %v1726 = vsel %vm1725, %v1720, %v1354
        %v1728 = vsel %vm210, %v1726, 0
        %1730 = vmatpush.xpose.msra.mxu0 0.0
        %1731 = vmatpush.xpose.msra.mxu0 0.0
        %1732 = vmatpush.xpose.msra.mxu0 0.0
        %1733 = vmatpush.xpose.msra.mxu0 0.0
        %1734 = vmatpush.xpose.msra.mxu0 0.0
        %1735 = vmatpush.xpose.msra.mxu0 0.0
        %1736 = vmatpush.xpose.msra.mxu0 0.0
        %1737 = vmatpush.xpose.msra.mxu0 0.0
        %1738 = vmatpush.xpose.msra.mxu0 0.0
        %1739 = vmatpush.xpose.msra.mxu0 0.0
        %1740 = vmatpush.xpose.msra.mxu0 0.0
        %1741 = vmatpush.xpose.msra.mxu0 0.0
        %1742 = vmatpush.xpose.msra.mxu0 0.0
        %1743 = vmatpush.xpose.msra.mxu0 0.0
        %1744 = vmatpush.xpose.msra.mxu0 0.0
        %1745 = vmatpush.xpose.msra.mxu0 %v1728
        %1746 = vmatmul.f32.gmra.mxu0 %v212
        %v1747 = vpop.f32.mrf.mxu0
        %v1748 = vadd.f32 0.0, %v1747
        %1749 = vmatmul.f32.gmra.mxu0 %v215
        %v1750 = vpop.f32.mrf.mxu0
        %v1751 = vadd.f32 0.0, %v1750
        %1752 = vmatmul.f32.gmra.mxu0 %v218
        %v1753 = vpop.f32.mrf.mxu0
        %v1754 = vadd.f32 0.0, %v1753
        %1755 = vmatmul.f32.gmra.mxu0 %v221
        %v1756 = vpop.f32.mrf.mxu0
        %v1757 = vadd.f32 0.0, %v1756
        %1758 = vmatmul.f32.gmra.mxu0 %v224
        %v1759 = vpop.f32.mrf.mxu0
        %v1760 = vadd.f32 0.0, %v1759
        %1761 = vmatmul.f32.gmra.mxu0 %v227
        %v1762 = vpop.f32.mrf.mxu0
        %v1763 = vadd.f32 0.0, %v1762
        %1764 = vmatmul.f32.gmra.mxu0 %v230
        %v1765 = vpop.f32.mrf.mxu0
        %v1766 = vadd.f32 0.0, %v1765
        %1767 = vmatmul.f32.gmra.mxu0 %v233
        %v1768 = vpop.f32.mrf.mxu0
        %v1769 = vadd.f32 0.0, %v1768
        %1770 = vdwg.mxu0
        %v1771 = vmul.f32 %v1726, %v1726
        %v1773 = vsel %vm210, %v1771, 0
        %1775 = vmatpush.xpose.msra.mxu0 0.0
        %1776 = vmatpush.xpose.msra.mxu0 0.0
        %1777 = vmatpush.xpose.msra.mxu0 0.0
        %1778 = vmatpush.xpose.msra.mxu0 0.0
        %1779 = vmatpush.xpose.msra.mxu0 0.0
        %1780 = vmatpush.xpose.msra.mxu0 0.0
        %1781 = vmatpush.xpose.msra.mxu0 0.0
        %1782 = vmatpush.xpose.msra.mxu0 0.0
        %1783 = vmatpush.xpose.msra.mxu0 0.0
        %1784 = vmatpush.xpose.msra.mxu0 0.0
        %1785 = vmatpush.xpose.msra.mxu0 0.0
        %1786 = vmatpush.xpose.msra.mxu0 0.0
        %1787 = vmatpush.xpose.msra.mxu0 0.0
        %1788 = vmatpush.xpose.msra.mxu0 0.0
        %1789 = vmatpush.xpose.msra.mxu0 0.0
        %1790 = vmatpush.xpose.msra.mxu0 %v1773
        %1791 = vmatmul.f32.gmra.mxu0 %v281
        %v1792 = vpop.f32.mrf.mxu0
        %v1793 = vadd.f32 0.0, %v1792
        %1794 = vdwg.mxu0
        %v1795 = vmul.f32 %v1748, 2.0
        %v1796 = vmul.f32 %v1751, 2.0
        %v1797 = vmul.f32 %v1754, 2.0
        %v1798 = vmul.f32 %v1757, 2.0
        %v1799 = vmul.f32 %v1760, 2.0
        %v1800 = vmul.f32 %v1763, 2.0
        %v1801 = vmul.f32 %v1766, 2.0
        %v1802 = vmul.f32 %v1769, 2.0
        %v1803 = vperm.slane %v1793, 0
        %v1804 = vsub.f32 %v1803, %v1795
        %v1805 = vsub.f32 %v1803, %v1796
        %v1806 = vsub.f32 %v1803, %v1797
        %v1807 = vsub.f32 %v1803, %v1798
        %v1808 = vsub.f32 %v1803, %v1799
        %v1809 = vsub.f32 %v1803, %v1800
        %v1810 = vsub.f32 %v1803, %v1801
        %v1811 = vsub.f32 %v1803, %v1802
        %v1812 = vsel %vm210, %v1804, inf
        %1813 = vmin.xlane.f32.xlu0 %v1812
        %v1814 = vpop.xlane.xlu0 %1813
        %v1815 = vsel %vm210, %v1805, inf
        %1816 = vmin.xlane.f32.xlu0 %v1815
        %v1817 = vpop.xlane.xlu0 %1816
        %v1818 = vsel %vm210, %v1806, inf
        %1819 = vmin.xlane.f32.xlu0 %v1818
        %v1820 = vpop.xlane.xlu0 %1819
        %v1821 = vsel %vm210, %v1807, inf
        %1822 = vmin.xlane.f32.xlu0 %v1821
        %v1823 = vpop.xlane.xlu0 %1822
        %v1824 = vsel %vm210, %v1808, inf
        %1825 = vmin.xlane.f32.xlu0 %v1824
        %v1826 = vpop.xlane.xlu0 %1825
        %v1827 = vsel %vm210, %v1809, inf
        %1828 = vmin.xlane.f32.xlu0 %v1827
        %v1829 = vpop.xlane.xlu0 %1828
        %v1830 = vsel %vm210, %v1810, inf
        %1831 = vmin.xlane.f32.xlu0 %v1830
        %v1832 = vpop.xlane.xlu0 %1831
        %v1833 = vsel %vm210, %v1811, inf
        %1834 = vmin.xlane.f32.xlu0 %v1833
        %v1835 = vpop.xlane.xlu0 %1834
        %vm1836 = vcmp.le.f32.partialorder %v1804, %v1814
        %vm1837 = vcmp.le.f32.partialorder %v1805, %v1817
        %vm1838 = vcmp.le.f32.partialorder %v1806, %v1820
        %vm1839 = vcmp.le.f32.partialorder %v1807, %v1823
        %vm1840 = vcmp.le.f32.partialorder %v1808, %v1826
        %vm1841 = vcmp.le.f32.partialorder %v1809, %v1829
        %vm1842 = vcmp.le.f32.partialorder %v1810, %v1832
        %vm1843 = vcmp.le.f32.partialorder %v1811, %v1835
        %v1844 = vsel %vm1836, %v208, 8
        %v1845 = vsel %vm1837, %v208, 8
        %v1846 = vsel %vm1838, %v208, 8
        %v1847 = vsel %vm1839, %v208, 8
        %v1848 = vsel %vm1840, %v208, 8
        %v1849 = vsel %vm1841, %v208, 8
        %v1850 = vsel %vm1842, %v208, 8
        %v1851 = vsel %vm1843, %v208, 8
        %v1852 = vsel %vm210, %v1844, 2147483647
        %v1853 = vand.u32 %v1852, 65535
        %v1854 = vshra.s32 %v1852, 16
        %v1855 = vcvt.s32.f32 %v1853
        %v1856 = vcvt.s32.f32 %v1854
        %1857 = vmin.xlane.f32.xlu0 %v1856
        %v1858 = vpop.xlane.xlu0 %1857
        %vm1859 = vcmp.eq.f32.partialorder %v1856, %v1858
        %v1860 = vsel %vm1859, %v1855, inf
        %1861 = vmin.xlane.f32.xlu0 %v1860
        %v1862 = vpop.xlane.xlu0 %1861
        %v1863 = vcvt.f32.s32 %v1862
        %v1864 = vcvt.f32.s32 %v1858
        %v1865 = vshll.u32 %v1864, 16
        %v1866 = vadd.s32 %v1865, %v1863
        %v1867 = vsel %vm210, %v1845, 2147483647
        %v1868 = vand.u32 %v1867, 65535
        %v1869 = vshra.s32 %v1867, 16
        %v1870 = vcvt.s32.f32 %v1868
        %v1871 = vcvt.s32.f32 %v1869
        %1872 = vmin.xlane.f32.xlu0 %v1871
        %v1873 = vpop.xlane.xlu0 %1872
        %vm1874 = vcmp.eq.f32.partialorder %v1871, %v1873
        %v1875 = vsel %vm1874, %v1870, inf
        %1876 = vmin.xlane.f32.xlu0 %v1875
        %v1877 = vpop.xlane.xlu0 %1876
        %v1878 = vcvt.f32.s32 %v1877
        %v1879 = vcvt.f32.s32 %v1873
        %v1880 = vshll.u32 %v1879, 16
        %v1881 = vadd.s32 %v1880, %v1878
        %v1882 = vsel %vm210, %v1846, 2147483647
        %v1883 = vand.u32 %v1882, 65535
        %v1884 = vshra.s32 %v1882, 16
        %v1885 = vcvt.s32.f32 %v1883
        %v1886 = vcvt.s32.f32 %v1884
        %1887 = vmin.xlane.f32.xlu0 %v1886
        %v1888 = vpop.xlane.xlu0 %1887
        %vm1889 = vcmp.eq.f32.partialorder %v1886, %v1888
        %v1890 = vsel %vm1889, %v1885, inf
        %1891 = vmin.xlane.f32.xlu0 %v1890
        %v1892 = vpop.xlane.xlu0 %1891
        %v1893 = vcvt.f32.s32 %v1892
        %v1894 = vcvt.f32.s32 %v1888
        %v1895 = vshll.u32 %v1894, 16
        %v1896 = vadd.s32 %v1895, %v1893
        %v1897 = vsel %vm210, %v1847, 2147483647
        %v1898 = vand.u32 %v1897, 65535
        %v1899 = vshra.s32 %v1897, 16
        %v1900 = vcvt.s32.f32 %v1898
        %v1901 = vcvt.s32.f32 %v1899
        %1902 = vmin.xlane.f32.xlu0 %v1901
        %v1903 = vpop.xlane.xlu0 %1902
        %vm1904 = vcmp.eq.f32.partialorder %v1901, %v1903
        %v1905 = vsel %vm1904, %v1900, inf
        %1906 = vmin.xlane.f32.xlu0 %v1905
        %v1907 = vpop.xlane.xlu0 %1906
        %v1908 = vcvt.f32.s32 %v1907
        %v1909 = vcvt.f32.s32 %v1903
        %v1910 = vshll.u32 %v1909, 16
        %v1911 = vadd.s32 %v1910, %v1908
        %v1912 = vsel %vm210, %v1848, 2147483647
        %v1913 = vand.u32 %v1912, 65535
        %v1914 = vshra.s32 %v1912, 16
        %v1915 = vcvt.s32.f32 %v1913
        %v1916 = vcvt.s32.f32 %v1914
        %1917 = vmin.xlane.f32.xlu0 %v1916
        %v1918 = vpop.xlane.xlu0 %1917
        %vm1919 = vcmp.eq.f32.partialorder %v1916, %v1918
        %v1920 = vsel %vm1919, %v1915, inf
        %1921 = vmin.xlane.f32.xlu0 %v1920
        %v1922 = vpop.xlane.xlu0 %1921
        %v1923 = vcvt.f32.s32 %v1922
        %v1924 = vcvt.f32.s32 %v1918
        %v1925 = vshll.u32 %v1924, 16
        %v1926 = vadd.s32 %v1925, %v1923
        %v1927 = vsel %vm210, %v1849, 2147483647
        %v1928 = vand.u32 %v1927, 65535
        %v1929 = vshra.s32 %v1927, 16
        %v1930 = vcvt.s32.f32 %v1928
        %v1931 = vcvt.s32.f32 %v1929
        %1932 = vmin.xlane.f32.xlu0 %v1931
        %v1933 = vpop.xlane.xlu0 %1932
        %vm1934 = vcmp.eq.f32.partialorder %v1931, %v1933
        %v1935 = vsel %vm1934, %v1930, inf
        %1936 = vmin.xlane.f32.xlu0 %v1935
        %v1937 = vpop.xlane.xlu0 %1936
        %v1938 = vcvt.f32.s32 %v1937
        %v1939 = vcvt.f32.s32 %v1933
        %v1940 = vshll.u32 %v1939, 16
        %v1941 = vadd.s32 %v1940, %v1938
        %v1942 = vsel %vm210, %v1850, 2147483647
        %v1943 = vand.u32 %v1942, 65535
        %v1944 = vshra.s32 %v1942, 16
        %v1945 = vcvt.s32.f32 %v1943
        %v1946 = vcvt.s32.f32 %v1944
        %1947 = vmin.xlane.f32.xlu0 %v1946
        %v1948 = vpop.xlane.xlu0 %1947
        %vm1949 = vcmp.eq.f32.partialorder %v1946, %v1948
        %v1950 = vsel %vm1949, %v1945, inf
        %1951 = vmin.xlane.f32.xlu0 %v1950
        %v1952 = vpop.xlane.xlu0 %1951
        %v1953 = vcvt.f32.s32 %v1952
        %v1954 = vcvt.f32.s32 %v1948
        %v1955 = vshll.u32 %v1954, 16
        %v1956 = vadd.s32 %v1955, %v1953
        %v1957 = vsel %vm210, %v1851, 2147483647
        %v1958 = vand.u32 %v1957, 65535
        %v1959 = vshra.s32 %v1957, 16
        %v1960 = vcvt.s32.f32 %v1958
        %v1961 = vcvt.s32.f32 %v1959
        %1962 = vmin.xlane.f32.xlu0 %v1961
        %v1963 = vpop.xlane.xlu0 %1962
        %vm1964 = vcmp.eq.f32.partialorder %v1961, %v1963
        %v1965 = vsel %vm1964, %v1960, inf
        %1966 = vmin.xlane.f32.xlu0 %v1965
        %v1967 = vpop.xlane.xlu0 %1966
        %v1968 = vcvt.f32.s32 %v1967
        %v1969 = vcvt.f32.s32 %v1963
        %v1970 = vshll.u32 %v1969, 16
        %v1971 = vadd.s32 %v1970, %v1968
        %vm1972 = vcmp.eq.s32.totalorder %v1866, %v208
        %vm1973 = vcmp.eq.s32.totalorder %v1881, %v208
        %vm1974 = vcmp.eq.s32.totalorder %v1896, %v208
        %vm1975 = vcmp.eq.s32.totalorder %v1911, %v208
        %vm1976 = vcmp.eq.s32.totalorder %v1926, %v208
        %vm1977 = vcmp.eq.s32.totalorder %v1941, %v208
        %vm1978 = vcmp.eq.s32.totalorder %v1956, %v208
        %vm1979 = vcmp.eq.s32.totalorder %v1971, %v208
        %v1980 = vsel %vm1972, 1, 0
        %v1981 = vsel %vm1973, 1, 0
        %v1982 = vsel %vm1974, 1, 0
        %v1983 = vsel %vm1975, 1, 0
        %v1984 = vsel %vm1976, 1, 0
        %v1985 = vsel %vm1977, 1, 0
        %v1986 = vsel %vm1978, 1, 0
        %v1987 = vsel %vm1979, 1, 0
        %v1988 = vcvt.s32.f32 %v1980
        %v1989 = vcvt.s32.f32 %v1981
        %v1990 = vcvt.s32.f32 %v1982
        %v1991 = vcvt.s32.f32 %v1983
        %v1992 = vcvt.s32.f32 %v1984
        %v1993 = vcvt.s32.f32 %v1985
        %v1994 = vcvt.s32.f32 %v1986
        %v1995 = vcvt.s32.f32 %v1987
        %1996 = vxpose.xlu0.b32.start [1/16] %v1988, 128
        %1997 = vxpose.xlu0.b32.cont [2/16] %v1989, 128
        %1998 = vxpose.xlu0.b32.cont [3/16] %v1990, 128
        %1999 = vxpose.xlu0.b32.cont [4/16] %v1991, 128
        %2000 = vxpose.xlu0.b32.cont [5/16] %v1992, 128
        %2001 = vxpose.xlu0.b32.cont [6/16] %v1993, 128
        %2002 = vxpose.xlu0.b32.cont [7/16] %v1994, 128
        %2003 = vxpose.xlu0.b32.cont [8/16] %v1995, 128
        %2004 = vxpose.xlu0.b32.cont [9/16] 0.0, 128
        %2005 = vxpose.xlu0.b32.cont [10/16] 0.0, 128
        %2006 = vxpose.xlu0.b32.cont [11/16] 0.0, 128
        %2007 = vxpose.xlu0.b32.cont [12/16] 0.0, 128
        %2008 = vxpose.xlu0.b32.cont [13/16] 0.0, 128
        %2009 = vxpose.xlu0.b32.cont [14/16] 0.0, 128
        %2010 = vxpose.xlu0.b32.cont [15/16] 0.0, 128
        %2011 = vxpose.xlu0.b32.end [16/16] 0.0, 128
        %v2012 = vpop.trf.xlu0
        %v2013 = vpop.trf.xlu0
        %v2014 = vpop.trf.xlu0
        %v2015 = vpop.trf.xlu0
        %v2016 = vpop.trf.xlu0
        %v2017 = vpop.trf.xlu0
        %v2018 = vpop.trf.xlu0
        %v2019 = vpop.trf.xlu0
        %v2020 = vpop.trf.xlu0
        %v2021 = vpop.trf.xlu0
        %v2022 = vpop.trf.xlu0
        %v2023 = vpop.trf.xlu0
        %v2024 = vpop.trf.xlu0
        %v2025 = vpop.trf.xlu0
        %v2026 = vpop.trf.xlu0
        %v2027 = vpop.trf.xlu0
        %v2029 = vsel %vm539, %v2012, 0
        %2031 = vmatpush.msra.mxu0 0.0
        %2032 = vmatpush.msra.mxu0 0.0
        %2033 = vmatpush.msra.mxu0 0.0
        %2034 = vmatpush.msra.mxu0 0.0
        %2035 = vmatpush.msra.mxu0 0.0
        %2036 = vmatpush.msra.mxu0 0.0
        %2037 = vmatpush.msra.mxu0 0.0
        %2038 = vmatpush.msra.mxu0 0.0
        %2039 = vmatpush.msra.mxu0 %v206
        %2040 = vmatpush.msra.mxu0 %v205
        %2041 = vmatpush.msra.mxu0 %v204
        %2042 = vmatpush.msra.mxu0 %v203
        %2043 = vmatpush.msra.mxu0 %v202
        %2044 = vmatpush.msra.mxu0 %v201
        %2045 = vmatpush.msra.mxu0 %v200
        %2046 = vmatpush.msra.mxu0 %v199
        %2047 = vmatmul.f32.gmra.mxu0 %v2029
        %v2048 = vpop.f32.mrf.mxu0
        %v2049 = vadd.f32 0.0, %v2048
        %2050 = vdwg.mxu0
        %2051 = vmatpush.msra.mxu0 0.0
        %2052 = vmatpush.msra.mxu0 0.0
        %2053 = vmatpush.msra.mxu0 0.0
        %2054 = vmatpush.msra.mxu0 0.0
        %2055 = vmatpush.msra.mxu0 0.0
        %2056 = vmatpush.msra.mxu0 0.0
        %2057 = vmatpush.msra.mxu0 0.0
        %2058 = vmatpush.msra.mxu0 0.0
        %2059 = vmatpush.msra.mxu0 1.0
        %2060 = vmatpush.msra.mxu0 1.0
        %2061 = vmatpush.msra.mxu0 1.0
        %2062 = vmatpush.msra.mxu0 1.0
        %2063 = vmatpush.msra.mxu0 1.0
        %2064 = vmatpush.msra.mxu0 1.0
        %2065 = vmatpush.msra.mxu0 1.0
        %2066 = vmatpush.msra.mxu0 1.0
        %2067 = vmatmul.f32.gmra.mxu0 %v2029
        %v2068 = vpop.f32.mrf.mxu0
        %v2069 = vadd.f32 0.0, %v2068
        %2070 = vdwg.mxu0
        %vm2071 = vcmp.gt.f32.partialorder %v2069, 0.0
        %v2072 = vmax.f32 %v2069, 1.0
        %2074 = vset.pattern.permute.xlu0 0
        %2075 = vperm.xlu0 %2074, %v2072
        %v2076 = vpop.permute.xlu0 %2075
        %v2078 = vrcp.pop %v2076
        %v2079 = vmul.f32 %v2076, %v2078
        %v2080 = vsub.f32 1.0, %v2079
        %v2081 = vmul.f32 %v2078, %v2080
        %v2082 = vadd.f32 %v2078, %v2081
        %vm2083 = vweird.f32 %v2076
        %vm2084 = vweird.f32 %v2078
        %vm2085 = vmor %vm2083, %vm2084
        %v2086 = vsel %vm2085, %v2078, %v2082
        %v2087 = vand.u32 2147483647, %v2076
        %vm2088 = vcmp.eq.f32.partialorder %v2087, 8.507059e+37
        %v2089 = vand.u32 %v2076, 2147483648
        %v2090 = vor.u32 1.1754944e-38, %v2089
        %v2091 = vsel %vm2088, %v2090, %v2086
        %v2092 = vmul.f32 %v2049, %v2091
        %v2093 = vsel %vm2071, 1, 0
        %2094 = vset.pattern.permute.xlu0 0
        %2095 = vperm.xlu0 %2094, %v2093
        %v2096 = vpop.permute.xlu0 %2095
        %vm2097 = vcmp.eq.s32.totalorder %v2096, 1
        %v2098 = vsel %vm2097, %v2092, %v1726
        %v2100 = vsel %vm210, %v2098, 0
        %2102 = vmatpush.xpose.msra.mxu0 0.0
        %2103 = vmatpush.xpose.msra.mxu0 0.0
        %2104 = vmatpush.xpose.msra.mxu0 0.0
        %2105 = vmatpush.xpose.msra.mxu0 0.0
        %2106 = vmatpush.xpose.msra.mxu0 0.0
        %2107 = vmatpush.xpose.msra.mxu0 0.0
        %2108 = vmatpush.xpose.msra.mxu0 0.0
        %2109 = vmatpush.xpose.msra.mxu0 0.0
        %2110 = vmatpush.xpose.msra.mxu0 0.0
        %2111 = vmatpush.xpose.msra.mxu0 0.0
        %2112 = vmatpush.xpose.msra.mxu0 0.0
        %2113 = vmatpush.xpose.msra.mxu0 0.0
        %2114 = vmatpush.xpose.msra.mxu0 0.0
        %2115 = vmatpush.xpose.msra.mxu0 0.0
        %2116 = vmatpush.xpose.msra.mxu0 0.0
        %2117 = vmatpush.xpose.msra.mxu0 %v2100
        %2118 = vmatmul.f32.gmra.mxu0 %v212
        %v2119 = vpop.f32.mrf.mxu0
        %v2120 = vadd.f32 0.0, %v2119
        %2121 = vmatmul.f32.gmra.mxu0 %v215
        %v2122 = vpop.f32.mrf.mxu0
        %v2123 = vadd.f32 0.0, %v2122
        %2124 = vmatmul.f32.gmra.mxu0 %v218
        %v2125 = vpop.f32.mrf.mxu0
        %v2126 = vadd.f32 0.0, %v2125
        %2127 = vmatmul.f32.gmra.mxu0 %v221
        %v2128 = vpop.f32.mrf.mxu0
        %v2129 = vadd.f32 0.0, %v2128
        %2130 = vmatmul.f32.gmra.mxu0 %v224
        %v2131 = vpop.f32.mrf.mxu0
        %v2132 = vadd.f32 0.0, %v2131
        %2133 = vmatmul.f32.gmra.mxu0 %v227
        %v2134 = vpop.f32.mrf.mxu0
        %v2135 = vadd.f32 0.0, %v2134
        %2136 = vmatmul.f32.gmra.mxu0 %v230
        %v2137 = vpop.f32.mrf.mxu0
        %v2138 = vadd.f32 0.0, %v2137
        %2139 = vmatmul.f32.gmra.mxu0 %v233
        %v2140 = vpop.f32.mrf.mxu0
        %v2141 = vadd.f32 0.0, %v2140
        %2142 = vdwg.mxu0
        %v2143 = vmul.f32 %v2098, %v2098
        %v2145 = vsel %vm210, %v2143, 0
        %2147 = vmatpush.xpose.msra.mxu0 0.0
        %2148 = vmatpush.xpose.msra.mxu0 0.0
        %2149 = vmatpush.xpose.msra.mxu0 0.0
        %2150 = vmatpush.xpose.msra.mxu0 0.0
        %2151 = vmatpush.xpose.msra.mxu0 0.0
        %2152 = vmatpush.xpose.msra.mxu0 0.0
        %2153 = vmatpush.xpose.msra.mxu0 0.0
        %2154 = vmatpush.xpose.msra.mxu0 0.0
        %2155 = vmatpush.xpose.msra.mxu0 0.0
        %2156 = vmatpush.xpose.msra.mxu0 0.0
        %2157 = vmatpush.xpose.msra.mxu0 0.0
        %2158 = vmatpush.xpose.msra.mxu0 0.0
        %2159 = vmatpush.xpose.msra.mxu0 0.0
        %2160 = vmatpush.xpose.msra.mxu0 0.0
        %2161 = vmatpush.xpose.msra.mxu0 0.0
        %2162 = vmatpush.xpose.msra.mxu0 %v2145
        %2163 = vmatmul.f32.gmra.mxu0 %v281
        %v2164 = vpop.f32.mrf.mxu0
        %v2165 = vadd.f32 0.0, %v2164
        %2166 = vdwg.mxu0
        %v2167 = vmul.f32 %v2120, 2.0
        %v2168 = vmul.f32 %v2123, 2.0
        %v2169 = vmul.f32 %v2126, 2.0
        %v2170 = vmul.f32 %v2129, 2.0
        %v2171 = vmul.f32 %v2132, 2.0
        %v2172 = vmul.f32 %v2135, 2.0
        %v2173 = vmul.f32 %v2138, 2.0
        %v2174 = vmul.f32 %v2141, 2.0
        %v2175 = vperm.slane %v2165, 0
        %v2176 = vsub.f32 %v2175, %v2167
        %v2177 = vsub.f32 %v2175, %v2168
        %v2178 = vsub.f32 %v2175, %v2169
        %v2179 = vsub.f32 %v2175, %v2170
        %v2180 = vsub.f32 %v2175, %v2171
        %v2181 = vsub.f32 %v2175, %v2172
        %v2182 = vsub.f32 %v2175, %v2173
        %v2183 = vsub.f32 %v2175, %v2174
        %v2184 = vsel %vm210, %v2176, inf
        %2185 = vmin.xlane.f32.xlu0 %v2184
        %v2186 = vpop.xlane.xlu0 %2185
        %v2187 = vsel %vm210, %v2177, inf
        %2188 = vmin.xlane.f32.xlu0 %v2187
        %v2189 = vpop.xlane.xlu0 %2188
        %v2190 = vsel %vm210, %v2178, inf
        %2191 = vmin.xlane.f32.xlu0 %v2190
        %v2192 = vpop.xlane.xlu0 %2191
        %v2193 = vsel %vm210, %v2179, inf
        %2194 = vmin.xlane.f32.xlu0 %v2193
        %v2195 = vpop.xlane.xlu0 %2194
        %v2196 = vsel %vm210, %v2180, inf
        %2197 = vmin.xlane.f32.xlu0 %v2196
        %v2198 = vpop.xlane.xlu0 %2197
        %v2199 = vsel %vm210, %v2181, inf
        %2200 = vmin.xlane.f32.xlu0 %v2199
        %v2201 = vpop.xlane.xlu0 %2200
        %v2202 = vsel %vm210, %v2182, inf
        %2203 = vmin.xlane.f32.xlu0 %v2202
        %v2204 = vpop.xlane.xlu0 %2203
        %v2205 = vsel %vm210, %v2183, inf
        %2206 = vmin.xlane.f32.xlu0 %v2205
        %v2207 = vpop.xlane.xlu0 %2206
        %vm2208 = vcmp.le.f32.partialorder %v2176, %v2186
        %vm2209 = vcmp.le.f32.partialorder %v2177, %v2189
        %vm2210 = vcmp.le.f32.partialorder %v2178, %v2192
        %vm2211 = vcmp.le.f32.partialorder %v2179, %v2195
        %vm2212 = vcmp.le.f32.partialorder %v2180, %v2198
        %vm2213 = vcmp.le.f32.partialorder %v2181, %v2201
        %vm2214 = vcmp.le.f32.partialorder %v2182, %v2204
        %vm2215 = vcmp.le.f32.partialorder %v2183, %v2207
        %v2216 = vsel %vm2208, %v208, 8
        %v2217 = vsel %vm2209, %v208, 8
        %v2218 = vsel %vm2210, %v208, 8
        %v2219 = vsel %vm2211, %v208, 8
        %v2220 = vsel %vm2212, %v208, 8
        %v2221 = vsel %vm2213, %v208, 8
        %v2222 = vsel %vm2214, %v208, 8
        %v2223 = vsel %vm2215, %v208, 8
        %v2224 = vsel %vm210, %v2216, 2147483647
        %v2225 = vand.u32 %v2224, 65535
        %v2226 = vshra.s32 %v2224, 16
        %v2227 = vcvt.s32.f32 %v2225
        %v2228 = vcvt.s32.f32 %v2226
        %2229 = vmin.xlane.f32.xlu0 %v2228
        %v2230 = vpop.xlane.xlu0 %2229
        %vm2231 = vcmp.eq.f32.partialorder %v2228, %v2230
        %v2232 = vsel %vm2231, %v2227, inf
        %2233 = vmin.xlane.f32.xlu0 %v2232
        %v2234 = vpop.xlane.xlu0 %2233
        %v2235 = vcvt.f32.s32 %v2234
        %v2236 = vcvt.f32.s32 %v2230
        %v2237 = vshll.u32 %v2236, 16
        %v2238 = vadd.s32 %v2237, %v2235
        %v2239 = vsel %vm210, %v2217, 2147483647
        %v2240 = vand.u32 %v2239, 65535
        %v2241 = vshra.s32 %v2239, 16
        %v2242 = vcvt.s32.f32 %v2240
        %v2243 = vcvt.s32.f32 %v2241
        %2244 = vmin.xlane.f32.xlu0 %v2243
        %v2245 = vpop.xlane.xlu0 %2244
        %vm2246 = vcmp.eq.f32.partialorder %v2243, %v2245
        %v2247 = vsel %vm2246, %v2242, inf
        %2248 = vmin.xlane.f32.xlu0 %v2247
        %v2249 = vpop.xlane.xlu0 %2248
        %v2250 = vcvt.f32.s32 %v2249
        %v2251 = vcvt.f32.s32 %v2245
        %v2252 = vshll.u32 %v2251, 16
        %v2253 = vadd.s32 %v2252, %v2250
        %v2254 = vsel %vm210, %v2218, 2147483647
        %v2255 = vand.u32 %v2254, 65535
        %v2256 = vshra.s32 %v2254, 16
        %v2257 = vcvt.s32.f32 %v2255
        %v2258 = vcvt.s32.f32 %v2256
        %2259 = vmin.xlane.f32.xlu0 %v2258
        %v2260 = vpop.xlane.xlu0 %2259
        %vm2261 = vcmp.eq.f32.partialorder %v2258, %v2260
        %v2262 = vsel %vm2261, %v2257, inf
        %2263 = vmin.xlane.f32.xlu0 %v2262
        %v2264 = vpop.xlane.xlu0 %2263
        %v2265 = vcvt.f32.s32 %v2264
        %v2266 = vcvt.f32.s32 %v2260
        %v2267 = vshll.u32 %v2266, 16
        %v2268 = vadd.s32 %v2267, %v2265
        %v2269 = vsel %vm210, %v2219, 2147483647
        %v2270 = vand.u32 %v2269, 65535
        %v2271 = vshra.s32 %v2269, 16
        %v2272 = vcvt.s32.f32 %v2270
        %v2273 = vcvt.s32.f32 %v2271
        %2274 = vmin.xlane.f32.xlu0 %v2273
        %v2275 = vpop.xlane.xlu0 %2274
        %vm2276 = vcmp.eq.f32.partialorder %v2273, %v2275
        %v2277 = vsel %vm2276, %v2272, inf
        %2278 = vmin.xlane.f32.xlu0 %v2277
        %v2279 = vpop.xlane.xlu0 %2278
        %v2280 = vcvt.f32.s32 %v2279
        %v2281 = vcvt.f32.s32 %v2275
        %v2282 = vshll.u32 %v2281, 16
        %v2283 = vadd.s32 %v2282, %v2280
        %v2284 = vsel %vm210, %v2220, 2147483647
        %v2285 = vand.u32 %v2284, 65535
        %v2286 = vshra.s32 %v2284, 16
        %v2287 = vcvt.s32.f32 %v2285
        %v2288 = vcvt.s32.f32 %v2286
        %2289 = vmin.xlane.f32.xlu0 %v2288
        %v2290 = vpop.xlane.xlu0 %2289
        %vm2291 = vcmp.eq.f32.partialorder %v2288, %v2290
        %v2292 = vsel %vm2291, %v2287, inf
        %2293 = vmin.xlane.f32.xlu0 %v2292
        %v2294 = vpop.xlane.xlu0 %2293
        %v2295 = vcvt.f32.s32 %v2294
        %v2296 = vcvt.f32.s32 %v2290
        %v2297 = vshll.u32 %v2296, 16
        %v2298 = vadd.s32 %v2297, %v2295
        %v2299 = vsel %vm210, %v2221, 2147483647
        %v2300 = vand.u32 %v2299, 65535
        %v2301 = vshra.s32 %v2299, 16
        %v2302 = vcvt.s32.f32 %v2300
        %v2303 = vcvt.s32.f32 %v2301
        %2304 = vmin.xlane.f32.xlu0 %v2303
        %v2305 = vpop.xlane.xlu0 %2304
        %vm2306 = vcmp.eq.f32.partialorder %v2303, %v2305
        %v2307 = vsel %vm2306, %v2302, inf
        %2308 = vmin.xlane.f32.xlu0 %v2307
        %v2309 = vpop.xlane.xlu0 %2308
        %v2310 = vcvt.f32.s32 %v2309
        %v2311 = vcvt.f32.s32 %v2305
        %v2312 = vshll.u32 %v2311, 16
        %v2313 = vadd.s32 %v2312, %v2310
        %v2314 = vsel %vm210, %v2222, 2147483647
        %v2315 = vand.u32 %v2314, 65535
        %v2316 = vshra.s32 %v2314, 16
        %v2317 = vcvt.s32.f32 %v2315
        %v2318 = vcvt.s32.f32 %v2316
        %2319 = vmin.xlane.f32.xlu0 %v2318
        %v2320 = vpop.xlane.xlu0 %2319
        %vm2321 = vcmp.eq.f32.partialorder %v2318, %v2320
        %v2322 = vsel %vm2321, %v2317, inf
        %2323 = vmin.xlane.f32.xlu0 %v2322
        %v2324 = vpop.xlane.xlu0 %2323
        %v2325 = vcvt.f32.s32 %v2324
        %v2326 = vcvt.f32.s32 %v2320
        %v2327 = vshll.u32 %v2326, 16
        %v2328 = vadd.s32 %v2327, %v2325
        %v2329 = vsel %vm210, %v2223, 2147483647
        %v2330 = vand.u32 %v2329, 65535
        %v2331 = vshra.s32 %v2329, 16
        %v2332 = vcvt.s32.f32 %v2330
        %v2333 = vcvt.s32.f32 %v2331
        %2334 = vmin.xlane.f32.xlu0 %v2333
        %v2335 = vpop.xlane.xlu0 %2334
        %vm2336 = vcmp.eq.f32.partialorder %v2333, %v2335
        %v2337 = vsel %vm2336, %v2332, inf
        %2338 = vmin.xlane.f32.xlu0 %v2337
        %v2339 = vpop.xlane.xlu0 %2338
        %v2340 = vcvt.f32.s32 %v2339
        %v2341 = vcvt.f32.s32 %v2335
        %v2342 = vshll.u32 %v2341, 16
        %v2343 = vadd.s32 %v2342, %v2340
        %vm2344 = vcmp.eq.s32.totalorder %v2238, %v208
        %vm2345 = vcmp.eq.s32.totalorder %v2253, %v208
        %vm2346 = vcmp.eq.s32.totalorder %v2268, %v208
        %vm2347 = vcmp.eq.s32.totalorder %v2283, %v208
        %vm2348 = vcmp.eq.s32.totalorder %v2298, %v208
        %vm2349 = vcmp.eq.s32.totalorder %v2313, %v208
        %vm2350 = vcmp.eq.s32.totalorder %v2328, %v208
        %vm2351 = vcmp.eq.s32.totalorder %v2343, %v208
        %v2352 = vsel %vm2344, 1, 0
        %v2353 = vsel %vm2345, 1, 0
        %v2354 = vsel %vm2346, 1, 0
        %v2355 = vsel %vm2347, 1, 0
        %v2356 = vsel %vm2348, 1, 0
        %v2357 = vsel %vm2349, 1, 0
        %v2358 = vsel %vm2350, 1, 0
        %v2359 = vsel %vm2351, 1, 0
        %v2360 = vcvt.s32.f32 %v2352
        %v2361 = vcvt.s32.f32 %v2353
        %v2362 = vcvt.s32.f32 %v2354
        %v2363 = vcvt.s32.f32 %v2355
        %v2364 = vcvt.s32.f32 %v2356
        %v2365 = vcvt.s32.f32 %v2357
        %v2366 = vcvt.s32.f32 %v2358
        %v2367 = vcvt.s32.f32 %v2359
        %2368 = vxpose.xlu0.b32.start [1/16] %v2360, 128
        %2369 = vxpose.xlu0.b32.cont [2/16] %v2361, 128
        %2370 = vxpose.xlu0.b32.cont [3/16] %v2362, 128
        %2371 = vxpose.xlu0.b32.cont [4/16] %v2363, 128
        %2372 = vxpose.xlu0.b32.cont [5/16] %v2364, 128
        %2373 = vxpose.xlu0.b32.cont [6/16] %v2365, 128
        %2374 = vxpose.xlu0.b32.cont [7/16] %v2366, 128
        %2375 = vxpose.xlu0.b32.cont [8/16] %v2367, 128
        %2376 = vxpose.xlu0.b32.cont [9/16] 0.0, 128
        %2377 = vxpose.xlu0.b32.cont [10/16] 0.0, 128
        %2378 = vxpose.xlu0.b32.cont [11/16] 0.0, 128
        %2379 = vxpose.xlu0.b32.cont [12/16] 0.0, 128
        %2380 = vxpose.xlu0.b32.cont [13/16] 0.0, 128
        %2381 = vxpose.xlu0.b32.cont [14/16] 0.0, 128
        %2382 = vxpose.xlu0.b32.cont [15/16] 0.0, 128
        %2383 = vxpose.xlu0.b32.end [16/16] 0.0, 128
        %v2384 = vpop.trf.xlu0
        %v2385 = vpop.trf.xlu0
        %v2386 = vpop.trf.xlu0
        %v2387 = vpop.trf.xlu0
        %v2388 = vpop.trf.xlu0
        %v2389 = vpop.trf.xlu0
        %v2390 = vpop.trf.xlu0
        %v2391 = vpop.trf.xlu0
        %v2392 = vpop.trf.xlu0
        %v2393 = vpop.trf.xlu0
        %v2394 = vpop.trf.xlu0
        %v2395 = vpop.trf.xlu0
        %v2396 = vpop.trf.xlu0
        %v2397 = vpop.trf.xlu0
        %v2398 = vpop.trf.xlu0
        %v2399 = vpop.trf.xlu0
        %v2401 = vsel %vm539, %v2384, 0
        %2403 = vmatpush.msra.mxu0 0.0
        %2404 = vmatpush.msra.mxu0 0.0
        %2405 = vmatpush.msra.mxu0 0.0
        %2406 = vmatpush.msra.mxu0 0.0
        %2407 = vmatpush.msra.mxu0 0.0
        %2408 = vmatpush.msra.mxu0 0.0
        %2409 = vmatpush.msra.mxu0 0.0
        %2410 = vmatpush.msra.mxu0 0.0
        %2411 = vmatpush.msra.mxu0 %v206
        %2412 = vmatpush.msra.mxu0 %v205
        %2413 = vmatpush.msra.mxu0 %v204
        %2414 = vmatpush.msra.mxu0 %v203
        %2415 = vmatpush.msra.mxu0 %v202
        %2416 = vmatpush.msra.mxu0 %v201
        %2417 = vmatpush.msra.mxu0 %v200
        %2418 = vmatpush.msra.mxu0 %v199
        %2419 = vmatmul.f32.gmra.mxu0 %v2401
        %v2420 = vpop.f32.mrf.mxu0
        %v2421 = vadd.f32 0.0, %v2420
        %2422 = vdwg.mxu0
        %2423 = vmatpush.msra.mxu0 0.0
        %2424 = vmatpush.msra.mxu0 0.0
        %2425 = vmatpush.msra.mxu0 0.0
        %2426 = vmatpush.msra.mxu0 0.0
        %2427 = vmatpush.msra.mxu0 0.0
        %2428 = vmatpush.msra.mxu0 0.0
        %2429 = vmatpush.msra.mxu0 0.0
        %2430 = vmatpush.msra.mxu0 0.0
        %2431 = vmatpush.msra.mxu0 1.0
        %2432 = vmatpush.msra.mxu0 1.0
        %2433 = vmatpush.msra.mxu0 1.0
        %2434 = vmatpush.msra.mxu0 1.0
        %2435 = vmatpush.msra.mxu0 1.0
        %2436 = vmatpush.msra.mxu0 1.0
        %2437 = vmatpush.msra.mxu0 1.0
        %2438 = vmatpush.msra.mxu0 1.0
        %2439 = vmatmul.f32.gmra.mxu0 %v2401
        %v2440 = vpop.f32.mrf.mxu0
        %v2441 = vadd.f32 0.0, %v2440
        %2442 = vdwg.mxu0
        %vm2443 = vcmp.gt.f32.partialorder %v2441, 0.0
        %v2444 = vmax.f32 %v2441, 1.0
        %2446 = vset.pattern.permute.xlu0 0
        %2447 = vperm.xlu0 %2446, %v2444
        %v2448 = vpop.permute.xlu0 %2447
        %v2450 = vrcp.pop %v2448
        %v2451 = vmul.f32 %v2448, %v2450
        %v2452 = vsub.f32 1.0, %v2451
        %v2453 = vmul.f32 %v2450, %v2452
        %v2454 = vadd.f32 %v2450, %v2453
        %vm2455 = vweird.f32 %v2448
        %vm2456 = vweird.f32 %v2450
        %vm2457 = vmor %vm2455, %vm2456
        %v2458 = vsel %vm2457, %v2450, %v2454
        %v2459 = vand.u32 2147483647, %v2448
        %vm2460 = vcmp.eq.f32.partialorder %v2459, 8.507059e+37
        %v2461 = vand.u32 %v2448, 2147483648
        %v2462 = vor.u32 1.1754944e-38, %v2461
        %v2463 = vsel %vm2460, %v2462, %v2458
        %v2464 = vmul.f32 %v2421, %v2463
        %v2465 = vsel %vm2443, 1, 0
        %2466 = vset.pattern.permute.xlu0 0
        %2467 = vperm.xlu0 %2466, %v2465
        %v2468 = vpop.permute.xlu0 %2467
        %vm2469 = vcmp.eq.s32.totalorder %v2468, 1
        %v2470 = vsel %vm2469, %v2464, %v2098
        %v2472 = vsel %vm210, %v2470, 0
        %2474 = vmatpush.xpose.msra.mxu0 0.0
        %2475 = vmatpush.xpose.msra.mxu0 0.0
        %2476 = vmatpush.xpose.msra.mxu0 0.0
        %2477 = vmatpush.xpose.msra.mxu0 0.0
        %2478 = vmatpush.xpose.msra.mxu0 0.0
        %2479 = vmatpush.xpose.msra.mxu0 0.0
        %2480 = vmatpush.xpose.msra.mxu0 0.0
        %2481 = vmatpush.xpose.msra.mxu0 0.0
        %2482 = vmatpush.xpose.msra.mxu0 0.0
        %2483 = vmatpush.xpose.msra.mxu0 0.0
        %2484 = vmatpush.xpose.msra.mxu0 0.0
        %2485 = vmatpush.xpose.msra.mxu0 0.0
        %2486 = vmatpush.xpose.msra.mxu0 0.0
        %2487 = vmatpush.xpose.msra.mxu0 0.0
        %2488 = vmatpush.xpose.msra.mxu0 0.0
        %2489 = vmatpush.xpose.msra.mxu0 %v2472
        %2490 = vmatmul.f32.gmra.mxu0 %v212
        %v2491 = vpop.f32.mrf.mxu0
        %v2492 = vadd.f32 0.0, %v2491
        %2493 = vmatmul.f32.gmra.mxu0 %v215
        %v2494 = vpop.f32.mrf.mxu0
        %v2495 = vadd.f32 0.0, %v2494
        %2496 = vmatmul.f32.gmra.mxu0 %v218
        %v2497 = vpop.f32.mrf.mxu0
        %v2498 = vadd.f32 0.0, %v2497
        %2499 = vmatmul.f32.gmra.mxu0 %v221
        %v2500 = vpop.f32.mrf.mxu0
        %v2501 = vadd.f32 0.0, %v2500
        %2502 = vmatmul.f32.gmra.mxu0 %v224
        %v2503 = vpop.f32.mrf.mxu0
        %v2504 = vadd.f32 0.0, %v2503
        %2505 = vmatmul.f32.gmra.mxu0 %v227
        %v2506 = vpop.f32.mrf.mxu0
        %v2507 = vadd.f32 0.0, %v2506
        %2508 = vmatmul.f32.gmra.mxu0 %v230
        %v2509 = vpop.f32.mrf.mxu0
        %v2510 = vadd.f32 0.0, %v2509
        %2511 = vmatmul.f32.gmra.mxu0 %v233
        %v2512 = vpop.f32.mrf.mxu0
        %v2513 = vadd.f32 0.0, %v2512
        %2514 = vdwg.mxu0
        %v2515 = vmul.f32 %v2470, %v2470
        %v2517 = vsel %vm210, %v2515, 0
        %2519 = vmatpush.xpose.msra.mxu0 0.0
        %2520 = vmatpush.xpose.msra.mxu0 0.0
        %2521 = vmatpush.xpose.msra.mxu0 0.0
        %2522 = vmatpush.xpose.msra.mxu0 0.0
        %2523 = vmatpush.xpose.msra.mxu0 0.0
        %2524 = vmatpush.xpose.msra.mxu0 0.0
        %2525 = vmatpush.xpose.msra.mxu0 0.0
        %2526 = vmatpush.xpose.msra.mxu0 0.0
        %2527 = vmatpush.xpose.msra.mxu0 0.0
        %2528 = vmatpush.xpose.msra.mxu0 0.0
        %2529 = vmatpush.xpose.msra.mxu0 0.0
        %2530 = vmatpush.xpose.msra.mxu0 0.0
        %2531 = vmatpush.xpose.msra.mxu0 0.0
        %2532 = vmatpush.xpose.msra.mxu0 0.0
        %2533 = vmatpush.xpose.msra.mxu0 0.0
        %2534 = vmatpush.xpose.msra.mxu0 %v2517
        %2535 = vmatmul.f32.gmra.mxu0 %v281
        %v2536 = vpop.f32.mrf.mxu0
        %v2537 = vadd.f32 0.0, %v2536
        %2538 = vdwg.mxu0
        %v2539 = vmul.f32 %v2492, 2.0
        %v2540 = vmul.f32 %v2495, 2.0
        %v2541 = vmul.f32 %v2498, 2.0
        %v2542 = vmul.f32 %v2501, 2.0
        %v2543 = vmul.f32 %v2504, 2.0
        %v2544 = vmul.f32 %v2507, 2.0
        %v2545 = vmul.f32 %v2510, 2.0
        %v2546 = vmul.f32 %v2513, 2.0
        %v2547 = vperm.slane %v2537, 0
        %v2548 = vsub.f32 %v2547, %v2539
        %v2549 = vsub.f32 %v2547, %v2540
        %v2550 = vsub.f32 %v2547, %v2541
        %v2551 = vsub.f32 %v2547, %v2542
        %v2552 = vsub.f32 %v2547, %v2543
        %v2553 = vsub.f32 %v2547, %v2544
        %v2554 = vsub.f32 %v2547, %v2545
        %v2555 = vsub.f32 %v2547, %v2546
        %v2556 = vsel %vm210, %v2548, inf
        %2557 = vmin.xlane.f32.xlu0 %v2556
        %v2558 = vpop.xlane.xlu0 %2557
        %v2559 = vsel %vm210, %v2549, inf
        %2560 = vmin.xlane.f32.xlu0 %v2559
        %v2561 = vpop.xlane.xlu0 %2560
        %v2562 = vsel %vm210, %v2550, inf
        %2563 = vmin.xlane.f32.xlu0 %v2562
        %v2564 = vpop.xlane.xlu0 %2563
        %v2565 = vsel %vm210, %v2551, inf
        %2566 = vmin.xlane.f32.xlu0 %v2565
        %v2567 = vpop.xlane.xlu0 %2566
        %v2568 = vsel %vm210, %v2552, inf
        %2569 = vmin.xlane.f32.xlu0 %v2568
        %v2570 = vpop.xlane.xlu0 %2569
        %v2571 = vsel %vm210, %v2553, inf
        %2572 = vmin.xlane.f32.xlu0 %v2571
        %v2573 = vpop.xlane.xlu0 %2572
        %v2574 = vsel %vm210, %v2554, inf
        %2575 = vmin.xlane.f32.xlu0 %v2574
        %v2576 = vpop.xlane.xlu0 %2575
        %v2577 = vsel %vm210, %v2555, inf
        %2578 = vmin.xlane.f32.xlu0 %v2577
        %v2579 = vpop.xlane.xlu0 %2578
        %vm2580 = vcmp.le.f32.partialorder %v2548, %v2558
        %vm2581 = vcmp.le.f32.partialorder %v2549, %v2561
        %vm2582 = vcmp.le.f32.partialorder %v2550, %v2564
        %vm2583 = vcmp.le.f32.partialorder %v2551, %v2567
        %vm2584 = vcmp.le.f32.partialorder %v2552, %v2570
        %vm2585 = vcmp.le.f32.partialorder %v2553, %v2573
        %vm2586 = vcmp.le.f32.partialorder %v2554, %v2576
        %vm2587 = vcmp.le.f32.partialorder %v2555, %v2579
        %v2588 = vsel %vm2580, %v208, 8
        %v2589 = vsel %vm2581, %v208, 8
        %v2590 = vsel %vm2582, %v208, 8
        %v2591 = vsel %vm2583, %v208, 8
        %v2592 = vsel %vm2584, %v208, 8
        %v2593 = vsel %vm2585, %v208, 8
        %v2594 = vsel %vm2586, %v208, 8
        %v2595 = vsel %vm2587, %v208, 8
        %v2596 = vsel %vm210, %v2588, 2147483647
        %v2597 = vand.u32 %v2596, 65535
        %v2598 = vshra.s32 %v2596, 16
        %v2599 = vcvt.s32.f32 %v2597
        %v2600 = vcvt.s32.f32 %v2598
        %2601 = vmin.xlane.f32.xlu0 %v2600
        %v2602 = vpop.xlane.xlu0 %2601
        %vm2603 = vcmp.eq.f32.partialorder %v2600, %v2602
        %v2604 = vsel %vm2603, %v2599, inf
        %2605 = vmin.xlane.f32.xlu0 %v2604
        %v2606 = vpop.xlane.xlu0 %2605
        %v2607 = vcvt.f32.s32 %v2606
        %v2608 = vcvt.f32.s32 %v2602
        %v2609 = vshll.u32 %v2608, 16
        %v2610 = vadd.s32 %v2609, %v2607
        %v2611 = vsel %vm210, %v2589, 2147483647
        %v2612 = vand.u32 %v2611, 65535
        %v2613 = vshra.s32 %v2611, 16
        %v2614 = vcvt.s32.f32 %v2612
        %v2615 = vcvt.s32.f32 %v2613
        %2616 = vmin.xlane.f32.xlu0 %v2615
        %v2617 = vpop.xlane.xlu0 %2616
        %vm2618 = vcmp.eq.f32.partialorder %v2615, %v2617
        %v2619 = vsel %vm2618, %v2614, inf
        %2620 = vmin.xlane.f32.xlu0 %v2619
        %v2621 = vpop.xlane.xlu0 %2620
        %v2622 = vcvt.f32.s32 %v2621
        %v2623 = vcvt.f32.s32 %v2617
        %v2624 = vshll.u32 %v2623, 16
        %v2625 = vadd.s32 %v2624, %v2622
        %v2626 = vsel %vm210, %v2590, 2147483647
        %v2627 = vand.u32 %v2626, 65535
        %v2628 = vshra.s32 %v2626, 16
        %v2629 = vcvt.s32.f32 %v2627
        %v2630 = vcvt.s32.f32 %v2628
        %2631 = vmin.xlane.f32.xlu0 %v2630
        %v2632 = vpop.xlane.xlu0 %2631
        %vm2633 = vcmp.eq.f32.partialorder %v2630, %v2632
        %v2634 = vsel %vm2633, %v2629, inf
        %2635 = vmin.xlane.f32.xlu0 %v2634
        %v2636 = vpop.xlane.xlu0 %2635
        %v2637 = vcvt.f32.s32 %v2636
        %v2638 = vcvt.f32.s32 %v2632
        %v2639 = vshll.u32 %v2638, 16
        %v2640 = vadd.s32 %v2639, %v2637
        %v2641 = vsel %vm210, %v2591, 2147483647
        %v2642 = vand.u32 %v2641, 65535
        %v2643 = vshra.s32 %v2641, 16
        %v2644 = vcvt.s32.f32 %v2642
        %v2645 = vcvt.s32.f32 %v2643
        %2646 = vmin.xlane.f32.xlu0 %v2645
        %v2647 = vpop.xlane.xlu0 %2646
        %vm2648 = vcmp.eq.f32.partialorder %v2645, %v2647
        %v2649 = vsel %vm2648, %v2644, inf
        %2650 = vmin.xlane.f32.xlu0 %v2649
        %v2651 = vpop.xlane.xlu0 %2650
        %v2652 = vcvt.f32.s32 %v2651
        %v2653 = vcvt.f32.s32 %v2647
        %v2654 = vshll.u32 %v2653, 16
        %v2655 = vadd.s32 %v2654, %v2652
        %v2656 = vsel %vm210, %v2592, 2147483647
        %v2657 = vand.u32 %v2656, 65535
        %v2658 = vshra.s32 %v2656, 16
        %v2659 = vcvt.s32.f32 %v2657
        %v2660 = vcvt.s32.f32 %v2658
        %2661 = vmin.xlane.f32.xlu0 %v2660
        %v2662 = vpop.xlane.xlu0 %2661
        %vm2663 = vcmp.eq.f32.partialorder %v2660, %v2662
        %v2664 = vsel %vm2663, %v2659, inf
        %2665 = vmin.xlane.f32.xlu0 %v2664
        %v2666 = vpop.xlane.xlu0 %2665
        %v2667 = vcvt.f32.s32 %v2666
        %v2668 = vcvt.f32.s32 %v2662
        %v2669 = vshll.u32 %v2668, 16
        %v2670 = vadd.s32 %v2669, %v2667
        %v2671 = vsel %vm210, %v2593, 2147483647
        %v2672 = vand.u32 %v2671, 65535
        %v2673 = vshra.s32 %v2671, 16
        %v2674 = vcvt.s32.f32 %v2672
        %v2675 = vcvt.s32.f32 %v2673
        %2676 = vmin.xlane.f32.xlu0 %v2675
        %v2677 = vpop.xlane.xlu0 %2676
        %vm2678 = vcmp.eq.f32.partialorder %v2675, %v2677
        %v2679 = vsel %vm2678, %v2674, inf
        %2680 = vmin.xlane.f32.xlu0 %v2679
        %v2681 = vpop.xlane.xlu0 %2680
        %v2682 = vcvt.f32.s32 %v2681
        %v2683 = vcvt.f32.s32 %v2677
        %v2684 = vshll.u32 %v2683, 16
        %v2685 = vadd.s32 %v2684, %v2682
        %v2686 = vsel %vm210, %v2594, 2147483647
        %v2687 = vand.u32 %v2686, 65535
        %v2688 = vshra.s32 %v2686, 16
        %v2689 = vcvt.s32.f32 %v2687
        %v2690 = vcvt.s32.f32 %v2688
        %2691 = vmin.xlane.f32.xlu0 %v2690
        %v2692 = vpop.xlane.xlu0 %2691
        %vm2693 = vcmp.eq.f32.partialorder %v2690, %v2692
        %v2694 = vsel %vm2693, %v2689, inf
        %2695 = vmin.xlane.f32.xlu0 %v2694
        %v2696 = vpop.xlane.xlu0 %2695
        %v2697 = vcvt.f32.s32 %v2696
        %v2698 = vcvt.f32.s32 %v2692
        %v2699 = vshll.u32 %v2698, 16
        %v2700 = vadd.s32 %v2699, %v2697
        %v2701 = vsel %vm210, %v2595, 2147483647
        %v2702 = vand.u32 %v2701, 65535
        %v2703 = vshra.s32 %v2701, 16
        %v2704 = vcvt.s32.f32 %v2702
        %v2705 = vcvt.s32.f32 %v2703
        %2706 = vmin.xlane.f32.xlu0 %v2705
        %v2707 = vpop.xlane.xlu0 %2706
        %vm2708 = vcmp.eq.f32.partialorder %v2705, %v2707
        %v2709 = vsel %vm2708, %v2704, inf
        %2710 = vmin.xlane.f32.xlu0 %v2709
        %v2711 = vpop.xlane.xlu0 %2710
        %v2712 = vcvt.f32.s32 %v2711
        %v2713 = vcvt.f32.s32 %v2707
        %v2714 = vshll.u32 %v2713, 16
        %v2715 = vadd.s32 %v2714, %v2712
        %vm2716 = vcmp.eq.s32.totalorder %v2610, %v208
        %vm2717 = vcmp.eq.s32.totalorder %v2625, %v208
        %vm2718 = vcmp.eq.s32.totalorder %v2640, %v208
        %vm2719 = vcmp.eq.s32.totalorder %v2655, %v208
        %vm2720 = vcmp.eq.s32.totalorder %v2670, %v208
        %vm2721 = vcmp.eq.s32.totalorder %v2685, %v208
        %vm2722 = vcmp.eq.s32.totalorder %v2700, %v208
        %vm2723 = vcmp.eq.s32.totalorder %v2715, %v208
        %v2724 = vsel %vm2716, 1, 0
        %v2725 = vsel %vm2717, 1, 0
        %v2726 = vsel %vm2718, 1, 0
        %v2727 = vsel %vm2719, 1, 0
        %v2728 = vsel %vm2720, 1, 0
        %v2729 = vsel %vm2721, 1, 0
        %v2730 = vsel %vm2722, 1, 0
        %v2731 = vsel %vm2723, 1, 0
        %v2732 = vcvt.s32.f32 %v2724
        %v2733 = vcvt.s32.f32 %v2725
        %v2734 = vcvt.s32.f32 %v2726
        %v2735 = vcvt.s32.f32 %v2727
        %v2736 = vcvt.s32.f32 %v2728
        %v2737 = vcvt.s32.f32 %v2729
        %v2738 = vcvt.s32.f32 %v2730
        %v2739 = vcvt.s32.f32 %v2731
        %2740 = vxpose.xlu0.b32.start [1/16] %v2732, 128
        %2741 = vxpose.xlu0.b32.cont [2/16] %v2733, 128
        %2742 = vxpose.xlu0.b32.cont [3/16] %v2734, 128
        %2743 = vxpose.xlu0.b32.cont [4/16] %v2735, 128
        %2744 = vxpose.xlu0.b32.cont [5/16] %v2736, 128
        %2745 = vxpose.xlu0.b32.cont [6/16] %v2737, 128
        %2746 = vxpose.xlu0.b32.cont [7/16] %v2738, 128
        %2747 = vxpose.xlu0.b32.cont [8/16] %v2739, 128
        %2748 = vxpose.xlu0.b32.cont [9/16] 0.0, 128
        %2749 = vxpose.xlu0.b32.cont [10/16] 0.0, 128
        %2750 = vxpose.xlu0.b32.cont [11/16] 0.0, 128
        %2751 = vxpose.xlu0.b32.cont [12/16] 0.0, 128
        %2752 = vxpose.xlu0.b32.cont [13/16] 0.0, 128
        %2753 = vxpose.xlu0.b32.cont [14/16] 0.0, 128
        %2754 = vxpose.xlu0.b32.cont [15/16] 0.0, 128
        %2755 = vxpose.xlu0.b32.end [16/16] 0.0, 128
        %v2756 = vpop.trf.xlu0
        %v2757 = vpop.trf.xlu0
        %v2758 = vpop.trf.xlu0
        %v2759 = vpop.trf.xlu0
        %v2760 = vpop.trf.xlu0
        %v2761 = vpop.trf.xlu0
        %v2762 = vpop.trf.xlu0
        %v2763 = vpop.trf.xlu0
        %v2764 = vpop.trf.xlu0
        %v2765 = vpop.trf.xlu0
        %v2766 = vpop.trf.xlu0
        %v2767 = vpop.trf.xlu0
        %v2768 = vpop.trf.xlu0
        %v2769 = vpop.trf.xlu0
        %v2770 = vpop.trf.xlu0
        %v2771 = vpop.trf.xlu0
        %v2773 = vsel %vm539, %v2756, 0
        %2775 = vmatpush.msra.mxu0 0.0
        %2776 = vmatpush.msra.mxu0 0.0
        %2777 = vmatpush.msra.mxu0 0.0
        %2778 = vmatpush.msra.mxu0 0.0
        %2779 = vmatpush.msra.mxu0 0.0
        %2780 = vmatpush.msra.mxu0 0.0
        %2781 = vmatpush.msra.mxu0 0.0
        %2782 = vmatpush.msra.mxu0 0.0
        %2783 = vmatpush.msra.mxu0 %v206
        %2784 = vmatpush.msra.mxu0 %v205
        %2785 = vmatpush.msra.mxu0 %v204
        %2786 = vmatpush.msra.mxu0 %v203
        %2787 = vmatpush.msra.mxu0 %v202
        %2788 = vmatpush.msra.mxu0 %v201
        %2789 = vmatpush.msra.mxu0 %v200
        %2790 = vmatpush.msra.mxu0 %v199
        %2791 = vmatmul.f32.gmra.mxu0 %v2773
        %v2792 = vpop.f32.mrf.mxu0
        %v2793 = vadd.f32 0.0, %v2792
        %2794 = vdwg.mxu0
        %2795 = vmatpush.msra.mxu0 0.0
        %2796 = vmatpush.msra.mxu0 0.0
        %2797 = vmatpush.msra.mxu0 0.0
        %2798 = vmatpush.msra.mxu0 0.0
        %2799 = vmatpush.msra.mxu0 0.0
        %2800 = vmatpush.msra.mxu0 0.0
        %2801 = vmatpush.msra.mxu0 0.0
        %2802 = vmatpush.msra.mxu0 0.0
        %2803 = vmatpush.msra.mxu0 1.0
        %2804 = vmatpush.msra.mxu0 1.0
        %2805 = vmatpush.msra.mxu0 1.0
        %2806 = vmatpush.msra.mxu0 1.0
        %2807 = vmatpush.msra.mxu0 1.0
        %2808 = vmatpush.msra.mxu0 1.0
        %2809 = vmatpush.msra.mxu0 1.0
        %2810 = vmatpush.msra.mxu0 1.0
        %2811 = vmatmul.f32.gmra.mxu0 %v2773
        %v2812 = vpop.f32.mrf.mxu0
        %v2813 = vadd.f32 0.0, %v2812
        %2814 = vdwg.mxu0
        %vm2815 = vcmp.gt.f32.partialorder %v2813, 0.0
        %v2816 = vmax.f32 %v2813, 1.0
        %2818 = vset.pattern.permute.xlu0 0
        %2819 = vperm.xlu0 %2818, %v2816
        %v2820 = vpop.permute.xlu0 %2819
        %v2822 = vrcp.pop %v2820
        %v2823 = vmul.f32 %v2820, %v2822
        %v2824 = vsub.f32 1.0, %v2823
        %v2825 = vmul.f32 %v2822, %v2824
        %v2826 = vadd.f32 %v2822, %v2825
        %vm2827 = vweird.f32 %v2820
        %vm2828 = vweird.f32 %v2822
        %vm2829 = vmor %vm2827, %vm2828
        %v2830 = vsel %vm2829, %v2822, %v2826
        %v2831 = vand.u32 2147483647, %v2820
        %vm2832 = vcmp.eq.f32.partialorder %v2831, 8.507059e+37
        %v2833 = vand.u32 %v2820, 2147483648
        %v2834 = vor.u32 1.1754944e-38, %v2833
        %v2835 = vsel %vm2832, %v2834, %v2830
        %v2836 = vmul.f32 %v2793, %v2835
        %v2837 = vsel %vm2815, 1, 0
        %2838 = vset.pattern.permute.xlu0 0
        %2839 = vperm.xlu0 %2838, %v2837
        %v2840 = vpop.permute.xlu0 %2839
        %vm2841 = vcmp.eq.s32.totalorder %v2840, 1
        %v2842 = vsel %vm2841, %v2836, %v2470
        %v2844 = vsel %vm210, %v2842, 0
        %2846 = vmatpush.xpose.msra.mxu0 0.0
        %2847 = vmatpush.xpose.msra.mxu0 0.0
        %2848 = vmatpush.xpose.msra.mxu0 0.0
        %2849 = vmatpush.xpose.msra.mxu0 0.0
        %2850 = vmatpush.xpose.msra.mxu0 0.0
        %2851 = vmatpush.xpose.msra.mxu0 0.0
        %2852 = vmatpush.xpose.msra.mxu0 0.0
        %2853 = vmatpush.xpose.msra.mxu0 0.0
        %2854 = vmatpush.xpose.msra.mxu0 0.0
        %2855 = vmatpush.xpose.msra.mxu0 0.0
        %2856 = vmatpush.xpose.msra.mxu0 0.0
        %2857 = vmatpush.xpose.msra.mxu0 0.0
        %2858 = vmatpush.xpose.msra.mxu0 0.0
        %2859 = vmatpush.xpose.msra.mxu0 0.0
        %2860 = vmatpush.xpose.msra.mxu0 0.0
        %2861 = vmatpush.xpose.msra.mxu0 %v2844
        %2862 = vmatmul.f32.gmra.mxu0 %v212
        %v2863 = vpop.f32.mrf.mxu0
        %v2864 = vadd.f32 0.0, %v2863
        %2865 = vmatmul.f32.gmra.mxu0 %v215
        %v2866 = vpop.f32.mrf.mxu0
        %v2867 = vadd.f32 0.0, %v2866
        %2868 = vmatmul.f32.gmra.mxu0 %v218
        %v2869 = vpop.f32.mrf.mxu0
        %v2870 = vadd.f32 0.0, %v2869
        %2871 = vmatmul.f32.gmra.mxu0 %v221
        %v2872 = vpop.f32.mrf.mxu0
        %v2873 = vadd.f32 0.0, %v2872
        %2874 = vmatmul.f32.gmra.mxu0 %v224
        %v2875 = vpop.f32.mrf.mxu0
        %v2876 = vadd.f32 0.0, %v2875
        %2877 = vmatmul.f32.gmra.mxu0 %v227
        %v2878 = vpop.f32.mrf.mxu0
        %v2879 = vadd.f32 0.0, %v2878
        %2880 = vmatmul.f32.gmra.mxu0 %v230
        %v2881 = vpop.f32.mrf.mxu0
        %v2882 = vadd.f32 0.0, %v2881
        %2883 = vmatmul.f32.gmra.mxu0 %v233
        %v2884 = vpop.f32.mrf.mxu0
        %v2885 = vadd.f32 0.0, %v2884
        %2886 = vdwg.mxu0
        %v2887 = vmul.f32 %v2842, %v2842
        %v2889 = vsel %vm210, %v2887, 0
        %2891 = vmatpush.xpose.msra.mxu0 0.0
        %2892 = vmatpush.xpose.msra.mxu0 0.0
        %2893 = vmatpush.xpose.msra.mxu0 0.0
        %2894 = vmatpush.xpose.msra.mxu0 0.0
        %2895 = vmatpush.xpose.msra.mxu0 0.0
        %2896 = vmatpush.xpose.msra.mxu0 0.0
        %2897 = vmatpush.xpose.msra.mxu0 0.0
        %2898 = vmatpush.xpose.msra.mxu0 0.0
        %2899 = vmatpush.xpose.msra.mxu0 0.0
        %2900 = vmatpush.xpose.msra.mxu0 0.0
        %2901 = vmatpush.xpose.msra.mxu0 0.0
        %2902 = vmatpush.xpose.msra.mxu0 0.0
        %2903 = vmatpush.xpose.msra.mxu0 0.0
        %2904 = vmatpush.xpose.msra.mxu0 0.0
        %2905 = vmatpush.xpose.msra.mxu0 0.0
        %2906 = vmatpush.xpose.msra.mxu0 %v2889
        %2907 = vmatmul.f32.gmra.mxu0 %v281
        %v2908 = vpop.f32.mrf.mxu0
        %v2909 = vadd.f32 0.0, %v2908
        %2910 = vdwg.mxu0
        %v2911 = vmul.f32 %v2864, 2.0
        %v2912 = vmul.f32 %v2867, 2.0
        %v2913 = vmul.f32 %v2870, 2.0
        %v2914 = vmul.f32 %v2873, 2.0
        %v2915 = vmul.f32 %v2876, 2.0
        %v2916 = vmul.f32 %v2879, 2.0
        %v2917 = vmul.f32 %v2882, 2.0
        %v2918 = vmul.f32 %v2885, 2.0
        %v2919 = vperm.slane %v2909, 0
        %v2920 = vsub.f32 %v2919, %v2911
        %v2921 = vsub.f32 %v2919, %v2912
        %v2922 = vsub.f32 %v2919, %v2913
        %v2923 = vsub.f32 %v2919, %v2914
        %v2924 = vsub.f32 %v2919, %v2915
        %v2925 = vsub.f32 %v2919, %v2916
        %v2926 = vsub.f32 %v2919, %v2917
        %v2927 = vsub.f32 %v2919, %v2918
        %v2928 = vsel %vm210, %v2920, inf
        %2929 = vmin.xlane.f32.xlu0 %v2928
        %v2930 = vpop.xlane.xlu0 %2929
        %v2931 = vsel %vm210, %v2921, inf
        %2932 = vmin.xlane.f32.xlu0 %v2931
        %v2933 = vpop.xlane.xlu0 %2932
        %v2934 = vsel %vm210, %v2922, inf
        %2935 = vmin.xlane.f32.xlu0 %v2934
        %v2936 = vpop.xlane.xlu0 %2935
        %v2937 = vsel %vm210, %v2923, inf
        %2938 = vmin.xlane.f32.xlu0 %v2937
        %v2939 = vpop.xlane.xlu0 %2938
        %v2940 = vsel %vm210, %v2924, inf
        %2941 = vmin.xlane.f32.xlu0 %v2940
        %v2942 = vpop.xlane.xlu0 %2941
        %v2943 = vsel %vm210, %v2925, inf
        %2944 = vmin.xlane.f32.xlu0 %v2943
        %v2945 = vpop.xlane.xlu0 %2944
        %v2946 = vsel %vm210, %v2926, inf
        %2947 = vmin.xlane.f32.xlu0 %v2946
        %v2948 = vpop.xlane.xlu0 %2947
        %v2949 = vsel %vm210, %v2927, inf
        %2950 = vmin.xlane.f32.xlu0 %v2949
        %v2951 = vpop.xlane.xlu0 %2950
        %vm2952 = vcmp.le.f32.partialorder %v2920, %v2930
        %vm2953 = vcmp.le.f32.partialorder %v2921, %v2933
        %vm2954 = vcmp.le.f32.partialorder %v2922, %v2936
        %vm2955 = vcmp.le.f32.partialorder %v2923, %v2939
        %vm2956 = vcmp.le.f32.partialorder %v2924, %v2942
        %vm2957 = vcmp.le.f32.partialorder %v2925, %v2945
        %vm2958 = vcmp.le.f32.partialorder %v2926, %v2948
        %vm2959 = vcmp.le.f32.partialorder %v2927, %v2951
        %v2960 = vsel %vm2952, %v208, 8
        %v2961 = vsel %vm2953, %v208, 8
        %v2962 = vsel %vm2954, %v208, 8
        %v2963 = vsel %vm2955, %v208, 8
        %v2964 = vsel %vm2956, %v208, 8
        %v2965 = vsel %vm2957, %v208, 8
        %v2966 = vsel %vm2958, %v208, 8
        %v2967 = vsel %vm2959, %v208, 8
        %v2968 = vsel %vm210, %v2960, 2147483647
        %v2969 = vand.u32 %v2968, 65535
        %v2970 = vshra.s32 %v2968, 16
        %v2971 = vcvt.s32.f32 %v2969
        %v2972 = vcvt.s32.f32 %v2970
        %2973 = vmin.xlane.f32.xlu0 %v2972
        %v2974 = vpop.xlane.xlu0 %2973
        %vm2975 = vcmp.eq.f32.partialorder %v2972, %v2974
        %v2976 = vsel %vm2975, %v2971, inf
        %2977 = vmin.xlane.f32.xlu0 %v2976
        %v2978 = vpop.xlane.xlu0 %2977
        %v2979 = vcvt.f32.s32 %v2978
        %v2980 = vcvt.f32.s32 %v2974
        %v2981 = vshll.u32 %v2980, 16
        %v2982 = vadd.s32 %v2981, %v2979
        %v2983 = vsel %vm210, %v2961, 2147483647
        %v2984 = vand.u32 %v2983, 65535
        %v2985 = vshra.s32 %v2983, 16
        %v2986 = vcvt.s32.f32 %v2984
        %v2987 = vcvt.s32.f32 %v2985
        %2988 = vmin.xlane.f32.xlu0 %v2987
        %v2989 = vpop.xlane.xlu0 %2988
        %vm2990 = vcmp.eq.f32.partialorder %v2987, %v2989
        %v2991 = vsel %vm2990, %v2986, inf
        %2992 = vmin.xlane.f32.xlu0 %v2991
        %v2993 = vpop.xlane.xlu0 %2992
        %v2994 = vcvt.f32.s32 %v2993
        %v2995 = vcvt.f32.s32 %v2989
        %v2996 = vshll.u32 %v2995, 16
        %v2997 = vadd.s32 %v2996, %v2994
        %v2998 = vsel %vm210, %v2962, 2147483647
        %v2999 = vand.u32 %v2998, 65535
        %v3000 = vshra.s32 %v2998, 16
        %v3001 = vcvt.s32.f32 %v2999
        %v3002 = vcvt.s32.f32 %v3000
        %3003 = vmin.xlane.f32.xlu0 %v3002
        %v3004 = vpop.xlane.xlu0 %3003
        %vm3005 = vcmp.eq.f32.partialorder %v3002, %v3004
        %v3006 = vsel %vm3005, %v3001, inf
        %3007 = vmin.xlane.f32.xlu0 %v3006
        %v3008 = vpop.xlane.xlu0 %3007
        %v3009 = vcvt.f32.s32 %v3008
        %v3010 = vcvt.f32.s32 %v3004
        %v3011 = vshll.u32 %v3010, 16
        %v3012 = vadd.s32 %v3011, %v3009
        %v3013 = vsel %vm210, %v2963, 2147483647
        %v3014 = vand.u32 %v3013, 65535
        %v3015 = vshra.s32 %v3013, 16
        %v3016 = vcvt.s32.f32 %v3014
        %v3017 = vcvt.s32.f32 %v3015
        %3018 = vmin.xlane.f32.xlu0 %v3017
        %v3019 = vpop.xlane.xlu0 %3018
        %vm3020 = vcmp.eq.f32.partialorder %v3017, %v3019
        %v3021 = vsel %vm3020, %v3016, inf
        %3022 = vmin.xlane.f32.xlu0 %v3021
        %v3023 = vpop.xlane.xlu0 %3022
        %v3024 = vcvt.f32.s32 %v3023
        %v3025 = vcvt.f32.s32 %v3019
        %v3026 = vshll.u32 %v3025, 16
        %v3027 = vadd.s32 %v3026, %v3024
        %v3028 = vsel %vm210, %v2964, 2147483647
        %v3029 = vand.u32 %v3028, 65535
        %v3030 = vshra.s32 %v3028, 16
        %v3031 = vcvt.s32.f32 %v3029
        %v3032 = vcvt.s32.f32 %v3030
        %3033 = vmin.xlane.f32.xlu0 %v3032
        %v3034 = vpop.xlane.xlu0 %3033
        %vm3035 = vcmp.eq.f32.partialorder %v3032, %v3034
        %v3036 = vsel %vm3035, %v3031, inf
        %3037 = vmin.xlane.f32.xlu0 %v3036
        %v3038 = vpop.xlane.xlu0 %3037
        %v3039 = vcvt.f32.s32 %v3038
        %v3040 = vcvt.f32.s32 %v3034
        %v3041 = vshll.u32 %v3040, 16
        %v3042 = vadd.s32 %v3041, %v3039
        %v3043 = vsel %vm210, %v2965, 2147483647
        %v3044 = vand.u32 %v3043, 65535
        %v3045 = vshra.s32 %v3043, 16
        %v3046 = vcvt.s32.f32 %v3044
        %v3047 = vcvt.s32.f32 %v3045
        %3048 = vmin.xlane.f32.xlu0 %v3047
        %v3049 = vpop.xlane.xlu0 %3048
        %vm3050 = vcmp.eq.f32.partialorder %v3047, %v3049
        %v3051 = vsel %vm3050, %v3046, inf
        %3052 = vmin.xlane.f32.xlu0 %v3051
        %v3053 = vpop.xlane.xlu0 %3052
        %v3054 = vcvt.f32.s32 %v3053
        %v3055 = vcvt.f32.s32 %v3049
        %v3056 = vshll.u32 %v3055, 16
        %v3057 = vadd.s32 %v3056, %v3054
        %v3058 = vsel %vm210, %v2966, 2147483647
        %v3059 = vand.u32 %v3058, 65535
        %v3060 = vshra.s32 %v3058, 16
        %v3061 = vcvt.s32.f32 %v3059
        %v3062 = vcvt.s32.f32 %v3060
        %3063 = vmin.xlane.f32.xlu0 %v3062
        %v3064 = vpop.xlane.xlu0 %3063
        %vm3065 = vcmp.eq.f32.partialorder %v3062, %v3064
        %v3066 = vsel %vm3065, %v3061, inf
        %3067 = vmin.xlane.f32.xlu0 %v3066
        %v3068 = vpop.xlane.xlu0 %3067
        %v3069 = vcvt.f32.s32 %v3068
        %v3070 = vcvt.f32.s32 %v3064
        %v3071 = vshll.u32 %v3070, 16
        %v3072 = vadd.s32 %v3071, %v3069
        %v3073 = vsel %vm210, %v2967, 2147483647
        %v3074 = vand.u32 %v3073, 65535
        %v3075 = vshra.s32 %v3073, 16
        %v3076 = vcvt.s32.f32 %v3074
        %v3077 = vcvt.s32.f32 %v3075
        %3078 = vmin.xlane.f32.xlu0 %v3077
        %v3079 = vpop.xlane.xlu0 %3078
        %vm3080 = vcmp.eq.f32.partialorder %v3077, %v3079
        %v3081 = vsel %vm3080, %v3076, inf
        %3082 = vmin.xlane.f32.xlu0 %v3081
        %v3083 = vpop.xlane.xlu0 %3082
        %v3084 = vcvt.f32.s32 %v3083
        %v3085 = vcvt.f32.s32 %v3079
        %v3086 = vshll.u32 %v3085, 16
        %v3087 = vadd.s32 %v3086, %v3084
        %vm3088 = vcmp.eq.s32.totalorder %v2982, %v208
        %vm3089 = vcmp.eq.s32.totalorder %v2997, %v208
        %vm3090 = vcmp.eq.s32.totalorder %v3012, %v208
        %vm3091 = vcmp.eq.s32.totalorder %v3027, %v208
        %vm3092 = vcmp.eq.s32.totalorder %v3042, %v208
        %vm3093 = vcmp.eq.s32.totalorder %v3057, %v208
        %vm3094 = vcmp.eq.s32.totalorder %v3072, %v208
        %vm3095 = vcmp.eq.s32.totalorder %v3087, %v208
        %v3096 = vsel %vm3088, 1, 0
        %v3097 = vsel %vm3089, 1, 0
        %v3098 = vsel %vm3090, 1, 0
        %v3099 = vsel %vm3091, 1, 0
        %v3100 = vsel %vm3092, 1, 0
        %v3101 = vsel %vm3093, 1, 0
        %v3102 = vsel %vm3094, 1, 0
        %v3103 = vsel %vm3095, 1, 0
        %v3104 = vcvt.s32.f32 %v3096
        %v3105 = vcvt.s32.f32 %v3097
        %v3106 = vcvt.s32.f32 %v3098
        %v3107 = vcvt.s32.f32 %v3099
        %v3108 = vcvt.s32.f32 %v3100
        %v3109 = vcvt.s32.f32 %v3101
        %v3110 = vcvt.s32.f32 %v3102
        %v3111 = vcvt.s32.f32 %v3103
        %3112 = vxpose.xlu0.b32.start [1/16] %v3104, 128
        %3113 = vxpose.xlu0.b32.cont [2/16] %v3105, 128
        %3114 = vxpose.xlu0.b32.cont [3/16] %v3106, 128
        %3115 = vxpose.xlu0.b32.cont [4/16] %v3107, 128
        %3116 = vxpose.xlu0.b32.cont [5/16] %v3108, 128
        %3117 = vxpose.xlu0.b32.cont [6/16] %v3109, 128
        %3118 = vxpose.xlu0.b32.cont [7/16] %v3110, 128
        %3119 = vxpose.xlu0.b32.cont [8/16] %v3111, 128
        %3120 = vxpose.xlu0.b32.cont [9/16] 0.0, 128
        %3121 = vxpose.xlu0.b32.cont [10/16] 0.0, 128
        %3122 = vxpose.xlu0.b32.cont [11/16] 0.0, 128
        %3123 = vxpose.xlu0.b32.cont [12/16] 0.0, 128
        %3124 = vxpose.xlu0.b32.cont [13/16] 0.0, 128
        %3125 = vxpose.xlu0.b32.cont [14/16] 0.0, 128
        %3126 = vxpose.xlu0.b32.cont [15/16] 0.0, 128
        %3127 = vxpose.xlu0.b32.end [16/16] 0.0, 128
        %v3128 = vpop.trf.xlu0
        %v3129 = vpop.trf.xlu0
        %v3130 = vpop.trf.xlu0
        %v3131 = vpop.trf.xlu0
        %v3132 = vpop.trf.xlu0
        %v3133 = vpop.trf.xlu0
        %v3134 = vpop.trf.xlu0
        %v3135 = vpop.trf.xlu0
        %v3136 = vpop.trf.xlu0
        %v3137 = vpop.trf.xlu0
        %v3138 = vpop.trf.xlu0
        %v3139 = vpop.trf.xlu0
        %v3140 = vpop.trf.xlu0
        %v3141 = vpop.trf.xlu0
        %v3142 = vpop.trf.xlu0
        %v3143 = vpop.trf.xlu0
        %v3145 = vsel %vm539, %v3128, 0
        %3147 = vmatpush.msra.mxu0 0.0
        %3148 = vmatpush.msra.mxu0 0.0
        %3149 = vmatpush.msra.mxu0 0.0
        %3150 = vmatpush.msra.mxu0 0.0
        %3151 = vmatpush.msra.mxu0 0.0
        %3152 = vmatpush.msra.mxu0 0.0
        %3153 = vmatpush.msra.mxu0 0.0
        %3154 = vmatpush.msra.mxu0 0.0
        %3155 = vmatpush.msra.mxu0 %v206
        %3156 = vmatpush.msra.mxu0 %v205
        %3157 = vmatpush.msra.mxu0 %v204
        %3158 = vmatpush.msra.mxu0 %v203
        %3159 = vmatpush.msra.mxu0 %v202
        %3160 = vmatpush.msra.mxu0 %v201
        %3161 = vmatpush.msra.mxu0 %v200
        %3162 = vmatpush.msra.mxu0 %v199
        %3163 = vmatmul.f32.gmra.mxu0 %v3145
        %v3164 = vpop.f32.mrf.mxu0
        %v3165 = vadd.f32 0.0, %v3164
        %3166 = vdwg.mxu0
        %3167 = vmatpush.msra.mxu0 0.0
        %3168 = vmatpush.msra.mxu0 0.0
        %3169 = vmatpush.msra.mxu0 0.0
        %3170 = vmatpush.msra.mxu0 0.0
        %3171 = vmatpush.msra.mxu0 0.0
        %3172 = vmatpush.msra.mxu0 0.0
        %3173 = vmatpush.msra.mxu0 0.0
        %3174 = vmatpush.msra.mxu0 0.0
        %3175 = vmatpush.msra.mxu0 1.0
        %3176 = vmatpush.msra.mxu0 1.0
        %3177 = vmatpush.msra.mxu0 1.0
        %3178 = vmatpush.msra.mxu0 1.0
        %3179 = vmatpush.msra.mxu0 1.0
        %3180 = vmatpush.msra.mxu0 1.0
        %3181 = vmatpush.msra.mxu0 1.0
        %3182 = vmatpush.msra.mxu0 1.0
        %3183 = vmatmul.f32.gmra.mxu0 %v3145
        %v3184 = vpop.f32.mrf.mxu0
        %v3185 = vadd.f32 0.0, %v3184
        %3186 = vdwg.mxu0
        %vm3187 = vcmp.gt.f32.partialorder %v3185, 0.0
        %v3188 = vmax.f32 %v3185, 1.0
        %3190 = vset.pattern.permute.xlu0 0
        %3191 = vperm.xlu0 %3190, %v3188
        %v3192 = vpop.permute.xlu0 %3191
        %v3194 = vrcp.pop %v3192
        %v3195 = vmul.f32 %v3192, %v3194
        %v3196 = vsub.f32 1.0, %v3195
        %v3197 = vmul.f32 %v3194, %v3196
        %v3198 = vadd.f32 %v3194, %v3197
        %vm3199 = vweird.f32 %v3192
        %vm3200 = vweird.f32 %v3194
        %vm3201 = vmor %vm3199, %vm3200
        %v3202 = vsel %vm3201, %v3194, %v3198
        %v3203 = vand.u32 2147483647, %v3192
        %vm3204 = vcmp.eq.f32.partialorder %v3203, 8.507059e+37
        %v3205 = vand.u32 %v3192, 2147483648
        %v3206 = vor.u32 1.1754944e-38, %v3205
        %v3207 = vsel %vm3204, %v3206, %v3202
        %v3208 = vmul.f32 %v3165, %v3207
        %v3209 = vsel %vm3187, 1, 0
        %3210 = vset.pattern.permute.xlu0 0
        %3211 = vperm.xlu0 %3210, %v3209
        %v3212 = vpop.permute.xlu0 %3211
        %vm3213 = vcmp.eq.s32.totalorder %v3212, 1
        %v3214 = vsel %vm3213, %v3208, %v2842
        %v3216 = vsel %vm210, %v3214, 0
        %3218 = vmatpush.xpose.msra.mxu0 0.0
        %3219 = vmatpush.xpose.msra.mxu0 0.0
        %3220 = vmatpush.xpose.msra.mxu0 0.0
        %3221 = vmatpush.xpose.msra.mxu0 0.0
        %3222 = vmatpush.xpose.msra.mxu0 0.0
        %3223 = vmatpush.xpose.msra.mxu0 0.0
        %3224 = vmatpush.xpose.msra.mxu0 0.0
        %3225 = vmatpush.xpose.msra.mxu0 0.0
        %3226 = vmatpush.xpose.msra.mxu0 0.0
        %3227 = vmatpush.xpose.msra.mxu0 0.0
        %3228 = vmatpush.xpose.msra.mxu0 0.0
        %3229 = vmatpush.xpose.msra.mxu0 0.0
        %3230 = vmatpush.xpose.msra.mxu0 0.0
        %3231 = vmatpush.xpose.msra.mxu0 0.0
        %3232 = vmatpush.xpose.msra.mxu0 0.0
        %3233 = vmatpush.xpose.msra.mxu0 %v3216
        %3234 = vmatmul.f32.gmra.mxu0 %v212
        %v3235 = vpop.f32.mrf.mxu0
        %v3236 = vadd.f32 0.0, %v3235
        %3237 = vmatmul.f32.gmra.mxu0 %v215
        %v3238 = vpop.f32.mrf.mxu0
        %v3239 = vadd.f32 0.0, %v3238
        %3240 = vmatmul.f32.gmra.mxu0 %v218
        %v3241 = vpop.f32.mrf.mxu0
        %v3242 = vadd.f32 0.0, %v3241
        %3243 = vmatmul.f32.gmra.mxu0 %v221
        %v3244 = vpop.f32.mrf.mxu0
        %v3245 = vadd.f32 0.0, %v3244
        %3246 = vmatmul.f32.gmra.mxu0 %v224
        %v3247 = vpop.f32.mrf.mxu0
        %v3248 = vadd.f32 0.0, %v3247
        %3249 = vmatmul.f32.gmra.mxu0 %v227
        %v3250 = vpop.f32.mrf.mxu0
        %v3251 = vadd.f32 0.0, %v3250
        %3252 = vmatmul.f32.gmra.mxu0 %v230
        %v3253 = vpop.f32.mrf.mxu0
        %v3254 = vadd.f32 0.0, %v3253
        %3255 = vmatmul.f32.gmra.mxu0 %v233
        %v3256 = vpop.f32.mrf.mxu0
        %v3257 = vadd.f32 0.0, %v3256
        %3258 = vdwg.mxu0
        %v3259 = vmul.f32 %v3214, %v3214
        %v3261 = vsel %vm210, %v3259, 0
        %3263 = vmatpush.xpose.msra.mxu0 0.0
        %3264 = vmatpush.xpose.msra.mxu0 0.0
        %3265 = vmatpush.xpose.msra.mxu0 0.0
        %3266 = vmatpush.xpose.msra.mxu0 0.0
        %3267 = vmatpush.xpose.msra.mxu0 0.0
        %3268 = vmatpush.xpose.msra.mxu0 0.0
        %3269 = vmatpush.xpose.msra.mxu0 0.0
        %3270 = vmatpush.xpose.msra.mxu0 0.0
        %3271 = vmatpush.xpose.msra.mxu0 0.0
        %3272 = vmatpush.xpose.msra.mxu0 0.0
        %3273 = vmatpush.xpose.msra.mxu0 0.0
        %3274 = vmatpush.xpose.msra.mxu0 0.0
        %3275 = vmatpush.xpose.msra.mxu0 0.0
        %3276 = vmatpush.xpose.msra.mxu0 0.0
        %3277 = vmatpush.xpose.msra.mxu0 0.0
        %3278 = vmatpush.xpose.msra.mxu0 %v3261
        %3279 = vmatmul.f32.gmra.mxu0 %v281
        %v3280 = vpop.f32.mrf.mxu0
        %v3281 = vadd.f32 0.0, %v3280
        %3282 = vdwg.mxu0
        %v3283 = vmul.f32 %v3236, 2.0
        %v3284 = vmul.f32 %v3239, 2.0
        %v3285 = vmul.f32 %v3242, 2.0
        %v3286 = vmul.f32 %v3245, 2.0
        %v3287 = vmul.f32 %v3248, 2.0
        %v3288 = vmul.f32 %v3251, 2.0
        %v3289 = vmul.f32 %v3254, 2.0
        %v3290 = vmul.f32 %v3257, 2.0
        %v3291 = vperm.slane %v3281, 0
        %v3292 = vsub.f32 %v3291, %v3283
        %v3293 = vsub.f32 %v3291, %v3284
        %v3294 = vsub.f32 %v3291, %v3285
        %v3295 = vsub.f32 %v3291, %v3286
        %v3296 = vsub.f32 %v3291, %v3287
        %v3297 = vsub.f32 %v3291, %v3288
        %v3298 = vsub.f32 %v3291, %v3289
        %v3299 = vsub.f32 %v3291, %v3290
        %v3300 = vsel %vm210, %v3292, inf
        %3301 = vmin.xlane.f32.xlu0 %v3300
        %v3302 = vpop.xlane.xlu0 %3301
        %v3303 = vsel %vm210, %v3293, inf
        %3304 = vmin.xlane.f32.xlu0 %v3303
        %v3305 = vpop.xlane.xlu0 %3304
        %v3306 = vsel %vm210, %v3294, inf
        %3307 = vmin.xlane.f32.xlu0 %v3306
        %v3308 = vpop.xlane.xlu0 %3307
        %v3309 = vsel %vm210, %v3295, inf
        %3310 = vmin.xlane.f32.xlu0 %v3309
        %v3311 = vpop.xlane.xlu0 %3310
        %v3312 = vsel %vm210, %v3296, inf
        %3313 = vmin.xlane.f32.xlu0 %v3312
        %v3314 = vpop.xlane.xlu0 %3313
        %v3315 = vsel %vm210, %v3297, inf
        %3316 = vmin.xlane.f32.xlu0 %v3315
        %v3317 = vpop.xlane.xlu0 %3316
        %v3318 = vsel %vm210, %v3298, inf
        %3319 = vmin.xlane.f32.xlu0 %v3318
        %v3320 = vpop.xlane.xlu0 %3319
        %v3321 = vsel %vm210, %v3299, inf
        %3322 = vmin.xlane.f32.xlu0 %v3321
        %v3323 = vpop.xlane.xlu0 %3322
        %vm3324 = vcmp.le.f32.partialorder %v3292, %v3302
        %vm3325 = vcmp.le.f32.partialorder %v3293, %v3305
        %vm3326 = vcmp.le.f32.partialorder %v3294, %v3308
        %vm3327 = vcmp.le.f32.partialorder %v3295, %v3311
        %vm3328 = vcmp.le.f32.partialorder %v3296, %v3314
        %vm3329 = vcmp.le.f32.partialorder %v3297, %v3317
        %vm3330 = vcmp.le.f32.partialorder %v3298, %v3320
        %vm3331 = vcmp.le.f32.partialorder %v3299, %v3323
        %v3332 = vsel %vm3324, %v208, 8
        %v3333 = vsel %vm3325, %v208, 8
        %v3334 = vsel %vm3326, %v208, 8
        %v3335 = vsel %vm3327, %v208, 8
        %v3336 = vsel %vm3328, %v208, 8
        %v3337 = vsel %vm3329, %v208, 8
        %v3338 = vsel %vm3330, %v208, 8
        %v3339 = vsel %vm3331, %v208, 8
        %v3340 = vsel %vm210, %v3332, 2147483647
        %v3341 = vand.u32 %v3340, 65535
        %v3342 = vshra.s32 %v3340, 16
        %v3343 = vcvt.s32.f32 %v3341
        %v3344 = vcvt.s32.f32 %v3342
        %3345 = vmin.xlane.f32.xlu0 %v3344
        %v3346 = vpop.xlane.xlu0 %3345
        %vm3347 = vcmp.eq.f32.partialorder %v3344, %v3346
        %v3348 = vsel %vm3347, %v3343, inf
        %3349 = vmin.xlane.f32.xlu0 %v3348
        %v3350 = vpop.xlane.xlu0 %3349
        %v3351 = vcvt.f32.s32 %v3350
        %v3352 = vcvt.f32.s32 %v3346
        %v3353 = vshll.u32 %v3352, 16
        %v3354 = vadd.s32 %v3353, %v3351
        %v3355 = vsel %vm210, %v3333, 2147483647
        %v3356 = vand.u32 %v3355, 65535
        %v3357 = vshra.s32 %v3355, 16
        %v3358 = vcvt.s32.f32 %v3356
        %v3359 = vcvt.s32.f32 %v3357
        %3360 = vmin.xlane.f32.xlu0 %v3359
        %v3361 = vpop.xlane.xlu0 %3360
        %vm3362 = vcmp.eq.f32.partialorder %v3359, %v3361
        %v3363 = vsel %vm3362, %v3358, inf
        %3364 = vmin.xlane.f32.xlu0 %v3363
        %v3365 = vpop.xlane.xlu0 %3364
        %v3366 = vcvt.f32.s32 %v3365
        %v3367 = vcvt.f32.s32 %v3361
        %v3368 = vshll.u32 %v3367, 16
        %v3369 = vadd.s32 %v3368, %v3366
        %v3370 = vsel %vm210, %v3334, 2147483647
        %v3371 = vand.u32 %v3370, 65535
        %v3372 = vshra.s32 %v3370, 16
        %v3373 = vcvt.s32.f32 %v3371
        %v3374 = vcvt.s32.f32 %v3372
        %3375 = vmin.xlane.f32.xlu0 %v3374
        %v3376 = vpop.xlane.xlu0 %3375
        %vm3377 = vcmp.eq.f32.partialorder %v3374, %v3376
        %v3378 = vsel %vm3377, %v3373, inf
        %3379 = vmin.xlane.f32.xlu0 %v3378
        %v3380 = vpop.xlane.xlu0 %3379
        %v3381 = vcvt.f32.s32 %v3380
        %v3382 = vcvt.f32.s32 %v3376
        %v3383 = vshll.u32 %v3382, 16
        %v3384 = vadd.s32 %v3383, %v3381
        %v3385 = vsel %vm210, %v3335, 2147483647
        %v3386 = vand.u32 %v3385, 65535
        %v3387 = vshra.s32 %v3385, 16
        %v3388 = vcvt.s32.f32 %v3386
        %v3389 = vcvt.s32.f32 %v3387
        %3390 = vmin.xlane.f32.xlu0 %v3389
        %v3391 = vpop.xlane.xlu0 %3390
        %vm3392 = vcmp.eq.f32.partialorder %v3389, %v3391
        %v3393 = vsel %vm3392, %v3388, inf
        %3394 = vmin.xlane.f32.xlu0 %v3393
        %v3395 = vpop.xlane.xlu0 %3394
        %v3396 = vcvt.f32.s32 %v3395
        %v3397 = vcvt.f32.s32 %v3391
        %v3398 = vshll.u32 %v3397, 16
        %v3399 = vadd.s32 %v3398, %v3396
        %v3400 = vsel %vm210, %v3336, 2147483647
        %v3401 = vand.u32 %v3400, 65535
        %v3402 = vshra.s32 %v3400, 16
        %v3403 = vcvt.s32.f32 %v3401
        %v3404 = vcvt.s32.f32 %v3402
        %3405 = vmin.xlane.f32.xlu0 %v3404
        %v3406 = vpop.xlane.xlu0 %3405
        %vm3407 = vcmp.eq.f32.partialorder %v3404, %v3406
        %v3408 = vsel %vm3407, %v3403, inf
        %3409 = vmin.xlane.f32.xlu0 %v3408
        %v3410 = vpop.xlane.xlu0 %3409
        %v3411 = vcvt.f32.s32 %v3410
        %v3412 = vcvt.f32.s32 %v3406
        %v3413 = vshll.u32 %v3412, 16
        %v3414 = vadd.s32 %v3413, %v3411
        %v3415 = vsel %vm210, %v3337, 2147483647
        %v3416 = vand.u32 %v3415, 65535
        %v3417 = vshra.s32 %v3415, 16
        %v3418 = vcvt.s32.f32 %v3416
        %v3419 = vcvt.s32.f32 %v3417
        %3420 = vmin.xlane.f32.xlu0 %v3419
        %v3421 = vpop.xlane.xlu0 %3420
        %vm3422 = vcmp.eq.f32.partialorder %v3419, %v3421
        %v3423 = vsel %vm3422, %v3418, inf
        %3424 = vmin.xlane.f32.xlu0 %v3423
        %v3425 = vpop.xlane.xlu0 %3424
        %v3426 = vcvt.f32.s32 %v3425
        %v3427 = vcvt.f32.s32 %v3421
        %v3428 = vshll.u32 %v3427, 16
        %v3429 = vadd.s32 %v3428, %v3426
        %v3430 = vsel %vm210, %v3338, 2147483647
        %v3431 = vand.u32 %v3430, 65535
        %v3432 = vshra.s32 %v3430, 16
        %v3433 = vcvt.s32.f32 %v3431
        %v3434 = vcvt.s32.f32 %v3432
        %3435 = vmin.xlane.f32.xlu0 %v3434
        %v3436 = vpop.xlane.xlu0 %3435
        %vm3437 = vcmp.eq.f32.partialorder %v3434, %v3436
        %v3438 = vsel %vm3437, %v3433, inf
        %3439 = vmin.xlane.f32.xlu0 %v3438
        %v3440 = vpop.xlane.xlu0 %3439
        %v3441 = vcvt.f32.s32 %v3440
        %v3442 = vcvt.f32.s32 %v3436
        %v3443 = vshll.u32 %v3442, 16
        %v3444 = vadd.s32 %v3443, %v3441
        %v3445 = vsel %vm210, %v3339, 2147483647
        %v3446 = vand.u32 %v3445, 65535
        %v3447 = vshra.s32 %v3445, 16
        %v3448 = vcvt.s32.f32 %v3446
        %v3449 = vcvt.s32.f32 %v3447
        %3450 = vmin.xlane.f32.xlu0 %v3449
        %v3451 = vpop.xlane.xlu0 %3450
        %vm3452 = vcmp.eq.f32.partialorder %v3449, %v3451
        %v3453 = vsel %vm3452, %v3448, inf
        %3454 = vmin.xlane.f32.xlu0 %v3453
        %v3455 = vpop.xlane.xlu0 %3454
        %v3456 = vcvt.f32.s32 %v3455
        %v3457 = vcvt.f32.s32 %v3451
        %v3458 = vshll.u32 %v3457, 16
        %v3459 = vadd.s32 %v3458, %v3456
        %vm3460 = vcmp.eq.s32.totalorder %v3354, %v208
        %vm3461 = vcmp.eq.s32.totalorder %v3369, %v208
        %vm3462 = vcmp.eq.s32.totalorder %v3384, %v208
        %vm3463 = vcmp.eq.s32.totalorder %v3399, %v208
        %vm3464 = vcmp.eq.s32.totalorder %v3414, %v208
        %vm3465 = vcmp.eq.s32.totalorder %v3429, %v208
        %vm3466 = vcmp.eq.s32.totalorder %v3444, %v208
        %vm3467 = vcmp.eq.s32.totalorder %v3459, %v208
        %v3468 = vsel %vm3460, 1, 0
        %v3469 = vsel %vm3461, 1, 0
        %v3470 = vsel %vm3462, 1, 0
        %v3471 = vsel %vm3463, 1, 0
        %v3472 = vsel %vm3464, 1, 0
        %v3473 = vsel %vm3465, 1, 0
        %v3474 = vsel %vm3466, 1, 0
        %v3475 = vsel %vm3467, 1, 0
        %v3476 = vcvt.s32.f32 %v3468
        %v3477 = vcvt.s32.f32 %v3469
        %v3478 = vcvt.s32.f32 %v3470
        %v3479 = vcvt.s32.f32 %v3471
        %v3480 = vcvt.s32.f32 %v3472
        %v3481 = vcvt.s32.f32 %v3473
        %v3482 = vcvt.s32.f32 %v3474
        %v3483 = vcvt.s32.f32 %v3475
        %3484 = vxpose.xlu0.b32.start [1/16] %v3476, 128
        %3485 = vxpose.xlu0.b32.cont [2/16] %v3477, 128
        %3486 = vxpose.xlu0.b32.cont [3/16] %v3478, 128
        %3487 = vxpose.xlu0.b32.cont [4/16] %v3479, 128
        %3488 = vxpose.xlu0.b32.cont [5/16] %v3480, 128
        %3489 = vxpose.xlu0.b32.cont [6/16] %v3481, 128
        %3490 = vxpose.xlu0.b32.cont [7/16] %v3482, 128
        %3491 = vxpose.xlu0.b32.cont [8/16] %v3483, 128
        %3492 = vxpose.xlu0.b32.cont [9/16] 0.0, 128
        %3493 = vxpose.xlu0.b32.cont [10/16] 0.0, 128
        %3494 = vxpose.xlu0.b32.cont [11/16] 0.0, 128
        %3495 = vxpose.xlu0.b32.cont [12/16] 0.0, 128
        %3496 = vxpose.xlu0.b32.cont [13/16] 0.0, 128
        %3497 = vxpose.xlu0.b32.cont [14/16] 0.0, 128
        %3498 = vxpose.xlu0.b32.cont [15/16] 0.0, 128
        %3499 = vxpose.xlu0.b32.end [16/16] 0.0, 128
        %v3500 = vpop.trf.xlu0
        %v3501 = vpop.trf.xlu0
        %v3502 = vpop.trf.xlu0
        %v3503 = vpop.trf.xlu0
        %v3504 = vpop.trf.xlu0
        %v3505 = vpop.trf.xlu0
        %v3506 = vpop.trf.xlu0
        %v3507 = vpop.trf.xlu0
        %v3508 = vpop.trf.xlu0
        %v3509 = vpop.trf.xlu0
        %v3510 = vpop.trf.xlu0
        %v3511 = vpop.trf.xlu0
        %v3512 = vpop.trf.xlu0
        %v3513 = vpop.trf.xlu0
        %v3514 = vpop.trf.xlu0
        %v3515 = vpop.trf.xlu0
        %v3517 = vsel %vm539, %v3500, 0
        %3519 = vmatpush.msra.mxu0 0.0
        %3520 = vmatpush.msra.mxu0 0.0
        %3521 = vmatpush.msra.mxu0 0.0
        %3522 = vmatpush.msra.mxu0 0.0
        %3523 = vmatpush.msra.mxu0 0.0
        %3524 = vmatpush.msra.mxu0 0.0
        %3525 = vmatpush.msra.mxu0 0.0
        %3526 = vmatpush.msra.mxu0 0.0
        %3527 = vmatpush.msra.mxu0 %v206
        %3528 = vmatpush.msra.mxu0 %v205
        %3529 = vmatpush.msra.mxu0 %v204
        %3530 = vmatpush.msra.mxu0 %v203
        %3531 = vmatpush.msra.mxu0 %v202
        %3532 = vmatpush.msra.mxu0 %v201
        %3533 = vmatpush.msra.mxu0 %v200
        %3534 = vmatpush.msra.mxu0 %v199
        %3535 = vmatmul.f32.gmra.mxu0 %v3517
        %v3536 = vpop.f32.mrf.mxu0
        %v3537 = vadd.f32 0.0, %v3536
        %3538 = vdwg.mxu0
        %3539 = vmatpush.msra.mxu0 0.0
        %3540 = vmatpush.msra.mxu0 0.0
        %3541 = vmatpush.msra.mxu0 0.0
        %3542 = vmatpush.msra.mxu0 0.0
        %3543 = vmatpush.msra.mxu0 0.0
        %3544 = vmatpush.msra.mxu0 0.0
        %3545 = vmatpush.msra.mxu0 0.0
        %3546 = vmatpush.msra.mxu0 0.0
        %3547 = vmatpush.msra.mxu0 1.0
        %3548 = vmatpush.msra.mxu0 1.0
        %3549 = vmatpush.msra.mxu0 1.0
        %3550 = vmatpush.msra.mxu0 1.0
        %3551 = vmatpush.msra.mxu0 1.0
        %3552 = vmatpush.msra.mxu0 1.0
        %3553 = vmatpush.msra.mxu0 1.0
        %3554 = vmatpush.msra.mxu0 1.0
        %3555 = vmatmul.f32.gmra.mxu0 %v3517
        %v3556 = vpop.f32.mrf.mxu0
        %v3557 = vadd.f32 0.0, %v3556
        %3558 = vdwg.mxu0
        %vm3559 = vcmp.gt.f32.partialorder %v3557, 0.0
        %v3560 = vmax.f32 %v3557, 1.0
        %3562 = vset.pattern.permute.xlu0 0
        %3563 = vperm.xlu0 %3562, %v3560
        %v3564 = vpop.permute.xlu0 %3563
        %v3566 = vrcp.pop %v3564
        %v3567 = vmul.f32 %v3564, %v3566
        %v3568 = vsub.f32 1.0, %v3567
        %v3569 = vmul.f32 %v3566, %v3568
        %v3570 = vadd.f32 %v3566, %v3569
        %vm3571 = vweird.f32 %v3564
        %vm3572 = vweird.f32 %v3566
        %vm3573 = vmor %vm3571, %vm3572
        %v3574 = vsel %vm3573, %v3566, %v3570
        %v3575 = vand.u32 2147483647, %v3564
        %vm3576 = vcmp.eq.f32.partialorder %v3575, 8.507059e+37
        %v3577 = vand.u32 %v3564, 2147483648
        %v3578 = vor.u32 1.1754944e-38, %v3577
        %v3579 = vsel %vm3576, %v3578, %v3574
        %v3580 = vmul.f32 %v3537, %v3579
        %v3581 = vsel %vm3559, 1, 0
        %3582 = vset.pattern.permute.xlu0 0
        %3583 = vperm.xlu0 %3582, %v3581
        %v3584 = vpop.permute.xlu0 %3583
        %vm3585 = vcmp.eq.s32.totalorder %v3584, 1
        %v3586 = vsel %vm3585, %v3580, %v3214
        %v3588 = vsel %vm210, %v3586, 0
        %3590 = vmatpush.xpose.msra.mxu0 0.0
        %3591 = vmatpush.xpose.msra.mxu0 0.0
        %3592 = vmatpush.xpose.msra.mxu0 0.0
        %3593 = vmatpush.xpose.msra.mxu0 0.0
        %3594 = vmatpush.xpose.msra.mxu0 0.0
        %3595 = vmatpush.xpose.msra.mxu0 0.0
        %3596 = vmatpush.xpose.msra.mxu0 0.0
        %3597 = vmatpush.xpose.msra.mxu0 0.0
        %3598 = vmatpush.xpose.msra.mxu0 0.0
        %3599 = vmatpush.xpose.msra.mxu0 0.0
        %3600 = vmatpush.xpose.msra.mxu0 0.0
        %3601 = vmatpush.xpose.msra.mxu0 0.0
        %3602 = vmatpush.xpose.msra.mxu0 0.0
        %3603 = vmatpush.xpose.msra.mxu0 0.0
        %3604 = vmatpush.xpose.msra.mxu0 0.0
        %3605 = vmatpush.xpose.msra.mxu0 %v3588
        %3606 = vmatmul.f32.gmra.mxu0 %v212
        %v3607 = vpop.f32.mrf.mxu0
        %v3608 = vadd.f32 0.0, %v3607
        %3609 = vmatmul.f32.gmra.mxu0 %v215
        %v3610 = vpop.f32.mrf.mxu0
        %v3611 = vadd.f32 0.0, %v3610
        %3612 = vmatmul.f32.gmra.mxu0 %v218
        %v3613 = vpop.f32.mrf.mxu0
        %v3614 = vadd.f32 0.0, %v3613
        %3615 = vmatmul.f32.gmra.mxu0 %v221
        %v3616 = vpop.f32.mrf.mxu0
        %v3617 = vadd.f32 0.0, %v3616
        %3618 = vmatmul.f32.gmra.mxu0 %v224
        %v3619 = vpop.f32.mrf.mxu0
        %v3620 = vadd.f32 0.0, %v3619
        %3621 = vmatmul.f32.gmra.mxu0 %v227
        %v3622 = vpop.f32.mrf.mxu0
        %v3623 = vadd.f32 0.0, %v3622
        %3624 = vmatmul.f32.gmra.mxu0 %v230
        %v3625 = vpop.f32.mrf.mxu0
        %v3626 = vadd.f32 0.0, %v3625
        %3627 = vmatmul.f32.gmra.mxu0 %v233
        %v3628 = vpop.f32.mrf.mxu0
        %v3629 = vadd.f32 0.0, %v3628
        %3630 = vdwg.mxu0
        %v3631 = vmul.f32 %v3586, %v3586
        %v3633 = vsel %vm210, %v3631, 0
        %3635 = vmatpush.xpose.msra.mxu0 0.0
        %3636 = vmatpush.xpose.msra.mxu0 0.0
        %3637 = vmatpush.xpose.msra.mxu0 0.0
        %3638 = vmatpush.xpose.msra.mxu0 0.0
        %3639 = vmatpush.xpose.msra.mxu0 0.0
        %3640 = vmatpush.xpose.msra.mxu0 0.0
        %3641 = vmatpush.xpose.msra.mxu0 0.0
        %3642 = vmatpush.xpose.msra.mxu0 0.0
        %3643 = vmatpush.xpose.msra.mxu0 0.0
        %3644 = vmatpush.xpose.msra.mxu0 0.0
        %3645 = vmatpush.xpose.msra.mxu0 0.0
        %3646 = vmatpush.xpose.msra.mxu0 0.0
        %3647 = vmatpush.xpose.msra.mxu0 0.0
        %3648 = vmatpush.xpose.msra.mxu0 0.0
        %3649 = vmatpush.xpose.msra.mxu0 0.0
        %3650 = vmatpush.xpose.msra.mxu0 %v3633
        %3651 = vmatmul.f32.gmra.mxu0 %v281
        %v3652 = vpop.f32.mrf.mxu0
        %v3653 = vadd.f32 0.0, %v3652
        %3654 = vdwg.mxu0
        %v3655 = vmul.f32 %v3608, 2.0
        %v3656 = vmul.f32 %v3611, 2.0
        %v3657 = vmul.f32 %v3614, 2.0
        %v3658 = vmul.f32 %v3617, 2.0
        %v3659 = vmul.f32 %v3620, 2.0
        %v3660 = vmul.f32 %v3623, 2.0
        %v3661 = vmul.f32 %v3626, 2.0
        %v3662 = vmul.f32 %v3629, 2.0
        %v3663 = vperm.slane %v3653, 0
        %v3664 = vsub.f32 %v3663, %v3655
        %v3665 = vsub.f32 %v3663, %v3656
        %v3666 = vsub.f32 %v3663, %v3657
        %v3667 = vsub.f32 %v3663, %v3658
        %v3668 = vsub.f32 %v3663, %v3659
        %v3669 = vsub.f32 %v3663, %v3660
        %v3670 = vsub.f32 %v3663, %v3661
        %v3671 = vsub.f32 %v3663, %v3662
        %v3672 = vsel %vm210, %v3664, inf
        %3673 = vmin.xlane.f32.xlu0 %v3672
        %v3674 = vpop.xlane.xlu0 %3673
        %v3675 = vsel %vm210, %v3665, inf
        %3676 = vmin.xlane.f32.xlu0 %v3675
        %v3677 = vpop.xlane.xlu0 %3676
        %v3678 = vsel %vm210, %v3666, inf
        %3679 = vmin.xlane.f32.xlu0 %v3678
        %v3680 = vpop.xlane.xlu0 %3679
        %v3681 = vsel %vm210, %v3667, inf
        %3682 = vmin.xlane.f32.xlu0 %v3681
        %v3683 = vpop.xlane.xlu0 %3682
        %v3684 = vsel %vm210, %v3668, inf
        %3685 = vmin.xlane.f32.xlu0 %v3684
        %v3686 = vpop.xlane.xlu0 %3685
        %v3687 = vsel %vm210, %v3669, inf
        %3688 = vmin.xlane.f32.xlu0 %v3687
        %v3689 = vpop.xlane.xlu0 %3688
        %v3690 = vsel %vm210, %v3670, inf
        %3691 = vmin.xlane.f32.xlu0 %v3690
        %v3692 = vpop.xlane.xlu0 %3691
        %v3693 = vsel %vm210, %v3671, inf
        %3694 = vmin.xlane.f32.xlu0 %v3693
        %v3695 = vpop.xlane.xlu0 %3694
        %vm3696 = vcmp.le.f32.partialorder %v3664, %v3674
        %vm3697 = vcmp.le.f32.partialorder %v3665, %v3677
        %vm3698 = vcmp.le.f32.partialorder %v3666, %v3680
        %vm3699 = vcmp.le.f32.partialorder %v3667, %v3683
        %vm3700 = vcmp.le.f32.partialorder %v3668, %v3686
        %vm3701 = vcmp.le.f32.partialorder %v3669, %v3689
        %vm3702 = vcmp.le.f32.partialorder %v3670, %v3692
        %vm3703 = vcmp.le.f32.partialorder %v3671, %v3695
        %v3704 = vsel %vm3696, %v208, 8
        %v3705 = vsel %vm3697, %v208, 8
        %v3706 = vsel %vm3698, %v208, 8
        %v3707 = vsel %vm3699, %v208, 8
        %v3708 = vsel %vm3700, %v208, 8
        %v3709 = vsel %vm3701, %v208, 8
        %v3710 = vsel %vm3702, %v208, 8
        %v3711 = vsel %vm3703, %v208, 8
        %v3712 = vsel %vm210, %v3704, 2147483647
        %v3713 = vand.u32 %v3712, 65535
        %v3714 = vshra.s32 %v3712, 16
        %v3715 = vcvt.s32.f32 %v3713
        %v3716 = vcvt.s32.f32 %v3714
        %3717 = vmin.xlane.f32.xlu0 %v3716
        %v3718 = vpop.xlane.xlu0 %3717
        %vm3719 = vcmp.eq.f32.partialorder %v3716, %v3718
        %v3720 = vsel %vm3719, %v3715, inf
        %3721 = vmin.xlane.f32.xlu0 %v3720
        %v3722 = vpop.xlane.xlu0 %3721
        %v3723 = vcvt.f32.s32 %v3722
        %v3724 = vcvt.f32.s32 %v3718
        %v3725 = vshll.u32 %v3724, 16
        %v3726 = vadd.s32 %v3725, %v3723
        %v3727 = vsel %vm210, %v3705, 2147483647
        %v3728 = vand.u32 %v3727, 65535
        %v3729 = vshra.s32 %v3727, 16
        %v3730 = vcvt.s32.f32 %v3728
        %v3731 = vcvt.s32.f32 %v3729
        %3732 = vmin.xlane.f32.xlu0 %v3731
        %v3733 = vpop.xlane.xlu0 %3732
        %vm3734 = vcmp.eq.f32.partialorder %v3731, %v3733
        %v3735 = vsel %vm3734, %v3730, inf
        %3736 = vmin.xlane.f32.xlu0 %v3735
        %v3737 = vpop.xlane.xlu0 %3736
        %v3738 = vcvt.f32.s32 %v3737
        %v3739 = vcvt.f32.s32 %v3733
        %v3740 = vshll.u32 %v3739, 16
        %v3741 = vadd.s32 %v3740, %v3738
        %v3742 = vsel %vm210, %v3706, 2147483647
        %v3743 = vand.u32 %v3742, 65535
        %v3744 = vshra.s32 %v3742, 16
        %v3745 = vcvt.s32.f32 %v3743
        %v3746 = vcvt.s32.f32 %v3744
        %3747 = vmin.xlane.f32.xlu0 %v3746
        %v3748 = vpop.xlane.xlu0 %3747
        %vm3749 = vcmp.eq.f32.partialorder %v3746, %v3748
        %v3750 = vsel %vm3749, %v3745, inf
        %3751 = vmin.xlane.f32.xlu0 %v3750
        %v3752 = vpop.xlane.xlu0 %3751
        %v3753 = vcvt.f32.s32 %v3752
        %v3754 = vcvt.f32.s32 %v3748
        %v3755 = vshll.u32 %v3754, 16
        %v3756 = vadd.s32 %v3755, %v3753
        %v3757 = vsel %vm210, %v3707, 2147483647
        %v3758 = vand.u32 %v3757, 65535
        %v3759 = vshra.s32 %v3757, 16
        %v3760 = vcvt.s32.f32 %v3758
        %v3761 = vcvt.s32.f32 %v3759
        %3762 = vmin.xlane.f32.xlu0 %v3761
        %v3763 = vpop.xlane.xlu0 %3762
        %vm3764 = vcmp.eq.f32.partialorder %v3761, %v3763
        %v3765 = vsel %vm3764, %v3760, inf
        %3766 = vmin.xlane.f32.xlu0 %v3765
        %v3767 = vpop.xlane.xlu0 %3766
        %v3768 = vcvt.f32.s32 %v3767
        %v3769 = vcvt.f32.s32 %v3763
        %v3770 = vshll.u32 %v3769, 16
        %v3771 = vadd.s32 %v3770, %v3768
        %v3772 = vsel %vm210, %v3708, 2147483647
        %v3773 = vand.u32 %v3772, 65535
        %v3774 = vshra.s32 %v3772, 16
        %v3775 = vcvt.s32.f32 %v3773
        %v3776 = vcvt.s32.f32 %v3774
        %3777 = vmin.xlane.f32.xlu0 %v3776
        %v3778 = vpop.xlane.xlu0 %3777
        %vm3779 = vcmp.eq.f32.partialorder %v3776, %v3778
        %v3780 = vsel %vm3779, %v3775, inf
        %3781 = vmin.xlane.f32.xlu0 %v3780
        %v3782 = vpop.xlane.xlu0 %3781
        %v3783 = vcvt.f32.s32 %v3782
        %v3784 = vcvt.f32.s32 %v3778
        %v3785 = vshll.u32 %v3784, 16
        %v3786 = vadd.s32 %v3785, %v3783
        %v3787 = vsel %vm210, %v3709, 2147483647
        %v3788 = vand.u32 %v3787, 65535
        %v3789 = vshra.s32 %v3787, 16
        %v3790 = vcvt.s32.f32 %v3788
        %v3791 = vcvt.s32.f32 %v3789
        %3792 = vmin.xlane.f32.xlu0 %v3791
        %v3793 = vpop.xlane.xlu0 %3792
        %vm3794 = vcmp.eq.f32.partialorder %v3791, %v3793
        %v3795 = vsel %vm3794, %v3790, inf
        %3796 = vmin.xlane.f32.xlu0 %v3795
        %v3797 = vpop.xlane.xlu0 %3796
        %v3798 = vcvt.f32.s32 %v3797
        %v3799 = vcvt.f32.s32 %v3793
        %v3800 = vshll.u32 %v3799, 16
        %v3801 = vadd.s32 %v3800, %v3798
        %v3802 = vsel %vm210, %v3710, 2147483647
        %v3803 = vand.u32 %v3802, 65535
        %v3804 = vshra.s32 %v3802, 16
        %v3805 = vcvt.s32.f32 %v3803
        %v3806 = vcvt.s32.f32 %v3804
        %3807 = vmin.xlane.f32.xlu0 %v3806
        %v3808 = vpop.xlane.xlu0 %3807
        %vm3809 = vcmp.eq.f32.partialorder %v3806, %v3808
        %v3810 = vsel %vm3809, %v3805, inf
        %3811 = vmin.xlane.f32.xlu0 %v3810
        %v3812 = vpop.xlane.xlu0 %3811
        %v3813 = vcvt.f32.s32 %v3812
        %v3814 = vcvt.f32.s32 %v3808
        %v3815 = vshll.u32 %v3814, 16
        %v3816 = vadd.s32 %v3815, %v3813
        %v3817 = vsel %vm210, %v3711, 2147483647
        %v3818 = vand.u32 %v3817, 65535
        %v3819 = vshra.s32 %v3817, 16
        %v3820 = vcvt.s32.f32 %v3818
        %v3821 = vcvt.s32.f32 %v3819
        %3822 = vmin.xlane.f32.xlu0 %v3821
        %v3823 = vpop.xlane.xlu0 %3822
        %vm3824 = vcmp.eq.f32.partialorder %v3821, %v3823
        %v3825 = vsel %vm3824, %v3820, inf
        %3826 = vmin.xlane.f32.xlu0 %v3825
        %v3827 = vpop.xlane.xlu0 %3826
        %v3828 = vcvt.f32.s32 %v3827
        %v3829 = vcvt.f32.s32 %v3823
        %v3830 = vshll.u32 %v3829, 16
        %v3831 = vadd.s32 %v3830, %v3828
        %vm3832 = vcmp.eq.s32.totalorder %v3726, %v208
        %vm3833 = vcmp.eq.s32.totalorder %v3741, %v208
        %vm3834 = vcmp.eq.s32.totalorder %v3756, %v208
        %vm3835 = vcmp.eq.s32.totalorder %v3771, %v208
        %vm3836 = vcmp.eq.s32.totalorder %v3786, %v208
        %vm3837 = vcmp.eq.s32.totalorder %v3801, %v208
        %vm3838 = vcmp.eq.s32.totalorder %v3816, %v208
        %vm3839 = vcmp.eq.s32.totalorder %v3831, %v208
        %v3840 = vsel %vm3832, 1, 0
        %v3841 = vsel %vm3833, 1, 0
        %v3842 = vsel %vm3834, 1, 0
        %v3843 = vsel %vm3835, 1, 0
        %v3844 = vsel %vm3836, 1, 0
        %v3845 = vsel %vm3837, 1, 0
        %v3846 = vsel %vm3838, 1, 0
        %v3847 = vsel %vm3839, 1, 0
        %v3848 = vcvt.s32.f32 %v3840
        %v3849 = vcvt.s32.f32 %v3841
        %v3850 = vcvt.s32.f32 %v3842
        %v3851 = vcvt.s32.f32 %v3843
        %v3852 = vcvt.s32.f32 %v3844
        %v3853 = vcvt.s32.f32 %v3845
        %v3854 = vcvt.s32.f32 %v3846
        %v3855 = vcvt.s32.f32 %v3847
        %3856 = vxpose.xlu0.b32.start [1/16] %v3848, 128
        %3857 = vxpose.xlu0.b32.cont [2/16] %v3849, 128
        %3858 = vxpose.xlu0.b32.cont [3/16] %v3850, 128
        %3859 = vxpose.xlu0.b32.cont [4/16] %v3851, 128
        %3860 = vxpose.xlu0.b32.cont [5/16] %v3852, 128
        %3861 = vxpose.xlu0.b32.cont [6/16] %v3853, 128
        %3862 = vxpose.xlu0.b32.cont [7/16] %v3854, 128
        %3863 = vxpose.xlu0.b32.cont [8/16] %v3855, 128
        %3864 = vxpose.xlu0.b32.cont [9/16] 0.0, 128
        %3865 = vxpose.xlu0.b32.cont [10/16] 0.0, 128
        %3866 = vxpose.xlu0.b32.cont [11/16] 0.0, 128
        %3867 = vxpose.xlu0.b32.cont [12/16] 0.0, 128
        %3868 = vxpose.xlu0.b32.cont [13/16] 0.0, 128
        %3869 = vxpose.xlu0.b32.cont [14/16] 0.0, 128
        %3870 = vxpose.xlu0.b32.cont [15/16] 0.0, 128
        %3871 = vxpose.xlu0.b32.end [16/16] 0.0, 128
        %v3872 = vpop.trf.xlu0
        %v3873 = vpop.trf.xlu0
        %v3874 = vpop.trf.xlu0
        %v3875 = vpop.trf.xlu0
        %v3876 = vpop.trf.xlu0
        %v3877 = vpop.trf.xlu0
        %v3878 = vpop.trf.xlu0
        %v3879 = vpop.trf.xlu0
        %v3880 = vpop.trf.xlu0
        %v3881 = vpop.trf.xlu0
        %v3882 = vpop.trf.xlu0
        %v3883 = vpop.trf.xlu0
        %v3884 = vpop.trf.xlu0
        %v3885 = vpop.trf.xlu0
        %v3886 = vpop.trf.xlu0
        %v3887 = vpop.trf.xlu0
        %v3889 = vsel %vm539, %v3872, 0
        %3891 = vmatpush.msra.mxu0 0.0
        %3892 = vmatpush.msra.mxu0 0.0
        %3893 = vmatpush.msra.mxu0 0.0
        %3894 = vmatpush.msra.mxu0 0.0
        %3895 = vmatpush.msra.mxu0 0.0
        %3896 = vmatpush.msra.mxu0 0.0
        %3897 = vmatpush.msra.mxu0 0.0
        %3898 = vmatpush.msra.mxu0 0.0
        %3899 = vmatpush.msra.mxu0 %v206
        %3900 = vmatpush.msra.mxu0 %v205
        %3901 = vmatpush.msra.mxu0 %v204
        %3902 = vmatpush.msra.mxu0 %v203
        %3903 = vmatpush.msra.mxu0 %v202
        %3904 = vmatpush.msra.mxu0 %v201
        %3905 = vmatpush.msra.mxu0 %v200
        %3906 = vmatpush.msra.mxu0 %v199
        %3907 = vmatmul.f32.gmra.mxu0 %v3889
        %v3908 = vpop.f32.mrf.mxu0
        %v3909 = vadd.f32 0.0, %v3908
        %3910 = vdwg.mxu0
        %3911 = vmatpush.msra.mxu0 0.0
        %3912 = vmatpush.msra.mxu0 0.0
        %3913 = vmatpush.msra.mxu0 0.0
        %3914 = vmatpush.msra.mxu0 0.0
        %3915 = vmatpush.msra.mxu0 0.0
        %3916 = vmatpush.msra.mxu0 0.0
        %3917 = vmatpush.msra.mxu0 0.0
        %3918 = vmatpush.msra.mxu0 0.0
        %3919 = vmatpush.msra.mxu0 1.0
        %3920 = vmatpush.msra.mxu0 1.0
        %3921 = vmatpush.msra.mxu0 1.0
        %3922 = vmatpush.msra.mxu0 1.0
        %3923 = vmatpush.msra.mxu0 1.0
        %3924 = vmatpush.msra.mxu0 1.0
        %3925 = vmatpush.msra.mxu0 1.0
        %3926 = vmatpush.msra.mxu0 1.0
        %3927 = vmatmul.f32.gmra.mxu0 %v3889
        %v3928 = vpop.f32.mrf.mxu0
        %v3929 = vadd.f32 0.0, %v3928
        %3930 = vdwg.mxu0
        %vm3931 = vcmp.gt.f32.partialorder %v3929, 0.0
        %v3932 = vmax.f32 %v3929, 1.0
        %3934 = vset.pattern.permute.xlu0 0
        %3935 = vperm.xlu0 %3934, %v3932
        %v3936 = vpop.permute.xlu0 %3935
        %v3938 = vrcp.pop %v3936
        %v3939 = vmul.f32 %v3936, %v3938
        %v3940 = vsub.f32 1.0, %v3939
        %v3941 = vmul.f32 %v3938, %v3940
        %v3942 = vadd.f32 %v3938, %v3941
        %vm3943 = vweird.f32 %v3936
        %vm3944 = vweird.f32 %v3938
        %vm3945 = vmor %vm3943, %vm3944
        %v3946 = vsel %vm3945, %v3938, %v3942
        %v3947 = vand.u32 2147483647, %v3936
        %vm3948 = vcmp.eq.f32.partialorder %v3947, 8.507059e+37
        %v3949 = vand.u32 %v3936, 2147483648
        %v3950 = vor.u32 1.1754944e-38, %v3949
        %v3951 = vsel %vm3948, %v3950, %v3946
        %v3952 = vmul.f32 %v3909, %v3951
        %v3953 = vsel %vm3931, 1, 0
        %3954 = vset.pattern.permute.xlu0 0
        %3955 = vperm.xlu0 %3954, %v3953
        %v3956 = vpop.permute.xlu0 %3955
        %vm3957 = vcmp.eq.s32.totalorder %v3956, 1
        %v3958 = vsel %vm3957, %v3952, %v3586
        %3959 = vst.msk [vmem:[%s177] sm:$0xff] %vm210, %v3958
        %vm3960 = vcmask 7168
        %3961 = vst.msk [vmem:[%s198] sm:$0xff] %vm3960, %v3726
        %3962 = vst.msk [vmem:[%s198 + $0x8] sm:$0xff] %vm3960, %v3741
        %3963 = vst.msk [vmem:[%s198 + $0x10] sm:$0xff] %vm3960, %v3756
        %3964 = vst.msk [vmem:[%s198 + $0x18] sm:$0xff] %vm3960, %v3771
        %3965 = vst.msk [vmem:[%s198 + $0x20] sm:$0xff] %vm3960, %v3786
        %3966 = vst.msk [vmem:[%s198 + $0x28] sm:$0xff] %vm3960, %v3801
        %3967 = vst.msk [vmem:[%s198 + $0x30] sm:$0xff] %vm3960, %v3816
        %3968 = vst.msk [vmem:[%s198 + $0x38] sm:$0xff] %vm3960, %v3831
        %s3969 = sand.u32 %s78, 1
        %s3970 = scalar_lea.sflag [#allocation3], %s3969
        %s3971 = sand.u32 %s78, 1
        %s3972 = smul.addr %s3971, 8
        %s3973 = scalar_lea.vmem [#allocation2], %s3972
        %p3974 = scmp.lt.s32.totalorder %s18, 1
        %s3975 = scalar_select %p3974, %s18, 1
        %s3976 = smul.addr %s3975, 8
        %s3977 = smul.addr %s3976, 8
        %s3978 = scalar_lea.vmem %s3, %s3977
        // Predicated region
        $region29: #{tpu_custom_call.1} parent=27 // pred_check
          %p3979 = pneg %p88
        $region30: #{tpu_custom_call.1} parent=27 // pred_check_branch
          %3981 = sbr.rel (%p3979) target = $region32
        $region31: #{tpu_custom_call.1} parent=27 // pred_region
          %3983 = vsyncadd %s3970, 0
          %s3984 = smul.addr %s18, 8
          %s3985 = scalar_lea.hbm %s2, %s3984
          %s3987 = sshll.u32 %s3973, 4
          %s3988 = int_to_ptr.vmem [resolvable:$true] %s3987
          %s3989 = sshll.u32 %s3985, 4
          %s3990 = int_to_ptr.hbm [resolvable:$true] %s3989
          %3992 = dma.vmem_to_hbm [thread:$0]  %s3988, 128, %s3990, %s3970
        $region32: #{tpu_custom_call.1} parent=27 // pred_fallthru
          _
        // Predicated region
        $region33: #{tpu_custom_call.1} parent=27 // pred_check
          %p3993 = pneg %p114
        $region34: #{tpu_custom_call.1} parent=27 // pred_check_branch
          %3995 = sbr.rel (%p3993) target = $region36
        $region35: #{tpu_custom_call.1} parent=27 // pred_region
          _
        $region36: #{tpu_custom_call.1} parent=27 // pred_fallthru
          _
      $region28: #{tpu_custom_call.1} parent=5 // pred_fallthru
        _
      %p3996 = scmp.le.s32.totalorder 2, %s13
      // Predicated region
      $region37: #{tpu_custom_call.1} parent=5 // pred_check
        %p3997 = pneg %p3996
      $region38: #{tpu_custom_call.1} parent=5 // pred_check_branch
        %3999 = sbr.rel (%p3997) target = $region40
      $region39: #{tpu_custom_call.1} parent=5 // pred_region
        %s4000 = ssub.s32 %s13, 2
        // Predicated region
        $region41: #{tpu_custom_call.1} parent=39 // pred_check
          %p4001 = pneg %p94
        $region42: #{tpu_custom_call.1} parent=39 // pred_check_branch
          %4003 = sbr.rel (%p4001) target = $region44
        $region43: #{tpu_custom_call.1} parent=39 // pred_region
          %s4004 = sand.u32 %s79, 1
          %s4005 = scalar_lea.sflag [#allocation3], %s4004
          %s4006 = sand.u32 %s79, 1
          %s4007 = smul.addr %s4006, 8
          %s4008 = scalar_lea.vmem [#allocation2], %s4007
          %4010 = dma.done %s4005, 128
        $region44: #{tpu_custom_call.1} parent=39 // pred_fallthru
          _
        // Predicated region
        $region45: #{tpu_custom_call.1} parent=39 // pred_check
          %p4011 = pneg %p120
        $region46: #{tpu_custom_call.1} parent=39 // pred_check_branch
          %4013 = sbr.rel (%p4011) target = $region48
        $region47: #{tpu_custom_call.1} parent=39 // pred_region
          %p4014 = scmp.lt.s32.totalorder %s19, 1
          %s4015 = scalar_select %p4014, %s19, 1
          %s4016 = smul.addr %s4015, 8
          %s4017 = smul.addr %s4016, 8
          %s4018 = scalar_lea.vmem %s3, %s4017
        $region48: #{tpu_custom_call.1} parent=39 // pred_fallthru
          _
      $region40: #{tpu_custom_call.1} parent=5 // pred_fallthru
        _
    $region6: #{tpu_custom_call.1} parent=1 // loop_footer
      %s17 = sadd.s32 1, %s13
    $region7: #{tpu_custom_call.1} parent=1 // loop_footer_branch
      %12 = sbr.rel target = $region3
    $region8: #{tpu_custom_call.1} parent=1 // loop_exit
      _
    %4019 = vsyncpa [#allocation3], 1
    %s4020 = scalar_lea.sflag [#allocation3], 1
    %4021 = vsyncpa %s4020, 1

</llo_original>
